<compile_context>
chip_gen: v6e
topology: v6e:2x2x1
jax: 0.10.0
libtpu: 0.0.40
codegen_flags: <defaults>
</compile_context>

<pallas_src>
import functools

import jax
import jax.numpy as jnp
from jax.experimental import pallas as pl
from jax.experimental.pallas import tpu as pltpu

_LN_EPS = 1e-5
_BN_EPS = 1e-5
_MM_DTYPE = jnp.bfloat16  # MXU input dtype; accumulation and all epilogue math stay f32


def _round_up(x, m):
    return (x + m - 1) // m * m


def _vmem_limit_bytes():
    # Generation-aware scoped-VMEM limit: ~3/4 of physical VMEM, capped at 96 MiB.
    # v5e/v6e (128 MiB physical) -> 96 MiB; v7x (64 MiB physical) -> 48 MiB.
    try:
        cap = int(getattr(pltpu.get_tpu_info(), "vmem_capacity_bytes", 64 * 1024 * 1024))
    except Exception:
        cap = 64 * 1024 * 1024
    return int(max(32 * 1024 * 1024, min(cap * 3 // 4, 96 * 1024 * 1024)))


_VMEM_LIMIT = _vmem_limit_bytes()
_VMEM_BUDGET = _VMEM_LIMIT // 2  # per-step working-set target (leaves double-buffering headroom)


def _pick_bb(B, bytes_per_elem, fixed_bytes=0):
    """Largest batch-block whose double-buffered footprint fits the VMEM budget while keeping
    >= 2 grid blocks whenever B >= 2 (so both v7x TensorCores get work)."""
    best = 1
    for bb in range(1, B + 1):
        if B % bb:
            continue
        if 2 * bb * bytes_per_elem + fixed_bytes > _VMEM_BUDGET:
            continue
        if B >= 2 and (B // bb) < 2:
            continue
        best = bb
    return best


# ----------------------------- fused tiled matmul ------------------------------


def _fused_matmul_kernel(*refs, nk, has_bias, has_in_ln, has_out_ln, has_res, act):
    """y = act(LN_in(x) @ w [+ b]) [LN_out] [+ residual]; bf16 MXU inputs, f32 accumulate."""
    it = iter(refs)
    x_ref = next(it)
    w_ref = next(it)
    b_ref = next(it) if has_bias else None
    if has_in_ln:
        ing_ref = next(it)
        inb_ref = next(it)
    if has_out_ln:
        outg_ref = next(it)
        outb_ref = next(it)
    r_ref = next(it) if has_res else None
    o_ref = next(it)
    acc_ref = next(it) if nk > 1 else None

    x = x_ref[0]
    if has_in_ln:  # LayerNorm fused as prologue (requires tk == K); math in f32
        xf = x.astype(jnp.float32)
        mu = jnp.mean(xf, axis=-1, keepdims=True)
        xc = xf - mu
        var = jnp.mean(xc * xc, axis=-1, keepdims=True)
        x = xc * jax.lax.rsqrt(var + _LN_EPS) * ing_ref[0] + inb_ref[0]

    part = jnp.dot(x.astype(_MM_DTYPE), w_ref[0],
                   preferred_element_type=jnp.float32)            # bf16 x bf16 -> f32 on the MXU

    def _epilogue(y):
        if has_bias:
            y = y + b_ref[0]
        if act == "gelu":
            # TODO(synk): tanh-approx GELU (reference nn.GELU is exact-erf); fused so the
            # (M, 4C) MLP activation never round-trips HBM between fc1 and fc2.
            y = 0.5 * y * (1.0 + jnp.tanh(0.7978845608028654 * (y + 0.044715 * y * y * y)))
        if has_out_ln:                                            # LayerNorm fused as epilogue
            mu = jnp.mean(y, axis=-1, keepdims=True)
            yc = y - mu
            var = jnp.mean(yc * yc, axis=-1, keepdims=True)
            y = yc * jax.lax.rsqrt(var + _LN_EPS) * outg_ref[0] + outb_ref[0]
        if has_res:                                               # residual add fused as epilogue
            y = y + r_ref[0].astype(jnp.float32)
        return y.astype(o_ref.dtype)

    if nk == 1:
        # fast path: no accumulator scratch, no zero-fill, no extra VPU add / scratch store.
        o_ref[0] = _epilogue(part)
    else:
        k = pl.program_id(3)

        @pl.when(k == 0)
        def _():
            acc_ref[...] = jnp.zeros_like(acc_ref)

        acc_ref[...] += part

        @pl.when(k == nk - 1)
        def _():
            o_ref[0] = _epilogue(acc_ref[...])


def fused_matmul(x, w, b=None, *, in_ln=None, out_ln=None, act=None, residual=None,
                 tm_max=512, tn_max=256, tk_max=1024):
    """y[g] = act(LN_in(x[g]) @ w[g] [+ b]) [LN_out] [+ residual[g]].

    x: (G, M, K) or (M, K) f32; w: (G, K, N) or (K, N) bf16; b: None or (N,);
    residual: same leading layout as the output; in_ln/out_ln: (gamma, beta) tuples.
    """
    squeeze = (x.ndim == 2)
    if squeeze:
        x = x[None]
        w = w[None]
        if residual is not None:
            residual = residual[None]
    G, M, K = x.shape
    N = w.shape[-1]
    has_bias = b is not None

    # --- tile selection ---
    if M <= tm_max:
        tm, Mp = M, M
    else:
        tm = tm_max
        Mp = _round_up(M, tm)
    tn = tn_max if (N > tn_max and N % tn_max == 0) else N
    tk = tk_max if (K > tk_max and K % tk_max == 0) else K
    if in_ln is not None and tk != K:
        raise ValueError("in_ln fusion requires a single K tile")
    if out_ln is not None and tn != N:
        raise ValueError("out_ln fusion requires a single N tile")

    if Mp > M:
        # TODO(synk): for very large M, pad the token dim once in the caller instead of per call.
        x = jnp.pad(x, ((0, 0), (0, Mp - M), (0, 0)))
        if residual is not None:
            residual = jnp.pad(residual, ((0, 0), (0, Mp - M), (0, 0)))

    nm, nn, nk = Mp // tm, N // tn, K // tk
    grid = (G, nm, nn, nk)

    inputs = [x, w]
    in_specs = [
        pl.BlockSpec((1, tm, tk), lambda g, i, j, k: (g, i, k)),
        pl.BlockSpec((1, tk, tn), lambda g, i, j, k: (g, k, j)),
    ]
    if has_bias:
        bias = jnp.broadcast_to(jnp.asarray(b, jnp.float32).reshape(-1, 1, N), (G, 1, N))
        inputs.append(bias)
        in_specs.append(pl.BlockSpec((1, 1, tn), lambda g, i, j, k: (g, 0, j)))
    if in_ln is not None:
        ing, inb = in_ln
        inputs += [ing.reshape(1, 1, K).astype(jnp.float32),
                   inb.reshape(1, 1, K).astype(jnp.float32)]
        in_specs += [pl.BlockSpec((1, 1, K), lambda g, i, j, k: (0, 0, 0))] * 2
    if out_ln is not None:
        outg, outb = out_ln
        inputs += [outg.reshape(1, 1, N).astype(jnp.float32),
                   outb.reshape(1, 1, N).astype(jnp.float32)]
        in_specs += [pl.BlockSpec((1, 1, N), lambda g, i, j, k: (0, 0, 0))] * 2
    if residual is not None:
        inputs.append(residual)
        in_specs.append(pl.BlockSpec((1, tm, tn), lambda g, i, j, k: (g, i, j)))

    flops = 2 * G * Mp * K * N
    transc = G * Mp * N if act == "gelu" else 0
    bytes_acc = int(4 * G * Mp * K + 2 * G * K * N + 4 * G * Mp * N
                    + (4 * G * Mp * N if residual is not None else 0))

    out = pl.pallas_call(
        functools.partial(_fused_matmul_kernel, nk=nk, has_bias=has_bias,
                          has_in_ln=in_ln is not None, has_out_ln=out_ln is not None,
                          has_res=residual is not None, act=act),
        grid=grid,
        in_specs=in_specs,
        out_specs=pl.BlockSpec((1, tm, tn), lambda g, i, j, k: (g, i, j)),
        out_shape=jax.ShapeDtypeStruct((G, Mp, N), x.dtype),
        scratch_shapes=([] if nk == 1 else [pltpu.VMEM((tm, tn), jnp.float32)]),
        compiler_params=pltpu.CompilerParams(
            dimension_semantics=("parallel", "parallel", "parallel", "arbitrary"),
            vmem_limit_bytes=_VMEM_LIMIT),
        cost_estimate=pl.CostEstimate(flops=flops, transcendentals=transc,
                                      bytes_accessed=bytes_acc),
    )(*inputs)

    if Mp > M:
        out = out[:, :M]
    return out[0] if squeeze else out


# --------------- fused LayerNorm1 + q/k/v depthwise conv + folded BN + cls row ---------------


def _ln_conv_qkv_kernel(x_ref, lng_ref, lnb_ref, w_ref, scale_ref, shift_ref, o_ref, pad_ref,
                        *, H, W):
    # x_ref: (bb, T, C) sequence (row 0 = cls); o_ref: (3, bb, T, C); pad_ref: (H+2, W+2, C) f32.
    bb, T, C = x_ref.shape
    lng = lng_ref[...]                                   # (1, C) f32
    lnb = lnb_ref[...]

    # hoist per-group broadcasts out of the batch loop (JAX does not CSE broadcast_in_dim)
    w_all = w_ref[...].astype(jnp.float32)               # (3, 9, C)
    sc_all = scale_ref[...].astype(jnp.float32)          # (3, C)
    sh_all = shift_ref[...].astype(jnp.float32)          # (3, C)
    taps = [[w_all[g, t].reshape(1, 1, C) for t in range(9)] for g in range(3)]
    scales = [sc_all[g].reshape(1, 1, C) for g in range(3)]
    shifts = [sh_all[g].reshape(1, 1, C) for g in range(3)]

    # halo scratch: borders stay zero; interior overwritten per batch element
    pad_ref[...] = jnp.zeros_like(pad_ref)

    for b in range(bb):
        x = x_ref[b].astype(jnp.float32)                 # (T, C)
        mu = jnp.mean(x, axis=-1, keepdims=True)         # LayerNorm1 fused as prologue
        xc = x - mu
        var = jnp.mean(xc * xc, axis=-1, keepdims=True)
        xn = xc * jax.lax.rsqrt(var + _LN_EPS) * lng + lnb
        cls_row = xn[0:1, :]                             # (1, C) normalized cls token
        pad_ref[1:H + 1, 1:W + 1, :] = xn[1:, :].reshape(H, W, C)

        # 9 shifted views of the padded spatial tile, shared by q/k/v
        shifted = [pad_ref[dy:dy + H, dx:dx + W, :] for dy in range(3) for dx in range(3)]
        for g in range(3):
            acc = shifted[0] * taps[g][0]
            for t in range(1, 9):
                acc = acc + shifted[t] * taps[g][t]
            y = acc * scales[g] + shifts[g]              # folded eval-mode BN
            # cls row + spatial rows assembled in registers -> ONE dense (T, C) store
            o_ref[g, b] = jnp.concatenate([cls_row, y.reshape(H * W, C)],
                                          axis=0).astype(o_ref.dtype)


def pallas_ln_conv_qkv(x_seq, ln_g, ln_b, w3, scale3, shift3, H, W):
    # x_seq: (B, T, C) -> (3, B, T, C) = [cls | dw-conv+BN of LN1(spatial)] per q/k/v group.
    B, T, C = x_seq.shape
    bytes_per_b = 4 * (T * C * 4)                        # x block + 3x out block, f32
    scratch_bytes = (H + 2) * (W + 2) * C * 4
    bb = _pick_bb(B, bytes_per_b, scratch_bytes)
    return pl.pallas_call(
        functools.partial(_ln_conv_qkv_kernel, H=H, W=W),
        grid=(B // bb,),
        in_specs=[
            pl.BlockSpec((bb, T, C), lambda i: (i, 0, 0)),
            pl.BlockSpec((1, C), lambda i: (0, 0)),
            pl.BlockSpec((1, C), lambda i: (0, 0)),
            pl.BlockSpec((3, 9, C), lambda i: (0, 0, 0)),
            pl.BlockSpec((3, C), lambda i: (0, 0)),
            pl.BlockSpec((3, C), lambda i: (0, 0)),
        ],
        out_specs=pl.BlockSpec((3, bb, T, C), lambda i: (0, i, 0, 0)),
        out_shape=jax.ShapeDtypeStruct((3, B, T, C), x_seq.dtype),
        scratch_shapes=[pltpu.VMEM((H + 2, W + 2, C), jnp.float32)],
        compiler_params=pltpu.CompilerParams(dimension_semantics=("parallel",),
                                             vmem_limit_bytes=_VMEM_LIMIT),
    )(x_seq, ln_g.reshape(1, C).astype(jnp.float32), ln_b.reshape(1, C).astype(jnp.float32),
      w3, scale3, shift3)


# ----------------------------- multi-head attention ------------------------------


def _attention_kernel(qkv_ref, o_ref, *, num_heads, scale):
    # qkv_ref: (3, bb, T, C) stacked q/k/v; all heads of bb batch elements per grid step.
    bb, T, C = o_ref.shape
    D = C // num_heads
    for b in range(bb):
        outs = []
        for h in range(num_heads):
            lo = h * D
            q = qkv_ref[0, b, :, lo:lo + D].astype(jnp.float32)   # (T, D)
            k = qkv_ref[1, b, :, lo:lo + D].astype(jnp.float32)
            v = qkv_ref[2, b, :, lo:lo + D].astype(jnp.float32)
            s = jax.lax.dot_general(q, k, (((1,), (1,)), ((), ())),
                                    preferred_element_type=jnp.float32) * scale
            m = jnp.max(s, axis=-1, keepdims=True)
            e = jnp.exp(s - m)
            p = e / jnp.sum(e, axis=-1, keepdims=True)            # exact softmax (parity)
            outs.append(jnp.dot(p, v, preferred_element_type=jnp.float32))
        # single lane-dense (T, C) store per batch element (no head-merge transpose in XLA)
        o_ref[b] = jnp.concatenate(outs, axis=-1).astype(o_ref.dtype)


def pallas_attention(qkv, num_heads, scale):
    # qkv: (3, B, T, C) -> (B, T, C)
    # TODO(synk): for large T, switch to a flash-style query-tiled grid with online softmax
    # instead of materializing the full (T, T) score matrix per head.
    _, B, T, C = qkv.shape
    D = C // num_heads
    bytes_per_b = 4 * (4 * T * C + num_heads * T * T)
    bb = _pick_bb(B, bytes_per_b)
    flops = 4 * B * num_heads * T * T * D
    return pl.pallas_call(
        functools.partial(_attention_kernel, num_heads=num_heads, scale=scale),
        grid=(B // bb,),
        in_specs=[pl.BlockSpec((3, bb, T, C), lambda i: (0, i, 0, 0))],
        out_specs=pl.BlockSpec((bb, T, C), lambda i: (i, 0, 0)),
        out_shape=jax.ShapeDtypeStruct((B, T, C), qkv.dtype),
        compiler_params=pltpu.CompilerParams(dimension_semantics=("parallel",),
                                             vmem_limit_bytes=_VMEM_LIMIT),
        cost_estimate=pl.CostEstimate(flops=flops, transcendentals=B * num_heads * T * T,
                                      bytes_accessed=4 * 4 * B * T * C),
    )(qkv)


# ----------------------------- parameters ------------------------------


def init_params(key, patch_size, in_chans, embed_dim, depth, num_heads, mlp_ratio):
    del num_heads  # only used in the forward pass
    keys = iter(jax.random.split(key, 4 + depth * 16))

    def nrm(shape, std=0.02):
        return (std * jax.random.normal(next(keys), shape)).astype(jnp.float32)

    C = embed_dim
    hid = int(C * mlp_ratio)
    ones = lambda n: jnp.ones((n,), jnp.float32)
    zeros = lambda n: jnp.zeros((n,), jnp.float32)

    params = {
        "patch_w": nrm((C, in_chans, patch_size, patch_size)),   # torch Conv2d layout
        "patch_b": zeros(C),
        "patch_ln_g": ones(C), "patch_ln_b": zeros(C),
        "cls_token": nrm((1, 1, C)),
        "blocks": [],
    }
    for _ in range(depth):
        blk = {
            "ln1_g": ones(C), "ln1_b": zeros(C),
            "ln2_g": ones(C), "ln2_b": zeros(C),
            # depthwise conv weights (C, 1, 3, 3), no bias (groups=C)
            "dw_q_w": nrm((C, 1, 3, 3)), "dw_k_w": nrm((C, 1, 3, 3)), "dw_v_w": nrm((C, 1, 3, 3)),
            # BatchNorm2d eval params: (gamma, beta, running_mean, running_var)
            "bn_q": (ones(C), zeros(C), zeros(C), ones(C)),
            "bn_k": (ones(C), zeros(C), zeros(C), ones(C)),
            "bn_v": (ones(C), zeros(C), zeros(C), ones(C)),
            # linear weights stored as (in, out); qkv_bias=False in the reference
            "wq": nrm((C, C)), "wk": nrm((C, C)), "wv": nrm((C, C)),
            "wo": nrm((C, C)), "bo": zeros(C),
            "fc1_w": nrm((C, hid)), "fc1_b": zeros(hid),
            "fc2_w": nrm((hid, C)), "fc2_b": zeros(C),
        }
        params["blocks"].append(blk)
    return params


def fold_params(params):
    """One-time conversion to kernel-friendly layouts (BN fold, q/k/v stacking, bf16 weights)."""
    C = params["patch_ln_g"].shape[0]
    folded = {
        "patch_w": params["patch_w"].reshape(C, -1).T.astype(_MM_DTYPE),     # (Cin*p*p, C)
        "patch_b": params["patch_b"],
        "patch_ln_g": params["patch_ln_g"], "patch_ln_b": params["patch_ln_b"],
        "cls_token": params["cls_token"],
        "blocks": [],
    }
    for blk in params["blocks"]:
        w_list, scale_list, shift_list = [], [], []
        for name in ("q", "k", "v"):
            g, be, mu, var = blk["bn_" + name]
            s = g / jnp.sqrt(var + _BN_EPS)
            w_list.append(blk["dw_" + name + "_w"].reshape(C, 9).T)          # (9, C), tap dy*3+dx
            scale_list.append(s)
            shift_list.append(be - mu * s)
        folded["blocks"].append({
            "ln1_g": blk["ln1_g"], "ln1_b": blk["ln1_b"],
            "ln2_g": blk["ln2_g"], "ln2_b": blk["ln2_b"],
            "dw_w3": jnp.stack(w_list).astype(jnp.float32),                  # (3, 9, C) VPU math
            "bn_scale3": jnp.stack(scale_list).astype(jnp.float32),          # (3, C)
            "bn_shift3": jnp.stack(shift_list).astype(jnp.float32),          # (3, C)
            "w_qkv": jnp.stack([blk["wq"], blk["wk"], blk["wv"]]).astype(_MM_DTYPE),  # (3, C, C)
            "wo": blk["wo"].astype(_MM_DTYPE), "bo": blk["bo"],
            "fc1_w": blk["fc1_w"].astype(_MM_DTYPE), "fc1_b": blk["fc1_b"],
            "fc2_w": blk["fc2_w"].astype(_MM_DTYPE), "fc2_b": blk["fc2_b"],
        })
    return folded


# ----------------------------- forward pass ------------------------------


def vit_forward(params, x, cfg):
    B, Cin, Him, Wim = x.shape
    p = cfg["patch_size"]
    C = cfg["embed_dim"]
    nh = cfg["num_heads"]
    H, W = Him // p, Wim // p
    T = 1 + H * W
    scale = C ** (-0.5)   # reference uses dim_out**-0.5 (full dim, not head dim)

    # --- ConvEmbed (kernel==stride, pad 0): im2col matmul with LayerNorm fused as epilogue ---
    xp = x.reshape(B, Cin, H, p, W, p).transpose(0, 2, 4, 1, 3, 5).reshape(B * H * W, Cin * p * p)
    tok = fused_matmul(xp, params["patch_w"], params["patch_b"],
                       out_ln=(params["patch_ln_g"], params["patch_ln_b"]))   # (B*HW, C)
    tok = tok.reshape(B, H * W, C)

    cls = jnp.broadcast_to(params["cls_token"], (B, 1, C)).astype(tok.dtype)
    x_seq = jnp.concatenate([cls, tok], axis=1)                               # (B, T, C)

    for blk in params["blocks"]:
        # ---- attention branch: LN1 + q/k/v depthwise conv + BN + cls row in ONE kernel ----
        qkv_in = pallas_ln_conv_qkv(x_seq, blk["ln1_g"], blk["ln1_b"],
                                    blk["dw_w3"], blk["bn_scale3"], blk["bn_shift3"],
                                    H, W)                                     # (3, B, T, C)

        # grouped q/k/v linear projections in ONE tiled matmul call (qkv_bias=False)
        qkv = fused_matmul(qkv_in.reshape(3, B * T, C), blk["w_qkv"]).reshape(3, B, T, C)

        o = pallas_attention(qkv, nh, scale).reshape(B * T, C)

        # output projection with the residual add fused into the epilogue
        x_seq = fused_matmul(o, blk["wo"], blk["bo"],
                             residual=x_seq.reshape(B * T, C)).reshape(B, T, C)

        # ---- MLP: LN2 fused as fc1 prologue, GELU in fc1 epilogue, residual in fc2 epilogue ----
        x_flat = x_seq.reshape(B * T, C)
        hmid = fused_matmul(x_flat, blk["fc1_w"], blk["fc1_b"],
                            in_ln=(blk["ln2_g"], blk["ln2_b"]), act="gelu")
        x_seq = fused_matmul(hmid, blk["fc2_w"], blk["fc2_b"],
                             residual=x_flat).reshape(B, T, C)

    cls_out = x_seq[:, :1]                                                    # (B, 1, C)
    spat = x_seq[:, 1:].reshape(B, H, W, C).transpose(0, 3, 1, 2)             # -> (B, C, H, W)
    return spat, cls_out


# ----------------------------- demo ------------------------------


if __name__ == "__main__":
    cfg = dict(patch_size=4, in_chans=3, embed_dim=32, depth=2, num_heads=4, mlp_ratio=4.0)

    key = jax.random.PRNGKey(0)
    kx, kp = jax.random.split(key)
    x = jax.random.normal(kx, (2, cfg["in_chans"], 16, 16), dtype=jnp.float32)
    params = fold_params(init_params(kp, **cfg))

    fwd_cfg = dict(patch_size=cfg["patch_size"], embed_dim=cfg["embed_dim"],
                   num_heads=cfg["num_heads"])
    fwd = jax.jit(functools.partial(vit_forward, cfg=fwd_cfg))

    spat, cls_tok = fwd(params, x)
    jax.block_until_ready((spat, cls_tok))

    assert spat.shape == (2, cfg["embed_dim"], 4, 4), spat.shape
    assert cls_tok.shape == (2, 1, cfg["embed_dim"]), cls_tok.shape
    assert spat.dtype == jnp.float32 and cls_tok.dtype == jnp.float32
    assert bool(jnp.all(jnp.isfinite(spat))) and bool(jnp.all(jnp.isfinite(cls_tok)))

    print("KERNEL_OK")
</pallas_src>

<mosaic_0001>
module attributes {stable_mosaic.version = 11 : i64} {
  func.func @_fused_matmul_kernel(%arg0: i32, %arg1: i32, %arg2: i32, %arg3: i32, %arg4: memref<1x32x48xf32, #tpu.memory_space<vmem>>, %arg5: memref<1x48x32xbf16, #tpu.memory_space<vmem>>, %arg6: memref<1x1x32xf32, #tpu.memory_space<vmem>>, %arg7: memref<1x1x32xf32, #tpu.memory_space<vmem>>, %arg8: memref<1x1x32xf32, #tpu.memory_space<vmem>>, %arg9: memref<1x32x32xf32, #tpu.memory_space<vmem>>) attributes {dimension_semantics = [#tpu.dimension_semantics<parallel>, #tpu.dimension_semantics<parallel>, #tpu.dimension_semantics<parallel>, #tpu.dimension_semantics<arbitrary>], iteration_bounds = array<i64: 1, 1, 1, 1>, scalar_prefetch = 0 : i64, scratch_operands = 0 : i64, tpu.core_type = #tpu.core_type<tc>, window_params = [{transform_indices = @transform_0, window_bounds = array<i64: 1, 32, 48>}, {transform_indices = @transform_1, window_bounds = array<i64: 1, 48, 32>}, {transform_indices = @transform_2, window_bounds = array<i64: 1, 1, 32>}, {pipeline_mode = #tpu.pipeline_mode<synchronous>, transform_indices = @transform_3, window_bounds = array<i64: 1, 1, 32>}, {pipeline_mode = #tpu.pipeline_mode<synchronous>, transform_indices = @transform_4, window_bounds = array<i64: 1, 1, 32>}, {transform_indices = @transform_5, window_bounds = array<i64: 1, 32, 32>}]} {
    %c0 = arith.constant 0 : index
    %c0_0 = arith.constant 0 : index
    %c0_1 = arith.constant 0 : index
    %0 = vector.load %arg4[%c0, %c0_0, %c0_1] : memref<1x32x48xf32, #tpu.memory_space<vmem>>, vector<1x32x48xf32>
    %1 = vector.shape_cast %0 : vector<1x32x48xf32> to vector<32x48xf32>
    %2 = arith.truncf %1 : vector<32x48xf32> to vector<32x48xbf16>
    %c0_2 = arith.constant 0 : index
    %c0_3 = arith.constant 0 : index
    %c0_4 = arith.constant 0 : index
    %3 = vector.load %arg5[%c0_2, %c0_3, %c0_4] : memref<1x48x32xbf16, #tpu.memory_space<vmem>>, vector<1x48x32xbf16>
    %4 = vector.shape_cast %3 : vector<1x48x32xbf16> to vector<48x32xbf16>
    %cst = arith.constant dense<0.000000e+00> : vector<32x32xf32>
    %5 = tpu.matmul %2, %4, %cst {dimension_numbers = #tpu.dot_dimension_numbers<[1], [0], [0], [1], [0, 0, 1, 1], [], []>} : vector<32x48xbf16>, vector<48x32xbf16>, vector<32x32xf32> -> vector<32x32xf32>
    %c0_5 = arith.constant 0 : index
    %c0_6 = arith.constant 0 : index
    %c0_7 = arith.constant 0 : index
    %6 = vector.load %arg6[%c0_5, %c0_6, %c0_7] : memref<1x1x32xf32, #tpu.memory_space<vmem>>, vector<1x1x32xf32>
    %7 = vector.shape_cast %6 : vector<1x1x32xf32> to vector<1x32xf32>
    %8 = vector.broadcast %7 : vector<1x32xf32> to vector<32x32xf32>
    %9 = arith.addf %5, %8 : vector<32x32xf32>
    %cst_8 = arith.constant dense<0.000000e+00> : vector<32xf32>
    %10 = vector.multi_reduction <add>, %9, %cst_8 [1] : vector<32x32xf32> to vector<32xf32>
    %11 = vector.shape_cast %10 : vector<32xf32> to vector<32x1xf32>
    %cst_9 = arith.constant 3.200000e+01 : f32
    %12 = vector.broadcast %cst_9 : f32 to vector<32x1xf32>
    %13 = arith.divf %11, %12 : vector<32x1xf32>
    %14 = vector.broadcast %13 : vector<32x1xf32> to vector<32x32xf32>
    %15 = arith.subf %9, %14 : vector<32x32xf32>
    %16 = arith.mulf %15, %15 : vector<32x32xf32>
    %cst_10 = arith.constant dense<0.000000e+00> : vector<32xf32>
    %17 = vector.multi_reduction <add>, %16, %cst_10 [1] : vector<32x32xf32> to vector<32xf32>
    %18 = vector.shape_cast %17 : vector<32xf32> to vector<32x1xf32>
    %cst_11 = arith.constant 3.200000e+01 : f32
    %19 = vector.broadcast %cst_11 : f32 to vector<32x1xf32>
    %20 = arith.divf %18, %19 : vector<32x1xf32>
    %cst_12 = arith.constant 9.99999974E-6 : f32
    %21 = vector.broadcast %cst_12 : f32 to vector<32x1xf32>
    %22 = arith.addf %20, %21 : vector<32x1xf32>
    %23 = math.rsqrt %22 : vector<32x1xf32>
    %24 = vector.broadcast %23 : vector<32x1xf32> to vector<32x32xf32>
    %25 = arith.mulf %15, %24 : vector<32x32xf32>
    %c0_13 = arith.constant 0 : index
    %c0_14 = arith.constant 0 : index
    %c0_15 = arith.constant 0 : index
    %26 = vector.load %arg7[%c0_13, %c0_14, %c0_15] : memref<1x1x32xf32, #tpu.memory_space<vmem>>, vector<1x1x32xf32>
    %27 = vector.shape_cast %26 : vector<1x1x32xf32> to vector<1x32xf32>
    %28 = vector.broadcast %27 : vector<1x32xf32> to vector<32x32xf32>
    %29 = arith.mulf %25, %28 : vector<32x32xf32>
    %c0_16 = arith.constant 0 : index
    %c0_17 = arith.constant 0 : index
    %c0_18 = arith.constant 0 : index
    %30 = vector.load %arg8[%c0_16, %c0_17, %c0_18] : memref<1x1x32xf32, #tpu.memory_space<vmem>>, vector<1x1x32xf32>
    %31 = vector.shape_cast %30 : vector<1x1x32xf32> to vector<1x32xf32>
    %32 = vector.broadcast %31 : vector<1x32xf32> to vector<32x32xf32>
    %33 = arith.addf %29, %32 : vector<32x32xf32>
    %c0_19 = arith.constant 0 : index
    %c0_20 = arith.constant 0 : index
    %c0_21 = arith.constant 0 : index
    %34 = vector.load %arg9[%c0_19, %c0_20, %c0_21] : memref<1x32x32xf32, #tpu.memory_space<vmem>>, vector<1x32x32xf32>
    %35 = vector.shape_cast %34 : vector<1x32x32xf32> to vector<32x32xf32>
    %36 = vector.shape_cast %33 : vector<32x32xf32> to vector<1x32x32xf32>
    tpu.vector_store %arg9[%c0_19, %c0_20, %c0_21], %36 {strides = array<i32>} : memref<1x32x32xf32, #tpu.memory_space<vmem>>, vector<1x32x32xf32>,
    return
  }
  func.func @transform_0(%arg0: i32, %arg1: i32, %arg2: i32, %arg3: i32) -> (i32, i32, i32) {
    %c0_i32 = arith.constant 0 : i32
    return %arg0, %arg1, %arg3 : i32, i32, i32
  }
  func.func @transform_1(%arg0: i32, %arg1: i32, %arg2: i32, %arg3: i32) -> (i32, i32, i32) {
    %c0_i32 = arith.constant 0 : i32
    return %arg0, %arg3, %arg2 : i32, i32, i32
  }
  func.func @transform_2(%arg0: i32, %arg1: i32, %arg2: i32, %arg3: i32) -> (i32, i32, i32) {
    %c0_i32 = arith.constant 0 : i32
    %c0_i32_0 = arith.constant 0 : i32
    return %arg0, %c0_i32, %arg2 : i32, i32, i32
  }
  func.func @transform_3(%arg0: i32, %arg1: i32, %arg2: i32, %arg3: i32) -> (i32, i32, i32) {
    %c0_i32 = arith.constant 0 : i32
    %c0_i32_0 = arith.constant 0 : i32
    %c0_i32_1 = arith.constant 0 : i32
    %c0_i32_2 = arith.constant 0 : i32
    return %c0_i32, %c0_i32_0, %c0_i32_1 : i32, i32, i32
  }
  func.func @transform_4(%arg0: i32, %arg1: i32, %arg2: i32, %arg3: i32) -> (i32, i32, i32) {
    %c0_i32 = arith.constant 0 : i32
    %c0_i32_0 = arith.constant 0 : i32
    %c0_i32_1 = arith.constant 0 : i32
    %c0_i32_2 = arith.constant 0 : i32
    return %c0_i32, %c0_i32_0, %c0_i32_1 : i32, i32, i32
  }
  func.func @transform_5(%arg0: i32, %arg1: i32, %arg2: i32, %arg3: i32) -> (i32, i32, i32) {
    %c0_i32 = arith.constant 0 : i32
    return %arg0, %arg1, %arg2 : i32, i32, i32
  }
}

module attributes {stable_mosaic.version = 11 : i64} {
  func.func @_fused_matmul_kernel(%arg0: i32, %arg1: i32, %arg2: i32, %arg3: i32, %arg4: memref<1x34x32xf32, #tpu.memory_space<vmem>>, %arg5: memref<1x32x32xbf16, #tpu.memory_space<vmem>>, %arg6: memref<1x34x32xf32, #tpu.memory_space<vmem>>) attributes {dimension_semantics = [#tpu.dimension_semantics<parallel>, #tpu.dimension_semantics<parallel>, #tpu.dimension_semantics<parallel>, #tpu.dimension_semantics<arbitrary>], iteration_bounds = array<i64: 3, 1, 1, 1>, scalar_prefetch = 0 : i64, scratch_operands = 0 : i64, tpu.core_type = #tpu.core_type<tc>, window_params = [{transform_indices = @transform_0, window_bounds = array<i64: 1, 34, 32>}, {transform_indices = @transform_1, window_bounds = array<i64: 1, 32, 32>}, {transform_indices = @transform_2, window_bounds = array<i64: 1, 34, 32>}]} {
    %c0 = arith.constant 0 : index
    %c0_0 = arith.constant 0 : index
    %c0_1 = arith.constant 0 : index
    %0 = vector.load %arg4[%c0, %c0_0, %c0_1] : memref<1x34x32xf32, #tpu.memory_space<vmem>>, vector<1x34x32xf32>
    %1 = vector.shape_cast %0 : vector<1x34x32xf32> to vector<34x32xf32>
    %2 = arith.truncf %1 : vector<34x32xf32> to vector<34x32xbf16>
    %c0_2 = arith.constant 0 : index
    %c0_3 = arith.constant 0 : index
    %c0_4 = arith.constant 0 : index
    %3 = vector.load %arg5[%c0_2, %c0_3, %c0_4] : memref<1x32x32xbf16, #tpu.memory_space<vmem>>, vector<1x32x32xbf16>
    %4 = vector.shape_cast %3 : vector<1x32x32xbf16> to vector<32x32xbf16>
    %cst = arith.constant dense<0.000000e+00> : vector<34x32xf32>
    %5 = tpu.matmul %2, %4, %cst {dimension_numbers = #tpu.dot_dimension_numbers<[1], [0], [0], [1], [0, 0, 1, 1], [], []>} : vector<34x32xbf16>, vector<32x32xbf16>, vector<34x32xf32> -> vector<34x32xf32>
    %c0_5 = arith.constant 0 : index
    %c0_6 = arith.constant 0 : index
    %c0_7 = arith.constant 0 : index
    %6 = vector.load %arg6[%c0_5, %c0_6, %c0_7] : memref<1x34x32xf32, #tpu.memory_space<vmem>>, vector<1x34x32xf32>
    %7 = vector.shape_cast %6 : vector<1x34x32xf32> to vector<34x32xf32>
    %8 = vector.shape_cast %5 : vector<34x32xf32> to vector<1x34x32xf32>
    tpu.vector_store %arg6[%c0_5, %c0_6, %c0_7], %8 {strides = array<i32>} : memref<1x34x32xf32, #tpu.memory_space<vmem>>, vector<1x34x32xf32>,
    return
  }
  func.func @transform_0(%arg0: i32, %arg1: i32, %arg2: i32, %arg3: i32) -> (i32, i32, i32) {
    %c0_i32 = arith.constant 0 : i32
    return %arg0, %arg1, %arg3 : i32, i32, i32
  }
  func.func @transform_1(%arg0: i32, %arg1: i32, %arg2: i32, %arg3: i32) -> (i32, i32, i32) {
    %c0_i32 = arith.constant 0 : i32
    return %arg0, %arg3, %arg2 : i32, i32, i32
  }
  func.func @transform_2(%arg0: i32, %arg1: i32, %arg2: i32, %arg3: i32) -> (i32, i32, i32) {
    %c0_i32 = arith.constant 0 : i32
    return %arg0, %arg1, %arg2 : i32, i32, i32
  }
}

module attributes {stable_mosaic.version = 11 : i64} {
  func.func @_ln_conv_qkv_kernel(%arg0: i32, %arg1: memref<1x17x32xf32, #tpu.memory_space<vmem>>, %arg2: memref<1x32xf32, #tpu.memory_space<vmem>>, %arg3: memref<1x32xf32, #tpu.memory_space<vmem>>, %arg4: memref<3x9x32xf32, #tpu.memory_space<vmem>>, %arg5: memref<3x32xf32, #tpu.memory_space<vmem>>, %arg6: memref<3x32xf32, #tpu.memory_space<vmem>>, %arg7: memref<3x1x17x32xf32, #tpu.memory_space<vmem>>, %arg8: memref<6x6x32xf32, #tpu.memory_space<vmem>>) attributes {dimension_semantics = [#tpu.dimension_semantics<parallel>], iteration_bounds = array<i64: 2>, scalar_prefetch = 0 : i64, scratch_operands = 1 : i64, tpu.core_type = #tpu.core_type<tc>, window_params = [{transform_indices = @transform_0, window_bounds = array<i64: 1, 17, 32>}, {pipeline_mode = #tpu.pipeline_mode<synchronous>, transform_indices = @transform_1, window_bounds = array<i64: 1, 32>}, {pipeline_mode = #tpu.pipeline_mode<synchronous>, transform_indices = @transform_2, window_bounds = array<i64: 1, 32>}, {pipeline_mode = #tpu.pipeline_mode<synchronous>, transform_indices = @transform_3, window_bounds = array<i64: 3, 9, 32>}, {pipeline_mode = #tpu.pipeline_mode<synchronous>, transform_indices = @transform_4, window_bounds = array<i64: 3, 32>}, {pipeline_mode = #tpu.pipeline_mode<synchronous>, transform_indices = @transform_5, window_bounds = array<i64: 3, 32>}, {transform_indices = @transform_6, window_bounds = array<i64: 3, 1, 17, 32>}]} {
    %c0 = arith.constant 0 : index
    %c0_0 = arith.constant 0 : index
    %0 = vector.load %arg2[%c0, %c0_0] : memref<1x32xf32, #tpu.memory_space<vmem>>, vector<1x32xf32>
    %c0_1 = arith.constant 0 : index
    %c0_2 = arith.constant 0 : index
    %1 = vector.load %arg3[%c0_1, %c0_2] : memref<1x32xf32, #tpu.memory_space<vmem>>, vector<1x32xf32>
    %c0_3 = arith.constant 0 : index
    %c0_4 = arith.constant 0 : index
    %c0_5 = arith.constant 0 : index
    %2 = vector.load %arg4[%c0_3, %c0_4, %c0_5] : memref<3x9x32xf32, #tpu.memory_space<vmem>>, vector<3x9x32xf32>
    %c0_6 = arith.constant 0 : index
    %c0_7 = arith.constant 0 : index
    %3 = vector.load %arg5[%c0_6, %c0_7] : memref<3x32xf32, #tpu.memory_space<vmem>>, vector<3x32xf32>
    %c0_8 = arith.constant 0 : index
    %c0_9 = arith.constant 0 : index
    %4 = vector.load %arg6[%c0_8, %c0_9] : memref<3x32xf32, #tpu.memory_space<vmem>>, vector<3x32xf32>
    %5 = vector.extract_strided_slice %2 {offsets = [0, 0, 0], sizes = [1, 1, 32], strides = [1, 1, 1]} : vector<3x9x32xf32> to vector<1x1x32xf32>
    %6 = vector.shape_cast %5 : vector<1x1x32xf32> to vector<32xf32>
    %7 = vector.shape_cast %6 : vector<32xf32> to vector<1x1x32xf32>
    %8 = vector.extract_strided_slice %2 {offsets = [0, 1, 0], sizes = [1, 1, 32], strides = [1, 1, 1]} : vector<3x9x32xf32> to vector<1x1x32xf32>
    %9 = vector.shape_cast %8 : vector<1x1x32xf32> to vector<32xf32>
    %10 = vector.shape_cast %9 : vector<32xf32> to vector<1x1x32xf32>
    %11 = vector.extract_strided_slice %2 {offsets = [0, 2, 0], sizes = [1, 1, 32], strides = [1, 1, 1]} : vector<3x9x32xf32> to vector<1x1x32xf32>
    %12 = vector.shape_cast %11 : vector<1x1x32xf32> to vector<32xf32>
    %13 = vector.shape_cast %12 : vector<32xf32> to vector<1x1x32xf32>
    %14 = vector.extract_strided_slice %2 {offsets = [0, 3, 0], sizes = [1, 1, 32], strides = [1, 1, 1]} : vector<3x9x32xf32> to vector<1x1x32xf32>
    %15 = vector.shape_cast %14 : vector<1x1x32xf32> to vector<32xf32>
    %16 = vector.shape_cast %15 : vector<32xf32> to vector<1x1x32xf32>
    %17 = vector.extract_strided_slice %2 {offsets = [0, 4, 0], sizes = [1, 1, 32], strides = [1, 1, 1]} : vector<3x9x32xf32> to vector<1x1x32xf32>
    %18 = vector.shape_cast %17 : vector<1x1x32xf32> to vector<32xf32>
    %19 = vector.shape_cast %18 : vector<32xf32> to vector<1x1x32xf32>
    %20 = vector.extract_strided_slice %2 {offsets = [0, 5, 0], sizes = [1, 1, 32], strides = [1, 1, 1]} : vector<3x9x32xf32> to vector<1x1x32xf32>
    %21 = vector.shape_cast %20 : vector<1x1x32xf32> to vector<32xf32>
    %22 = vector.shape_cast %21 : vector<32xf32> to vector<1x1x32xf32>
    %23 = vector.extract_strided_slice %2 {offsets = [0, 6, 0], sizes = [1, 1, 32], strides = [1, 1, 1]} : vector<3x9x32xf32> to vector<1x1x32xf32>
    %24 = vector.shape_cast %23 : vector<1x1x32xf32> to vector<32xf32>
    %25 = vector.shape_cast %24 : vector<32xf32> to vector<1x1x32xf32>
    %26 = vector.extract_strided_slice %2 {offsets = [0, 7, 0], sizes = [1, 1, 32], strides = [1, 1, 1]} : vector<3x9x32xf32> to vector<1x1x32xf32>
    %27 = vector.shape_cast %26 : vector<1x1x32xf32> to vector<32xf32>
    %28 = vector.shape_cast %27 : vector<32xf32> to vector<1x1x32xf32>
    %29 = vector.extract_strided_slice %2 {offsets = [0, 8, 0], sizes = [1, 1, 32], strides = [1, 1, 1]} : vector<3x9x32xf32> to vector<1x1x32xf32>
    %30 = vector.shape_cast %29 : vector<1x1x32xf32> to vector<32xf32>
    %31 = vector.shape_cast %30 : vector<32xf32> to vector<1x1x32xf32>
    %32 = vector.extract_strided_slice %2 {offsets = [1, 0, 0], sizes = [1, 1, 32], strides = [1, 1, 1]} : vector<3x9x32xf32> to vector<1x1x32xf32>
    %33 = vector.shape_cast %32 : vector<1x1x32xf32> to vector<32xf32>
    %34 = vector.shape_cast %33 : vector<32xf32> to vector<1x1x32xf32>
    %35 = vector.extract_strided_slice %2 {offsets = [1, 1, 0], sizes = [1, 1, 32], strides = [1, 1, 1]} : vector<3x9x32xf32> to vector<1x1x32xf32>
    %36 = vector.shape_cast %35 : vector<1x1x32xf32> to vector<32xf32>
    %37 = vector.shape_cast %36 : vector<32xf32> to vector<1x1x32xf32>
    %38 = vector.extract_strided_slice %2 {offsets = [1, 2, 0], sizes = [1, 1, 32], strides = [1, 1, 1]} : vector<3x9x32xf32> to vector<1x1x32xf32>
    %39 = vector.shape_cast %38 : vector<1x1x32xf32> to vector<32xf32>
    %40 = vector.shape_cast %39 : vector<32xf32> to vector<1x1x32xf32>
    %41 = vector.extract_strided_slice %2 {offsets = [1, 3, 0], sizes = [1, 1, 32], strides = [1, 1, 1]} : vector<3x9x32xf32> to vector<1x1x32xf32>
    %42 = vector.shape_cast %41 : vector<1x1x32xf32> to vector<32xf32>
    %43 = vector.shape_cast %42 : vector<32xf32> to vector<1x1x32xf32>
    %44 = vector.extract_strided_slice %2 {offsets = [1, 4, 0], sizes = [1, 1, 32], strides = [1, 1, 1]} : vector<3x9x32xf32> to vector<1x1x32xf32>
    %45 = vector.shape_cast %44 : vector<1x1x32xf32> to vector<32xf32>
    %46 = vector.shape_cast %45 : vector<32xf32> to vector<1x1x32xf32>
    %47 = vector.extract_strided_slice %2 {offsets = [1, 5, 0], sizes = [1, 1, 32], strides = [1, 1, 1]} : vector<3x9x32xf32> to vector<1x1x32xf32>
    %48 = vector.shape_cast %47 : vector<1x1x32xf32> to vector<32xf32>
    %49 = vector.shape_cast %48 : vector<32xf32> to vector<1x1x32xf32>
    %50 = vector.extract_strided_slice %2 {offsets = [1, 6, 0], sizes = [1, 1, 32], strides = [1, 1, 1]} : vector<3x9x32xf32> to vector<1x1x32xf32>
    %51 = vector.shape_cast %50 : vector<1x1x32xf32> to vector<32xf32>
    %52 = vector.shape_cast %51 : vector<32xf32> to vector<1x1x32xf32>
    %53 = vector.extract_strided_slice %2 {offsets = [1, 7, 0], sizes = [1, 1, 32], strides = [1, 1, 1]} : vector<3x9x32xf32> to vector<1x1x32xf32>
    %54 = vector.shape_cast %53 : vector<1x1x32xf32> to vector<32xf32>
    %55 = vector.shape_cast %54 : vector<32xf32> to vector<1x1x32xf32>
    %56 = vector.extract_strided_slice %2 {offsets = [1, 8, 0], sizes = [1, 1, 32], strides = [1, 1, 1]} : vector<3x9x32xf32> to vector<1x1x32xf32>
    %57 = vector.shape_cast %56 : vector<1x1x32xf32> to vector<32xf32>
    %58 = vector.shape_cast %57 : vector<32xf32> to vector<1x1x32xf32>
    %59 = vector.extract_strided_slice %2 {offsets = [2, 0, 0], sizes = [1, 1, 32], strides = [1, 1, 1]} : vector<3x9x32xf32> to vector<1x1x32xf32>
    %60 = vector.shape_cast %59 : vector<1x1x32xf32> to vector<32xf32>
    %61 = vector.shape_cast %60 : vector<32xf32> to vector<1x1x32xf32>
    %62 = vector.extract_strided_slice %2 {offsets = [2, 1, 0], sizes = [1, 1, 32], strides = [1, 1, 1]} : vector<3x9x32xf32> to vector<1x1x32xf32>
    %63 = vector.shape_cast %62 : vector<1x1x32xf32> to vector<32xf32>
    %64 = vector.shape_cast %63 : vector<32xf32> to vector<1x1x32xf32>
    %65 = vector.extract_strided_slice %2 {offsets = [2, 2, 0], sizes = [1, 1, 32], strides = [1, 1, 1]} : vector<3x9x32xf32> to vector<1x1x32xf32>
    %66 = vector.shape_cast %65 : vector<1x1x32xf32> to vector<32xf32>
    %67 = vector.shape_cast %66 : vector<32xf32> to vector<1x1x32xf32>
    %68 = vector.extract_strided_slice %2 {offsets = [2, 3, 0], sizes = [1, 1, 32], strides = [1, 1, 1]} : vector<3x9x32xf32> to vector<1x1x32xf32>
    %69 = vector.shape_cast %68 : vector<1x1x32xf32> to vector<32xf32>
    %70 = vector.shape_cast %69 : vector<32xf32> to vector<1x1x32xf32>
    %71 = vector.extract_strided_slice %2 {offsets = [2, 4, 0], sizes = [1, 1, 32], strides = [1, 1, 1]} : vector<3x9x32xf32> to vector<1x1x32xf32>
    %72 = vector.shape_cast %71 : vector<1x1x32xf32> to vector<32xf32>
    %73 = vector.shape_cast %72 : vector<32xf32> to vector<1x1x32xf32>
    %74 = vector.extract_strided_slice %2 {offsets = [2, 5, 0], sizes = [1, 1, 32], strides = [1, 1, 1]} : vector<3x9x32xf32> to vector<1x1x32xf32>
    %75 = vector.shape_cast %74 : vector<1x1x32xf32> to vector<32xf32>
    %76 = vector.shape_cast %75 : vector<32xf32> to vector<1x1x32xf32>
    %77 = vector.extract_strided_slice %2 {offsets = [2, 6, 0], sizes = [1, 1, 32], strides = [1, 1, 1]} : vector<3x9x32xf32> to vector<1x1x32xf32>
    %78 = vector.shape_cast %77 : vector<1x1x32xf32> to vector<32xf32>
    %79 = vector.shape_cast %78 : vector<32xf32> to vector<1x1x32xf32>
    %80 = vector.extract_strided_slice %2 {offsets = [2, 7, 0], sizes = [1, 1, 32], strides = [1, 1, 1]} : vector<3x9x32xf32> to vector<1x1x32xf32>
    %81 = vector.shape_cast %80 : vector<1x1x32xf32> to vector<32xf32>
    %82 = vector.shape_cast %81 : vector<32xf32> to vector<1x1x32xf32>
    %83 = vector.extract_strided_slice %2 {offsets = [2, 8, 0], sizes = [1, 1, 32], strides = [1, 1, 1]} : vector<3x9x32xf32> to vector<1x1x32xf32>
    %84 = vector.shape_cast %83 : vector<1x1x32xf32> to vector<32xf32>
    %85 = vector.shape_cast %84 : vector<32xf32> to vector<1x1x32xf32>
    %86 = vector.extract_strided_slice %3 {offsets = [0, 0], sizes = [1, 32], strides = [1, 1]} : vector<3x32xf32> to vector<1x32xf32>
    %87 = vector.shape_cast %86 : vector<1x32xf32> to vector<32xf32>
    %88 = vector.shape_cast %87 : vector<32xf32> to vector<1x1x32xf32>
    %89 = vector.extract_strided_slice %3 {offsets = [1, 0], sizes = [1, 32], strides = [1, 1]} : vector<3x32xf32> to vector<1x32xf32>
    %90 = vector.shape_cast %89 : vector<1x32xf32> to vector<32xf32>
    %91 = vector.shape_cast %90 : vector<32xf32> to vector<1x1x32xf32>
    %92 = vector.extract_strided_slice %3 {offsets = [2, 0], sizes = [1, 32], strides = [1, 1]} : vector<3x32xf32> to vector<1x32xf32>
    %93 = vector.shape_cast %92 : vector<1x32xf32> to vector<32xf32>
    %94 = vector.shape_cast %93 : vector<32xf32> to vector<1x1x32xf32>
    %95 = vector.extract_strided_slice %4 {offsets = [0, 0], sizes = [1, 32], strides = [1, 1]} : vector<3x32xf32> to vector<1x32xf32>
    %96 = vector.shape_cast %95 : vector<1x32xf32> to vector<32xf32>
    %97 = vector.shape_cast %96 : vector<32xf32> to vector<1x1x32xf32>
    %98 = vector.extract_strided_slice %4 {offsets = [1, 0], sizes = [1, 32], strides = [1, 1]} : vector<3x32xf32> to vector<1x32xf32>
    %99 = vector.shape_cast %98 : vector<1x32xf32> to vector<32xf32>
    %100 = vector.shape_cast %99 : vector<32xf32> to vector<1x1x32xf32>
    %101 = vector.extract_strided_slice %4 {offsets = [2, 0], sizes = [1, 32], strides = [1, 1]} : vector<3x32xf32> to vector<1x32xf32>
    %102 = vector.shape_cast %101 : vector<1x32xf32> to vector<32xf32>
    %103 = vector.shape_cast %102 : vector<32xf32> to vector<1x1x32xf32>
    %cst = arith.constant 0.000000e+00 : f32
    %104 = vector.broadcast %cst : f32 to vector<6x6x32xf32>
    %c0_10 = arith.constant 0 : index
    %c0_11 = arith.constant 0 : index
    %c0_12 = arith.constant 0 : index
    %105 = vector.load %arg8[%c0_10, %c0_11, %c0_12] : memref<6x6x32xf32, #tpu.memory_space<vmem>>, vector<6x6x32xf32>
    tpu.vector_store %arg8[%c0_10, %c0_11, %c0_12], %104 {strides = array<i32>} : memref<6x6x32xf32, #tpu.memory_space<vmem>>, vector<6x6x32xf32>,
    %c0_13 = arith.constant 0 : index
    %c0_14 = arith.constant 0 : index
    %c0_15 = arith.constant 0 : index
    %106 = vector.load %arg1[%c0_13, %c0_14, %c0_15] : memref<1x17x32xf32, #tpu.memory_space<vmem>>, vector<1x17x32xf32>
    %107 = vector.shape_cast %106 : vector<1x17x32xf32> to vector<17x32xf32>
    %cst_16 = arith.constant dense<0.000000e+00> : vector<17xf32>
    %108 = vector.multi_reduction <add>, %107, %cst_16 [1] : vector<17x32xf32> to vector<17xf32>
    %109 = vector.shape_cast %108 : vector<17xf32> to vector<17x1xf32>
    %cst_17 = arith.constant 3.200000e+01 : f32
    %110 = vector.broadcast %cst_17 : f32 to vector<17x1xf32>
    %111 = arith.divf %109, %110 : vector<17x1xf32>
    %112 = vector.broadcast %111 : vector<17x1xf32> to vector<17x32xf32>
    %113 = arith.subf %107, %112 : vector<17x32xf32>
    %114 = arith.mulf %113, %113 : vector<17x32xf32>
    %cst_18 = arith.constant dense<0.000000e+00> : vector<17xf32>
    %115 = vector.multi_reduction <add>, %114, %cst_18 [1] : vector<17x32xf32> to vector<17xf32>
    %116 = vector.shape_cast %115 : vector<17xf32> to vector<17x1xf32>
    %cst_19 = arith.constant 3.200000e+01 : f32
    %117 = vector.broadcast %cst_19 : f32 to vector<17x1xf32>
    %118 = arith.divf %116, %117 : vector<17x1xf32>
    %cst_20 = arith.constant 9.99999974E-6 : f32
    %119 = vector.broadcast %cst_20 : f32 to vector<17x1xf32>
    %120 = arith.addf %118, %119 : vector<17x1xf32>
    %121 = math.rsqrt %120 : vector<17x1xf32>
    %122 = vector.broadcast %121 : vector<17x1xf32> to vector<17x32xf32>
    %123 = arith.mulf %113, %122 : vector<17x32xf32>
    %124 = vector.broadcast %0 : vector<1x32xf32> to vector<17x32xf32>
    %125 = arith.mulf %123, %124 : vector<17x32xf32>
    %126 = vector.broadcast %1 : vector<1x32xf32> to vector<17x32xf32>
    %127 = arith.addf %125, %126 : vector<17x32xf32>
    %128 = vector.extract_strided_slice %127 {offsets = [0, 0], sizes = [1, 32], strides = [1, 1]} : vector<17x32xf32> to vector<1x32xf32>
    %129 = vector.extract_strided_slice %127 {offsets = [1, 0], sizes = [16, 32], strides = [1, 1]} : vector<17x32xf32> to vector<16x32xf32>
    %130 = vector.shape_cast %129 : vector<16x32xf32> to vector<4x4x32xf32>
    %c1 = arith.constant 1 : index
    %c1_21 = arith.constant 1 : index
    %c0_22 = arith.constant 0 : index
    %131 = vector.load %arg8[%c1, %c1_21, %c0_22] : memref<6x6x32xf32, #tpu.memory_space<vmem>>, vector<4x4x32xf32>
    tpu.vector_store %arg8[%c1, %c1_21, %c0_22], %130 {strides = array<i32>} : memref<6x6x32xf32, #tpu.memory_space<vmem>>, vector<4x4x32xf32>,
    %c0_23 = arith.constant 0 : index
    %c0_24 = arith.constant 0 : index
    %c0_25 = arith.constant 0 : index
    %132 = vector.load %arg8[%c0_23, %c0_24, %c0_25] : memref<6x6x32xf32, #tpu.memory_space<vmem>>, vector<4x4x32xf32>
    %c0_26 = arith.constant 0 : index
    %c1_27 = arith.constant 1 : index
    %c0_28 = arith.constant 0 : index
    %133 = vector.load %arg8[%c0_26, %c1_27, %c0_28] : memref<6x6x32xf32, #tpu.memory_space<vmem>>, vector<4x4x32xf32>
    %c0_29 = arith.constant 0 : index
    %c2 = arith.constant 2 : index
    %c0_30 = arith.constant 0 : index
    %134 = vector.load %arg8[%c0_29, %c2, %c0_30] : memref<6x6x32xf32, #tpu.memory_space<vmem>>, vector<4x4x32xf32>
    %c1_31 = arith.constant 1 : index
    %c0_32 = arith.constant 0 : index
    %c0_33 = arith.constant 0 : index
    %135 = vector.load %arg8[%c1_31, %c0_32, %c0_33] : memref<6x6x32xf32, #tpu.memory_space<vmem>>, vector<4x4x32xf32>
    %c1_34 = arith.constant 1 : index
    %c1_35 = arith.constant 1 : index
    %c0_36 = arith.constant 0 : index
    %136 = vector.load %arg8[%c1_34, %c1_35, %c0_36] : memref<6x6x32xf32, #tpu.memory_space<vmem>>, vector<4x4x32xf32>
    %c1_37 = arith.constant 1 : index
    %c2_38 = arith.constant 2 : index
    %c0_39 = arith.constant 0 : index
    %137 = vector.load %arg8[%c1_37, %c2_38, %c0_39] : memref<6x6x32xf32, #tpu.memory_space<vmem>>, vector<4x4x32xf32>
    %c2_40 = arith.constant 2 : index
    %c0_41 = arith.constant 0 : index
    %c0_42 = arith.constant 0 : index
    %138 = vector.load %arg8[%c2_40, %c0_41, %c0_42] : memref<6x6x32xf32, #tpu.memory_space<vmem>>, vector<4x4x32xf32>
    %c2_43 = arith.constant 2 : index
    %c1_44 = arith.constant 1 : index
    %c0_45 = arith.constant 0 : index
    %139 = vector.load %arg8[%c2_43, %c1_44, %c0_45] : memref<6x6x32xf32, #tpu.memory_space<vmem>>, vector<4x4x32xf32>
    %c2_46 = arith.constant 2 : index
    %c2_47 = arith.constant 2 : index
    %c0_48 = arith.constant 0 : index
    %140 = vector.load %arg8[%c2_46, %c2_47, %c0_48] : memref<6x6x32xf32, #tpu.memory_space<vmem>>, vector<4x4x32xf32>
    %141 = vector.broadcast %7 : vector<1x1x32xf32> to vector<4x4x32xf32>
    %142 = arith.mulf %132, %141 : vector<4x4x32xf32>
    %143 = vector.broadcast %10 : vector<1x1x32xf32> to vector<4x4x32xf32>
    %144 = arith.mulf %133, %143 : vector<4x4x32xf32>
    %145 = arith.addf %142, %144 : vector<4x4x32xf32>
    %146 = vector.broadcast %13 : vector<1x1x32xf32> to vector<4x4x32xf32>
    %147 = arith.mulf %134, %146 : vector<4x4x32xf32>
    %148 = arith.addf %145, %147 : vector<4x4x32xf32>
    %149 = vector.broadcast %16 : vector<1x1x32xf32> to vector<4x4x32xf32>
    %150 = arith.mulf %135, %149 : vector<4x4x32xf32>
    %151 = arith.addf %148, %150 : vector<4x4x32xf32>
    %152 = vector.broadcast %19 : vector<1x1x32xf32> to vector<4x4x32xf32>
    %153 = arith.mulf %136, %152 : vector<4x4x32xf32>
    %154 = arith.addf %151, %153 : vector<4x4x32xf32>
    %155 = vector.broadcast %22 : vector<1x1x32xf32> to vector<4x4x32xf32>
    %156 = arith.mulf %137, %155 : vector<4x4x32xf32>
    %157 = arith.addf %154, %156 : vector<4x4x32xf32>
    %158 = vector.broadcast %25 : vector<1x1x32xf32> to vector<4x4x32xf32>
    %159 = arith.mulf %138, %158 : vector<4x4x32xf32>
    %160 = arith.addf %157, %159 : vector<4x4x32xf32>
    %161 = vector.broadcast %28 : vector<1x1x32xf32> to vector<4x4x32xf32>
    %162 = arith.mulf %139, %161 : vector<4x4x32xf32>
    %163 = arith.addf %160, %162 : vector<4x4x32xf32>
    %164 = vector.broadcast %31 : vector<1x1x32xf32> to vector<4x4x32xf32>
    %165 = arith.mulf %140, %164 : vector<4x4x32xf32>
    %166 = arith.addf %163, %165 : vector<4x4x32xf32>
    %167 = vector.broadcast %88 : vector<1x1x32xf32> to vector<4x4x32xf32>
    %168 = arith.mulf %166, %167 : vector<4x4x32xf32>
    %169 = vector.broadcast %97 : vector<1x1x32xf32> to vector<4x4x32xf32>
    %170 = arith.addf %168, %169 : vector<4x4x32xf32>
    %171 = vector.shape_cast %170 : vector<4x4x32xf32> to vector<16x32xf32>
    %172 = tpu.concatenate %128, %171 in 0 : vector<1x32xf32>, vector<16x32xf32> -> vector<17x32xf32>
    %c0_49 = arith.constant 0 : index
    %c0_50 = arith.constant 0 : index
    %c0_51 = arith.constant 0 : index
    %c0_52 = arith.constant 0 : index
    %173 = vector.load %arg7[%c0_49, %c0_50, %c0_51, %c0_52] : memref<3x1x17x32xf32, #tpu.memory_space<vmem>>, vector<1x1x17x32xf32>
    %174 = vector.shape_cast %173 : vector<1x1x17x32xf32> to vector<17x32xf32>
    %175 = vector.shape_cast %172 : vector<17x32xf32> to vector<1x1x17x32xf32>
    tpu.vector_store %arg7[%c0_49, %c0_50, %c0_51, %c0_52], %175 {strides = array<i32>} : memref<3x1x17x32xf32, #tpu.memory_space<vmem>>, vector<1x1x17x32xf32>,
    %176 = vector.broadcast %34 : vector<1x1x32xf32> to vector<4x4x32xf32>
    %177 = arith.mulf %132, %176 : vector<4x4x32xf32>
    %178 = vector.broadcast %37 : vector<1x1x32xf32> to vector<4x4x32xf32>
    %179 = arith.mulf %133, %178 : vector<4x4x32xf32>
    %180 = arith.addf %177, %179 : vector<4x4x32xf32>
    %181 = vector.broadcast %40 : vector<1x1x32xf32> to vector<4x4x32xf32>
    %182 = arith.mulf %134, %181 : vector<4x4x32xf32>
    %183 = arith.addf %180, %182 : vector<4x4x32xf32>
    %184 = vector.broadcast %43 : vector<1x1x32xf32> to vector<4x4x32xf32>
    %185 = arith.mulf %135, %184 : vector<4x4x32xf32>
    %186 = arith.addf %183, %185 : vector<4x4x32xf32>
    %187 = vector.broadcast %46 : vector<1x1x32xf32> to vector<4x4x32xf32>
    %188 = arith.mulf %136, %187 : vector<4x4x32xf32>
    %189 = arith.addf %186, %188 : vector<4x4x32xf32>
    %190 = vector.broadcast %49 : vector<1x1x32xf32> to vector<4x4x32xf32>
    %191 = arith.mulf %137, %190 : vector<4x4x32xf32>
    %192 = arith.addf %189, %191 : vector<4x4x32xf32>
    %193 = vector.broadcast %52 : vector<1x1x32xf32> to vector<4x4x32xf32>
    %194 = arith.mulf %138, %193 : vector<4x4x32xf32>
    %195 = arith.addf %192, %194 : vector<4x4x32xf32>
    %196 = vector.broadcast %55 : vector<1x1x32xf32> to vector<4x4x32xf32>
    %197 = arith.mulf %139, %196 : vector<4x4x32xf32>
    %198 = arith.addf %195, %197 : vector<4x4x32xf32>
    %199 = vector.broadcast %58 : vector<1x1x32xf32> to vector<4x4x32xf32>
    %200 = arith.mulf %140, %199 : vector<4x4x32xf32>
    %201 = arith.addf %198, %200 : vector<4x4x32xf32>
    %202 = vector.broadcast %91 : vector<1x1x32xf32> to vector<4x4x32xf32>
    %203 = arith.mulf %201, %202 : vector<4x4x32xf32>
    %204 = vector.broadcast %100 : vector<1x1x32xf32> to vector<4x4x32xf32>
    %205 = arith.addf %203, %204 : vector<4x4x32xf32>
    %206 = vector.shape_cast %205 : vector<4x4x32xf32> to vector<16x32xf32>
    %207 = tpu.concatenate %128, %206 in 0 : vector<1x32xf32>, vector<16x32xf32> -> vector<17x32xf32>
    %c1_53 = arith.constant 1 : index
    %c0_54 = arith.constant 0 : index
    %c0_55 = arith.constant 0 : index
    %c0_56 = arith.constant 0 : index
    %208 = vector.load %arg7[%c1_53, %c0_54, %c0_55, %c0_56] : memref<3x1x17x32xf32, #tpu.memory_space<vmem>>, vector<1x1x17x32xf32>
    %209 = vector.shape_cast %208 : vector<1x1x17x32xf32> to vector<17x32xf32>
    %210 = vector.shape_cast %207 : vector<17x32xf32> to vector<1x1x17x32xf32>
    tpu.vector_store %arg7[%c1_53, %c0_54, %c0_55, %c0_56], %210 {strides = array<i32>} : memref<3x1x17x32xf32, #tpu.memory_space<vmem>>, vector<1x1x17x32xf32>,
    %211 = vector.broadcast %61 : vector<1x1x32xf32> to vector<4x4x32xf32>
    %212 = arith.mulf %132, %211 : vector<4x4x32xf32>
    %213 = vector.broadcast %64 : vector<1x1x32xf32> to vector<4x4x32xf32>
    %214 = arith.mulf %133, %213 : vector<4x4x32xf32>
    %215 = arith.addf %212, %214 : vector<4x4x32xf32>
    %216 = vector.broadcast %67 : vector<1x1x32xf32> to vector<4x4x32xf32>
    %217 = arith.mulf %134, %216 : vector<4x4x32xf32>
    %218 = arith.addf %215, %217 : vector<4x4x32xf32>
    %219 = vector.broadcast %70 : vector<1x1x32xf32> to vector<4x4x32xf32>
    %220 = arith.mulf %135, %219 : vector<4x4x32xf32>
    %221 = arith.addf %218, %220 : vector<4x4x32xf32>
    %222 = vector.broadcast %73 : vector<1x1x32xf32> to vector<4x4x32xf32>
    %223 = arith.mulf %136, %222 : vector<4x4x32xf32>
    %224 = arith.addf %221, %223 : vector<4x4x32xf32>
    %225 = vector.broadcast %76 : vector<1x1x32xf32> to vector<4x4x32xf32>
    %226 = arith.mulf %137, %225 : vector<4x4x32xf32>
    %227 = arith.addf %224, %226 : vector<4x4x32xf32>
    %228 = vector.broadcast %79 : vector<1x1x32xf32> to vector<4x4x32xf32>
    %229 = arith.mulf %138, %228 : vector<4x4x32xf32>
    %230 = arith.addf %227, %229 : vector<4x4x32xf32>
    %231 = vector.broadcast %82 : vector<1x1x32xf32> to vector<4x4x32xf32>
    %232 = arith.mulf %139, %231 : vector<4x4x32xf32>
    %233 = arith.addf %230, %232 : vector<4x4x32xf32>
    %234 = vector.broadcast %85 : vector<1x1x32xf32> to vector<4x4x32xf32>
    %235 = arith.mulf %140, %234 : vector<4x4x32xf32>
    %236 = arith.addf %233, %235 : vector<4x4x32xf32>
    %237 = vector.broadcast %94 : vector<1x1x32xf32> to vector<4x4x32xf32>
    %238 = arith.mulf %236, %237 : vector<4x4x32xf32>
    %239 = vector.broadcast %103 : vector<1x1x32xf32> to vector<4x4x32xf32>
    %240 = arith.addf %238, %239 : vector<4x4x32xf32>
    %241 = vector.shape_cast %240 : vector<4x4x32xf32> to vector<16x32xf32>
    %242 = tpu.concatenate %128, %241 in 0 : vector<1x32xf32>, vector<16x32xf32> -> vector<17x32xf32>
    %c2_57 = arith.constant 2 : index
    %c0_58 = arith.constant 0 : index
    %c0_59 = arith.constant 0 : index
    %c0_60 = arith.constant 0 : index
    %243 = vector.load %arg7[%c2_57, %c0_58, %c0_59, %c0_60] : memref<3x1x17x32xf32, #tpu.memory_space<vmem>>, vector<1x1x17x32xf32>
    %244 = vector.shape_cast %243 : vector<1x1x17x32xf32> to vector<17x32xf32>
    %245 = vector.shape_cast %242 : vector<17x32xf32> to vector<1x1x17x32xf32>
    tpu.vector_store %arg7[%c2_57, %c0_58, %c0_59, %c0_60], %245 {strides = array<i32>} : memref<3x1x17x32xf32, #tpu.memory_space<vmem>>, vector<1x1x17x32xf32>,
    return
  }
  func.func @transform_0(%arg0: i32) -> (i32, i32, i32) {
    %c0_i32 = arith.constant 0 : i32
    %c0_i32_0 = arith.constant 0 : i32
    %c0_i32_1 = arith.constant 0 : i32
    return %arg0, %c0_i32, %c0_i32_0 : i32, i32, i32
  }
  func.func @transform_1(%arg0: i32) -> (i32, i32) {
    %c0_i32 = arith.constant 0 : i32
    %c0_i32_0 = arith.constant 0 : i32
    %c0_i32_1 = arith.constant 0 : i32
    return %c0_i32, %c0_i32_0 : i32, i32
  }
  func.func @transform_2(%arg0: i32) -> (i32, i32) {
    %c0_i32 = arith.constant 0 : i32
    %c0_i32_0 = arith.constant 0 : i32
    %c0_i32_1 = arith.constant 0 : i32
    return %c0_i32, %c0_i32_0 : i32, i32
  }
  func.func @transform_3(%arg0: i32) -> (i32, i32, i32) {
    %c0_i32 = arith.constant 0 : i32
    %c0_i32_0 = arith.constant 0 : i32
    %c0_i32_1 = arith.constant 0 : i32
    %c0_i32_2 = arith.constant 0 : i32
    return %c0_i32, %c0_i32_0, %c0_i32_1 : i32, i32, i32
  }
  func.func @transform_4(%arg0: i32) -> (i32, i32) {
    %c0_i32 = arith.constant 0 : i32
    %c0_i32_0 = arith.constant 0 : i32
    %c0_i32_1 = arith.constant 0 : i32
    return %c0_i32, %c0_i32_0 : i32, i32
  }
  func.func @transform_5(%arg0: i32) -> (i32, i32) {
    %c0_i32 = arith.constant 0 : i32
    %c0_i32_0 = arith.constant 0 : i32
    %c0_i32_1 = arith.constant 0 : i32
    return %c0_i32, %c0_i32_0 : i32, i32
  }
  func.func @transform_6(%arg0: i32) -> (i32, i32, i32, i32) {
    %c0_i32 = arith.constant 0 : i32
    %c0_i32_0 = arith.constant 0 : i32
    %c0_i32_1 = arith.constant 0 : i32
    %c0_i32_2 = arith.constant 0 : i32
    return %c0_i32, %arg0, %c0_i32_0, %c0_i32_1 : i32, i32, i32, i32
  }
}

module attributes {stable_mosaic.version = 11 : i64} {
  func.func @_attention_kernel(%arg0: i32, %arg1: memref<3x1x17x32xf32, #tpu.memory_space<vmem>>, %arg2: memref<1x17x32xf32, #tpu.memory_space<vmem>>) attributes {dimension_semantics = [#tpu.dimension_semantics<parallel>], iteration_bounds = array<i64: 2>, scalar_prefetch = 0 : i64, scratch_operands = 0 : i64, tpu.core_type = #tpu.core_type<tc>, window_params = [{transform_indices = @transform_0, window_bounds = array<i64: 3, 1, 17, 32>}, {transform_indices = @transform_1, window_bounds = array<i64: 1, 17, 32>}]} {
    %c0 = arith.constant 0 : index
    %c0_0 = arith.constant 0 : index
    %c0_1 = arith.constant 0 : index
    %c0_2 = arith.constant 0 : index
    %0 = vector.load %arg1[%c0, %c0_0, %c0_1, %c0_2] : memref<3x1x17x32xf32, #tpu.memory_space<vmem>>, vector<1x1x17x8xf32>
    %1 = vector.shape_cast %0 : vector<1x1x17x8xf32> to vector<17x8xf32>
    %c1 = arith.constant 1 : index
    %c0_3 = arith.constant 0 : index
    %c0_4 = arith.constant 0 : index
    %c0_5 = arith.constant 0 : index
    %2 = vector.load %arg1[%c1, %c0_3, %c0_4, %c0_5] : memref<3x1x17x32xf32, #tpu.memory_space<vmem>>, vector<1x1x17x8xf32>
    %3 = vector.shape_cast %2 : vector<1x1x17x8xf32> to vector<17x8xf32>
    %c2 = arith.constant 2 : index
    %c0_6 = arith.constant 0 : index
    %c0_7 = arith.constant 0 : index
    %c0_8 = arith.constant 0 : index
    %4 = vector.load %arg1[%c2, %c0_6, %c0_7, %c0_8] : memref<3x1x17x32xf32, #tpu.memory_space<vmem>>, vector<1x1x17x8xf32>
    %5 = vector.shape_cast %4 : vector<1x1x17x8xf32> to vector<17x8xf32>
    %cst = arith.constant dense<0.000000e+00> : vector<17x17xf32>
    %6 = tpu.matmul %1, %3, %cst {dimension_numbers = #tpu.dot_dimension_numbers<[1], [1], [0], [0], [0, 0, 1, 0], [], []>} : vector<17x8xf32>, vector<17x8xf32>, vector<17x17xf32> -> vector<17x17xf32>
    %cst_9 = arith.constant 0.176776692 : f32
    %7 = vector.broadcast %cst_9 : f32 to vector<17x17xf32>
    %8 = arith.mulf %6, %7 : vector<17x17xf32>
    %cst_10 = arith.constant dense<0xFF800000> : vector<17xf32>
    %9 = vector.multi_reduction <maximumf>, %8, %cst_10 [1] : vector<17x17xf32> to vector<17xf32>
    %10 = vector.shape_cast %9 : vector<17xf32> to vector<17x1xf32>
    %11 = vector.broadcast %10 : vector<17x1xf32> to vector<17x17xf32>
    %12 = arith.subf %8, %11 : vector<17x17xf32>
    %13 = math.exp %12 : vector<17x17xf32>
    %cst_11 = arith.constant dense<0.000000e+00> : vector<17xf32>
    %14 = vector.multi_reduction <add>, %13, %cst_11 [1] : vector<17x17xf32> to vector<17xf32>
    %15 = vector.shape_cast %14 : vector<17xf32> to vector<17x1xf32>
    %16 = vector.broadcast %15 : vector<17x1xf32> to vector<17x17xf32>
    %17 = arith.divf %13, %16 : vector<17x17xf32>
    %cst_12 = arith.constant dense<0.000000e+00> : vector<17x8xf32>
    %18 = tpu.matmul %17, %5, %cst_12 {dimension_numbers = #tpu.dot_dimension_numbers<[1], [0], [0], [1], [0, 0, 1, 1], [], []>} : vector<17x17xf32>, vector<17x8xf32>, vector<17x8xf32> -> vector<17x8xf32>
    %c0_13 = arith.constant 0 : index
    %c0_14 = arith.constant 0 : index
    %c0_15 = arith.constant 0 : index
    %c8 = arith.constant 8 : index
    %19 = vector.load %arg1[%c0_13, %c0_14, %c0_15, %c8] : memref<3x1x17x32xf32, #tpu.memory_space<vmem>>, vector<1x1x17x8xf32>
    %20 = vector.shape_cast %19 : vector<1x1x17x8xf32> to vector<17x8xf32>
    %c1_16 = arith.constant 1 : index
    %c0_17 = arith.constant 0 : index
    %c0_18 = arith.constant 0 : index
    %c8_19 = arith.constant 8 : index
    %21 = vector.load %arg1[%c1_16, %c0_17, %c0_18, %c8_19] : memref<3x1x17x32xf32, #tpu.memory_space<vmem>>, vector<1x1x17x8xf32>
    %22 = vector.shape_cast %21 : vector<1x1x17x8xf32> to vector<17x8xf32>
    %c2_20 = arith.constant 2 : index
    %c0_21 = arith.constant 0 : index
    %c0_22 = arith.constant 0 : index
    %c8_23 = arith.constant 8 : index
    %23 = vector.load %arg1[%c2_20, %c0_21, %c0_22, %c8_23] : memref<3x1x17x32xf32, #tpu.memory_space<vmem>>, vector<1x1x17x8xf32>
    %24 = vector.shape_cast %23 : vector<1x1x17x8xf32> to vector<17x8xf32>
    %cst_24 = arith.constant dense<0.000000e+00> : vector<17x17xf32>
    %25 = tpu.matmul %20, %22, %cst_24 {dimension_numbers = #tpu.dot_dimension_numbers<[1], [1], [0], [0], [0, 0, 1, 0], [], []>} : vector<17x8xf32>, vector<17x8xf32>, vector<17x17xf32> -> vector<17x17xf32>
    %cst_25 = arith.constant 0.176776692 : f32
    %26 = vector.broadcast %cst_25 : f32 to vector<17x17xf32>
    %27 = arith.mulf %25, %26 : vector<17x17xf32>
    %cst_26 = arith.constant dense<0xFF800000> : vector<17xf32>
    %28 = vector.multi_reduction <maximumf>, %27, %cst_26 [1] : vector<17x17xf32> to vector<17xf32>
    %29 = vector.shape_cast %28 : vector<17xf32> to vector<17x1xf32>
    %30 = vector.broadcast %29 : vector<17x1xf32> to vector<17x17xf32>
    %31 = arith.subf %27, %30 : vector<17x17xf32>
    %32 = math.exp %31 : vector<17x17xf32>
    %cst_27 = arith.constant dense<0.000000e+00> : vector<17xf32>
    %33 = vector.multi_reduction <add>, %32, %cst_27 [1] : vector<17x17xf32> to vector<17xf32>
    %34 = vector.shape_cast %33 : vector<17xf32> to vector<17x1xf32>
    %35 = vector.broadcast %34 : vector<17x1xf32> to vector<17x17xf32>
    %36 = arith.divf %32, %35 : vector<17x17xf32>
    %cst_28 = arith.constant dense<0.000000e+00> : vector<17x8xf32>
    %37 = tpu.matmul %36, %24, %cst_28 {dimension_numbers = #tpu.dot_dimension_numbers<[1], [0], [0], [1], [0, 0, 1, 1], [], []>} : vector<17x17xf32>, vector<17x8xf32>, vector<17x8xf32> -> vector<17x8xf32>
    %c0_29 = arith.constant 0 : index
    %c0_30 = arith.constant 0 : index
    %c0_31 = arith.constant 0 : index
    %c16 = arith.constant 16 : index
    %38 = vector.load %arg1[%c0_29, %c0_30, %c0_31, %c16] : memref<3x1x17x32xf32, #tpu.memory_space<vmem>>, vector<1x1x17x8xf32>
    %39 = vector.shape_cast %38 : vector<1x1x17x8xf32> to vector<17x8xf32>
    %c1_32 = arith.constant 1 : index
    %c0_33 = arith.constant 0 : index
    %c0_34 = arith.constant 0 : index
    %c16_35 = arith.constant 16 : index
    %40 = vector.load %arg1[%c1_32, %c0_33, %c0_34, %c16_35] : memref<3x1x17x32xf32, #tpu.memory_space<vmem>>, vector<1x1x17x8xf32>
    %41 = vector.shape_cast %40 : vector<1x1x17x8xf32> to vector<17x8xf32>
    %c2_36 = arith.constant 2 : index
    %c0_37 = arith.constant 0 : index
    %c0_38 = arith.constant 0 : index
    %c16_39 = arith.constant 16 : index
    %42 = vector.load %arg1[%c2_36, %c0_37, %c0_38, %c16_39] : memref<3x1x17x32xf32, #tpu.memory_space<vmem>>, vector<1x1x17x8xf32>
    %43 = vector.shape_cast %42 : vector<1x1x17x8xf32> to vector<17x8xf32>
    %cst_40 = arith.constant dense<0.000000e+00> : vector<17x17xf32>
    %44 = tpu.matmul %39, %41, %cst_40 {dimension_numbers = #tpu.dot_dimension_numbers<[1], [1], [0], [0], [0, 0, 1, 0], [], []>} : vector<17x8xf32>, vector<17x8xf32>, vector<17x17xf32> -> vector<17x17xf32>
    %cst_41 = arith.constant 0.176776692 : f32
    %45 = vector.broadcast %cst_41 : f32 to vector<17x17xf32>
    %46 = arith.mulf %44, %45 : vector<17x17xf32>
    %cst_42 = arith.constant dense<0xFF800000> : vector<17xf32>
    %47 = vector.multi_reduction <maximumf>, %46, %cst_42 [1] : vector<17x17xf32> to vector<17xf32>
    %48 = vector.shape_cast %47 : vector<17xf32> to vector<17x1xf32>
    %49 = vector.broadcast %48 : vector<17x1xf32> to vector<17x17xf32>
    %50 = arith.subf %46, %49 : vector<17x17xf32>
    %51 = math.exp %50 : vector<17x17xf32>
    %cst_43 = arith.constant dense<0.000000e+00> : vector<17xf32>
    %52 = vector.multi_reduction <add>, %51, %cst_43 [1] : vector<17x17xf32> to vector<17xf32>
    %53 = vector.shape_cast %52 : vector<17xf32> to vector<17x1xf32>
    %54 = vector.broadcast %53 : vector<17x1xf32> to vector<17x17xf32>
    %55 = arith.divf %51, %54 : vector<17x17xf32>
    %cst_44 = arith.constant dense<0.000000e+00> : vector<17x8xf32>
    %56 = tpu.matmul %55, %43, %cst_44 {dimension_numbers = #tpu.dot_dimension_numbers<[1], [0], [0], [1], [0, 0, 1, 1], [], []>} : vector<17x17xf32>, vector<17x8xf32>, vector<17x8xf32> -> vector<17x8xf32>
    %c0_45 = arith.constant 0 : index
    %c0_46 = arith.constant 0 : index
    %c0_47 = arith.constant 0 : index
    %c24 = arith.constant 24 : index
    %57 = vector.load %arg1[%c0_45, %c0_46, %c0_47, %c24] : memref<3x1x17x32xf32, #tpu.memory_space<vmem>>, vector<1x1x17x8xf32>
    %58 = vector.shape_cast %57 : vector<1x1x17x8xf32> to vector<17x8xf32>
    %c1_48 = arith.constant 1 : index
    %c0_49 = arith.constant 0 : index
    %c0_50 = arith.constant 0 : index
    %c24_51 = arith.constant 24 : index
    %59 = vector.load %arg1[%c1_48, %c0_49, %c0_50, %c24_51] : memref<3x1x17x32xf32, #tpu.memory_space<vmem>>, vector<1x1x17x8xf32>
    %60 = vector.shape_cast %59 : vector<1x1x17x8xf32> to vector<17x8xf32>
    %c2_52 = arith.constant 2 : index
    %c0_53 = arith.constant 0 : index
    %c0_54 = arith.constant 0 : index
    %c24_55 = arith.constant 24 : index
    %61 = vector.load %arg1[%c2_52, %c0_53, %c0_54, %c24_55] : memref<3x1x17x32xf32, #tpu.memory_space<vmem>>, vector<1x1x17x8xf32>
    %62 = vector.shape_cast %61 : vector<1x1x17x8xf32> to vector<17x8xf32>
    %cst_56 = arith.constant dense<0.000000e+00> : vector<17x17xf32>
    %63 = tpu.matmul %58, %60, %cst_56 {dimension_numbers = #tpu.dot_dimension_numbers<[1], [1], [0], [0], [0, 0, 1, 0], [], []>} : vector<17x8xf32>, vector<17x8xf32>, vector<17x17xf32> -> vector<17x17xf32>
    %cst_57 = arith.constant 0.176776692 : f32
    %64 = vector.broadcast %cst_57 : f32 to vector<17x17xf32>
    %65 = arith.mulf %63, %64 : vector<17x17xf32>
    %cst_58 = arith.constant dense<0xFF800000> : vector<17xf32>
    %66 = vector.multi_reduction <maximumf>, %65, %cst_58 [1] : vector<17x17xf32> to vector<17xf32>
    %67 = vector.shape_cast %66 : vector<17xf32> to vector<17x1xf32>
    %68 = vector.broadcast %67 : vector<17x1xf32> to vector<17x17xf32>
    %69 = arith.subf %65, %68 : vector<17x17xf32>
    %70 = math.exp %69 : vector<17x17xf32>
    %cst_59 = arith.constant dense<0.000000e+00> : vector<17xf32>
    %71 = vector.multi_reduction <add>, %70, %cst_59 [1] : vector<17x17xf32> to vector<17xf32>
    %72 = vector.shape_cast %71 : vector<17xf32> to vector<17x1xf32>
    %73 = vector.broadcast %72 : vector<17x1xf32> to vector<17x17xf32>
    %74 = arith.divf %70, %73 : vector<17x17xf32>
    %cst_60 = arith.constant dense<0.000000e+00> : vector<17x8xf32>
    %75 = tpu.matmul %74, %62, %cst_60 {dimension_numbers = #tpu.dot_dimension_numbers<[1], [0], [0], [1], [0, 0, 1, 1], [], []>} : vector<17x17xf32>, vector<17x8xf32>, vector<17x8xf32> -> vector<17x8xf32>
    %76 = tpu.concatenate %18, %37, %56, %75 in 1 : vector<17x8xf32>, vector<17x8xf32>, vector<17x8xf32>, vector<17x8xf32> -> vector<17x32xf32>
    %c0_61 = arith.constant 0 : index
    %c0_62 = arith.constant 0 : index
    %c0_63 = arith.constant 0 : index
    %77 = vector.load %arg2[%c0_61, %c0_62, %c0_63] : memref<1x17x32xf32, #tpu.memory_space<vmem>>, vector<1x17x32xf32>
    %78 = vector.shape_cast %77 : vector<1x17x32xf32> to vector<17x32xf32>
    %79 = vector.shape_cast %76 : vector<17x32xf32> to vector<1x17x32xf32>
    tpu.vector_store %arg2[%c0_61, %c0_62, %c0_63], %79 {strides = array<i32>} : memref<1x17x32xf32, #tpu.memory_space<vmem>>, vector<1x17x32xf32>,
    return
  }
  func.func @transform_0(%arg0: i32) -> (i32, i32, i32, i32) {
    %c0_i32 = arith.constant 0 : i32
    %c0_i32_0 = arith.constant 0 : i32
    %c0_i32_1 = arith.constant 0 : i32
    %c0_i32_2 = arith.constant 0 : i32
    return %c0_i32, %arg0, %c0_i32_0, %c0_i32_1 : i32, i32, i32, i32
  }
  func.func @transform_1(%arg0: i32) -> (i32, i32, i32) {
    %c0_i32 = arith.constant 0 : i32
    %c0_i32_0 = arith.constant 0 : i32
    %c0_i32_1 = arith.constant 0 : i32
    return %arg0, %c0_i32, %c0_i32_0 : i32, i32, i32
  }
}

module attributes {stable_mosaic.version = 11 : i64} {
  func.func @_fused_matmul_kernel(%arg0: i32, %arg1: i32, %arg2: i32, %arg3: i32, %arg4: memref<1x34x32xf32, #tpu.memory_space<vmem>>, %arg5: memref<1x32x32xbf16, #tpu.memory_space<vmem>>, %arg6: memref<1x1x32xf32, #tpu.memory_space<vmem>>, %arg7: memref<1x34x32xf32, #tpu.memory_space<vmem>>, %arg8: memref<1x34x32xf32, #tpu.memory_space<vmem>>) attributes {dimension_semantics = [#tpu.dimension_semantics<parallel>, #tpu.dimension_semantics<parallel>, #tpu.dimension_semantics<parallel>, #tpu.dimension_semantics<arbitrary>], iteration_bounds = array<i64: 1, 1, 1, 1>, scalar_prefetch = 0 : i64, scratch_operands = 0 : i64, tpu.core_type = #tpu.core_type<tc>, window_params = [{transform_indices = @transform_0, window_bounds = array<i64: 1, 34, 32>}, {transform_indices = @transform_1, window_bounds = array<i64: 1, 32, 32>}, {transform_indices = @transform_2, window_bounds = array<i64: 1, 1, 32>}, {transform_indices = @transform_3, window_bounds = array<i64: 1, 34, 32>}, {transform_indices = @transform_4, window_bounds = array<i64: 1, 34, 32>}]} {
    %c0 = arith.constant 0 : index
    %c0_0 = arith.constant 0 : index
    %c0_1 = arith.constant 0 : index
    %0 = vector.load %arg4[%c0, %c0_0, %c0_1] : memref<1x34x32xf32, #tpu.memory_space<vmem>>, vector<1x34x32xf32>
    %1 = vector.shape_cast %0 : vector<1x34x32xf32> to vector<34x32xf32>
    %2 = arith.truncf %1 : vector<34x32xf32> to vector<34x32xbf16>
    %c0_2 = arith.constant 0 : index
    %c0_3 = arith.constant 0 : index
    %c0_4 = arith.constant 0 : index
    %3 = vector.load %arg5[%c0_2, %c0_3, %c0_4] : memref<1x32x32xbf16, #tpu.memory_space<vmem>>, vector<1x32x32xbf16>
    %4 = vector.shape_cast %3 : vector<1x32x32xbf16> to vector<32x32xbf16>
    %cst = arith.constant dense<0.000000e+00> : vector<34x32xf32>
    %5 = tpu.matmul %2, %4, %cst {dimension_numbers = #tpu.dot_dimension_numbers<[1], [0], [0], [1], [0, 0, 1, 1], [], []>} : vector<34x32xbf16>, vector<32x32xbf16>, vector<34x32xf32> -> vector<34x32xf32>
    %c0_5 = arith.constant 0 : index
    %c0_6 = arith.constant 0 : index
    %c0_7 = arith.constant 0 : index
    %6 = vector.load %arg6[%c0_5, %c0_6, %c0_7] : memref<1x1x32xf32, #tpu.memory_space<vmem>>, vector<1x1x32xf32>
    %7 = vector.shape_cast %6 : vector<1x1x32xf32> to vector<1x32xf32>
    %8 = vector.broadcast %7 : vector<1x32xf32> to vector<34x32xf32>
    %9 = arith.addf %5, %8 : vector<34x32xf32>
    %c0_8 = arith.constant 0 : index
    %c0_9 = arith.constant 0 : index
    %c0_10 = arith.constant 0 : index
    %10 = vector.load %arg7[%c0_8, %c0_9, %c0_10] : memref<1x34x32xf32, #tpu.memory_space<vmem>>, vector<1x34x32xf32>
    %11 = vector.shape_cast %10 : vector<1x34x32xf32> to vector<34x32xf32>
    %12 = arith.addf %9, %11 : vector<34x32xf32>
    %c0_11 = arith.constant 0 : index
    %c0_12 = arith.constant 0 : index
    %c0_13 = arith.constant 0 : index
    %13 = vector.load %arg8[%c0_11, %c0_12, %c0_13] : memref<1x34x32xf32, #tpu.memory_space<vmem>>, vector<1x34x32xf32>
    %14 = vector.shape_cast %13 : vector<1x34x32xf32> to vector<34x32xf32>
    %15 = vector.shape_cast %12 : vector<34x32xf32> to vector<1x34x32xf32>
    tpu.vector_store %arg8[%c0_11, %c0_12, %c0_13], %15 {strides = array<i32>} : memref<1x34x32xf32, #tpu.memory_space<vmem>>, vector<1x34x32xf32>,
    return
  }
  func.func @transform_0(%arg0: i32, %arg1: i32, %arg2: i32, %arg3: i32) -> (i32, i32, i32) {
    %c0_i32 = arith.constant 0 : i32
    return %arg0, %arg1, %arg3 : i32, i32, i32
  }
  func.func @transform_1(%arg0: i32, %arg1: i32, %arg2: i32, %arg3: i32) -> (i32, i32, i32) {
    %c0_i32 = arith.constant 0 : i32
    return %arg0, %arg3, %arg2 : i32, i32, i32
  }
  func.func @transform_2(%arg0: i32, %arg1: i32, %arg2: i32, %arg3: i32) -> (i32, i32, i32) {
    %c0_i32 = arith.constant 0 : i32
    %c0_i32_0 = arith.constant 0 : i32
    return %arg0, %c0_i32, %arg2 : i32, i32, i32
  }
  func.func @transform_3(%arg0: i32, %arg1: i32, %arg2: i32, %arg3: i32) -> (i32, i32, i32) {
    %c0_i32 = arith.constant 0 : i32
    return %arg0, %arg1, %arg2 : i32, i32, i32
  }
  func.func @transform_4(%arg0: i32, %arg1: i32, %arg2: i32, %arg3: i32) -> (i32, i32, i32) {
    %c0_i32 = arith.constant 0 : i32
    return %arg0, %arg1, %arg2 : i32, i32, i32
  }
}

module attributes {stable_mosaic.version = 11 : i64} {
  func.func @_fused_matmul_kernel(%arg0: i32, %arg1: i32, %arg2: i32, %arg3: i32, %arg4: memref<1x34x32xf32, #tpu.memory_space<vmem>>, %arg5: memref<1x32x128xbf16, #tpu.memory_space<vmem>>, %arg6: memref<1x1x128xf32, #tpu.memory_space<vmem>>, %arg7: memref<1x1x32xf32, #tpu.memory_space<vmem>>, %arg8: memref<1x1x32xf32, #tpu.memory_space<vmem>>, %arg9: memref<1x34x128xf32, #tpu.memory_space<vmem>>) attributes {dimension_semantics = [#tpu.dimension_semantics<parallel>, #tpu.dimension_semantics<parallel>, #tpu.dimension_semantics<parallel>, #tpu.dimension_semantics<arbitrary>], iteration_bounds = array<i64: 1, 1, 1, 1>, scalar_prefetch = 0 : i64, scratch_operands = 0 : i64, tpu.core_type = #tpu.core_type<tc>, window_params = [{transform_indices = @transform_0, window_bounds = array<i64: 1, 34, 32>}, {transform_indices = @transform_1, window_bounds = array<i64: 1, 32, 128>}, {transform_indices = @transform_2, window_bounds = array<i64: 1, 1, 128>}, {pipeline_mode = #tpu.pipeline_mode<synchronous>, transform_indices = @transform_3, window_bounds = array<i64: 1, 1, 32>}, {pipeline_mode = #tpu.pipeline_mode<synchronous>, transform_indices = @transform_4, window_bounds = array<i64: 1, 1, 32>}, {transform_indices = @transform_5, window_bounds = array<i64: 1, 34, 128>}]} {
    %c0 = arith.constant 0 : index
    %c0_0 = arith.constant 0 : index
    %c0_1 = arith.constant 0 : index
    %0 = vector.load %arg4[%c0, %c0_0, %c0_1] : memref<1x34x32xf32, #tpu.memory_space<vmem>>, vector<1x34x32xf32>
    %1 = vector.shape_cast %0 : vector<1x34x32xf32> to vector<34x32xf32>
    %cst = arith.constant dense<0.000000e+00> : vector<34xf32>
    %2 = vector.multi_reduction <add>, %1, %cst [1] : vector<34x32xf32> to vector<34xf32>
    %3 = vector.shape_cast %2 : vector<34xf32> to vector<34x1xf32>
    %cst_2 = arith.constant 3.200000e+01 : f32
    %4 = vector.broadcast %cst_2 : f32 to vector<34x1xf32>
    %5 = arith.divf %3, %4 : vector<34x1xf32>
    %6 = vector.broadcast %5 : vector<34x1xf32> to vector<34x32xf32>
    %7 = arith.subf %1, %6 : vector<34x32xf32>
    %8 = arith.mulf %7, %7 : vector<34x32xf32>
    %cst_3 = arith.constant dense<0.000000e+00> : vector<34xf32>
    %9 = vector.multi_reduction <add>, %8, %cst_3 [1] : vector<34x32xf32> to vector<34xf32>
    %10 = vector.shape_cast %9 : vector<34xf32> to vector<34x1xf32>
    %cst_4 = arith.constant 3.200000e+01 : f32
    %11 = vector.broadcast %cst_4 : f32 to vector<34x1xf32>
    %12 = arith.divf %10, %11 : vector<34x1xf32>
    %cst_5 = arith.constant 9.99999974E-6 : f32
    %13 = vector.broadcast %cst_5 : f32 to vector<34x1xf32>
    %14 = arith.addf %12, %13 : vector<34x1xf32>
    %15 = math.rsqrt %14 : vector<34x1xf32>
    %16 = vector.broadcast %15 : vector<34x1xf32> to vector<34x32xf32>
    %17 = arith.mulf %7, %16 : vector<34x32xf32>
    %c0_6 = arith.constant 0 : index
    %c0_7 = arith.constant 0 : index
    %c0_8 = arith.constant 0 : index
    %18 = vector.load %arg7[%c0_6, %c0_7, %c0_8] : memref<1x1x32xf32, #tpu.memory_space<vmem>>, vector<1x1x32xf32>
    %19 = vector.shape_cast %18 : vector<1x1x32xf32> to vector<1x32xf32>
    %20 = vector.broadcast %19 : vector<1x32xf32> to vector<34x32xf32>
    %21 = arith.mulf %17, %20 : vector<34x32xf32>
    %c0_9 = arith.constant 0 : index
    %c0_10 = arith.constant 0 : index
    %c0_11 = arith.constant 0 : index
    %22 = vector.load %arg8[%c0_9, %c0_10, %c0_11] : memref<1x1x32xf32, #tpu.memory_space<vmem>>, vector<1x1x32xf32>
    %23 = vector.shape_cast %22 : vector<1x1x32xf32> to vector<1x32xf32>
    %24 = vector.broadcast %23 : vector<1x32xf32> to vector<34x32xf32>
    %25 = arith.addf %21, %24 : vector<34x32xf32>
    %26 = arith.truncf %25 : vector<34x32xf32> to vector<34x32xbf16>
    %c0_12 = arith.constant 0 : index
    %c0_13 = arith.constant 0 : index
    %c0_14 = arith.constant 0 : index
    %27 = vector.load %arg5[%c0_12, %c0_13, %c0_14] : memref<1x32x128xbf16, #tpu.memory_space<vmem>>, vector<1x32x128xbf16>
    %28 = vector.shape_cast %27 : vector<1x32x128xbf16> to vector<32x128xbf16>
    %cst_15 = arith.constant dense<0.000000e+00> : vector<34x128xf32>
    %29 = tpu.matmul %26, %28, %cst_15 {dimension_numbers = #tpu.dot_dimension_numbers<[1], [0], [0], [1], [0, 0, 1, 1], [], []>} : vector<34x32xbf16>, vector<32x128xbf16>, vector<34x128xf32> -> vector<34x128xf32>
    %c0_16 = arith.constant 0 : index
    %c0_17 = arith.constant 0 : index
    %c0_18 = arith.constant 0 : index
    %30 = vector.load %arg6[%c0_16, %c0_17, %c0_18] : memref<1x1x128xf32, #tpu.memory_space<vmem>>, vector<1x1x128xf32>
    %31 = vector.shape_cast %30 : vector<1x1x128xf32> to vector<1x128xf32>
    %32 = vector.broadcast %31 : vector<1x128xf32> to vector<34x128xf32>
    %33 = arith.addf %29, %32 : vector<34x128xf32>
    %cst_19 = arith.constant 5.000000e-01 : f32
    %34 = vector.broadcast %cst_19 : f32 to vector<34x128xf32>
    %35 = arith.mulf %34, %33 : vector<34x128xf32>
    %cst_20 = arith.constant 4.471500e-02 : f32
    %36 = vector.broadcast %cst_20 : f32 to vector<34x128xf32>
    %37 = arith.mulf %36, %33 : vector<34x128xf32>
    %38 = arith.mulf %37, %33 : vector<34x128xf32>
    %39 = arith.mulf %38, %33 : vector<34x128xf32>
    %40 = arith.addf %33, %39 : vector<34x128xf32>
    %cst_21 = arith.constant 0.797884583 : f32
    %41 = vector.broadcast %cst_21 : f32 to vector<34x128xf32>
    %42 = arith.mulf %41, %40 : vector<34x128xf32>
    %43 = math.tanh %42 : vector<34x128xf32>
    %cst_22 = arith.constant 1.000000e+00 : f32
    %44 = vector.broadcast %cst_22 : f32 to vector<34x128xf32>
    %45 = arith.addf %44, %43 : vector<34x128xf32>
    %46 = arith.mulf %35, %45 : vector<34x128xf32>
    %c0_23 = arith.constant 0 : index
    %c0_24 = arith.constant 0 : index
    %c0_25 = arith.constant 0 : index
    %47 = vector.load %arg9[%c0_23, %c0_24, %c0_25] : memref<1x34x128xf32, #tpu.memory_space<vmem>>, vector<1x34x128xf32>
    %48 = vector.shape_cast %47 : vector<1x34x128xf32> to vector<34x128xf32>
    %49 = vector.shape_cast %46 : vector<34x128xf32> to vector<1x34x128xf32>
    tpu.vector_store %arg9[%c0_23, %c0_24, %c0_25], %49 {strides = array<i32>} : memref<1x34x128xf32, #tpu.memory_space<vmem>>, vector<1x34x128xf32>,
    return
  }
  func.func @transform_0(%arg0: i32, %arg1: i32, %arg2: i32, %arg3: i32) -> (i32, i32, i32) {
    %c0_i32 = arith.constant 0 : i32
    return %arg0, %arg1, %arg3 : i32, i32, i32
  }
  func.func @transform_1(%arg0: i32, %arg1: i32, %arg2: i32, %arg3: i32) -> (i32, i32, i32) {
    %c0_i32 = arith.constant 0 : i32
    return %arg0, %arg3, %arg2 : i32, i32, i32
  }
  func.func @transform_2(%arg0: i32, %arg1: i32, %arg2: i32, %arg3: i32) -> (i32, i32, i32) {
    %c0_i32 = arith.constant 0 : i32
    %c0_i32_0 = arith.constant 0 : i32
    return %arg0, %c0_i32, %arg2 : i32, i32, i32
  }
  func.func @transform_3(%arg0: i32, %arg1: i32, %arg2: i32, %arg3: i32) -> (i32, i32, i32) {
    %c0_i32 = arith.constant 0 : i32
    %c0_i32_0 = arith.constant 0 : i32
    %c0_i32_1 = arith.constant 0 : i32
    %c0_i32_2 = arith.constant 0 : i32
    return %c0_i32, %c0_i32_0, %c0_i32_1 : i32, i32, i32
  }
  func.func @transform_4(%arg0: i32, %arg1: i32, %arg2: i32, %arg3: i32) -> (i32, i32, i32) {
    %c0_i32 = arith.constant 0 : i32
    %c0_i32_0 = arith.constant 0 : i32
    %c0_i32_1 = arith.constant 0 : i32
    %c0_i32_2 = arith.constant 0 : i32
    return %c0_i32, %c0_i32_0, %c0_i32_1 : i32, i32, i32
  }
  func.func @transform_5(%arg0: i32, %arg1: i32, %arg2: i32, %arg3: i32) -> (i32, i32, i32) {
    %c0_i32 = arith.constant 0 : i32
    return %arg0, %arg1, %arg2 : i32, i32, i32
  }
}

module attributes {stable_mosaic.version = 11 : i64} {
  func.func @_fused_matmul_kernel(%arg0: i32, %arg1: i32, %arg2: i32, %arg3: i32, %arg4: memref<1x34x128xf32, #tpu.memory_space<vmem>>, %arg5: memref<1x128x32xbf16, #tpu.memory_space<vmem>>, %arg6: memref<1x1x32xf32, #tpu.memory_space<vmem>>, %arg7: memref<1x34x32xf32, #tpu.memory_space<vmem>>, %arg8: memref<1x34x32xf32, #tpu.memory_space<vmem>>) attributes {dimension_semantics = [#tpu.dimension_semantics<parallel>, #tpu.dimension_semantics<parallel>, #tpu.dimension_semantics<parallel>, #tpu.dimension_semantics<arbitrary>], iteration_bounds = array<i64: 1, 1, 1, 1>, scalar_prefetch = 0 : i64, scratch_operands = 0 : i64, tpu.core_type = #tpu.core_type<tc>, window_params = [{transform_indices = @transform_0, window_bounds = array<i64: 1, 34, 128>}, {transform_indices = @transform_1, window_bounds = array<i64: 1, 128, 32>}, {transform_indices = @transform_2, window_bounds = array<i64: 1, 1, 32>}, {transform_indices = @transform_3, window_bounds = array<i64: 1, 34, 32>}, {transform_indices = @transform_4, window_bounds = array<i64: 1, 34, 32>}]} {
    %c0 = arith.constant 0 : index
    %c0_0 = arith.constant 0 : index
    %c0_1 = arith.constant 0 : index
    %0 = vector.load %arg4[%c0, %c0_0, %c0_1] : memref<1x34x128xf32, #tpu.memory_space<vmem>>, vector<1x34x128xf32>
    %1 = vector.shape_cast %0 : vector<1x34x128xf32> to vector<34x128xf32>
    %2 = arith.truncf %1 : vector<34x128xf32> to vector<34x128xbf16>
    %c0_2 = arith.constant 0 : index
    %c0_3 = arith.constant 0 : index
    %c0_4 = arith.constant 0 : index
    %3 = vector.load %arg5[%c0_2, %c0_3, %c0_4] : memref<1x128x32xbf16, #tpu.memory_space<vmem>>, vector<1x128x32xbf16>
    %4 = vector.shape_cast %3 : vector<1x128x32xbf16> to vector<128x32xbf16>
    %cst = arith.constant dense<0.000000e+00> : vector<34x32xf32>
    %5 = tpu.matmul %2, %4, %cst {dimension_numbers = #tpu.dot_dimension_numbers<[1], [0], [0], [1], [0, 0, 1, 1], [], []>} : vector<34x128xbf16>, vector<128x32xbf16>, vector<34x32xf32> -> vector<34x32xf32>
    %c0_5 = arith.constant 0 : index
    %c0_6 = arith.constant 0 : index
    %c0_7 = arith.constant 0 : index
    %6 = vector.load %arg6[%c0_5, %c0_6, %c0_7] : memref<1x1x32xf32, #tpu.memory_space<vmem>>, vector<1x1x32xf32>
    %7 = vector.shape_cast %6 : vector<1x1x32xf32> to vector<1x32xf32>
    %8 = vector.broadcast %7 : vector<1x32xf32> to vector<34x32xf32>
    %9 = arith.addf %5, %8 : vector<34x32xf32>
    %c0_8 = arith.constant 0 : index
    %c0_9 = arith.constant 0 : index
    %c0_10 = arith.constant 0 : index
    %10 = vector.load %arg7[%c0_8, %c0_9, %c0_10] : memref<1x34x32xf32, #tpu.memory_space<vmem>>, vector<1x34x32xf32>
    %11 = vector.shape_cast %10 : vector<1x34x32xf32> to vector<34x32xf32>
    %12 = arith.addf %9, %11 : vector<34x32xf32>
    %c0_11 = arith.constant 0 : index
    %c0_12 = arith.constant 0 : index
    %c0_13 = arith.constant 0 : index
    %13 = vector.load %arg8[%c0_11, %c0_12, %c0_13] : memref<1x34x32xf32, #tpu.memory_space<vmem>>, vector<1x34x32xf32>
    %14 = vector.shape_cast %13 : vector<1x34x32xf32> to vector<34x32xf32>
    %15 = vector.shape_cast %12 : vector<34x32xf32> to vector<1x34x32xf32>
    tpu.vector_store %arg8[%c0_11, %c0_12, %c0_13], %15 {strides = array<i32>} : memref<1x34x32xf32, #tpu.memory_space<vmem>>, vector<1x34x32xf32>,
    return
  }
  func.func @transform_0(%arg0: i32, %arg1: i32, %arg2: i32, %arg3: i32) -> (i32, i32, i32) {
    %c0_i32 = arith.constant 0 : i32
    return %arg0, %arg1, %arg3 : i32, i32, i32
  }
  func.func @transform_1(%arg0: i32, %arg1: i32, %arg2: i32, %arg3: i32) -> (i32, i32, i32) {
    %c0_i32 = arith.constant 0 : i32
    return %arg0, %arg3, %arg2 : i32, i32, i32
  }
  func.func @transform_2(%arg0: i32, %arg1: i32, %arg2: i32, %arg3: i32) -> (i32, i32, i32) {
    %c0_i32 = arith.constant 0 : i32
    %c0_i32_0 = arith.constant 0 : i32
    return %arg0, %c0_i32, %arg2 : i32, i32, i32
  }
  func.func @transform_3(%arg0: i32, %arg1: i32, %arg2: i32, %arg3: i32) -> (i32, i32, i32) {
    %c0_i32 = arith.constant 0 : i32
    return %arg0, %arg1, %arg2 : i32, i32, i32
  }
  func.func @transform_4(%arg0: i32, %arg1: i32, %arg2: i32, %arg3: i32) -> (i32, i32, i32) {
    %c0_i32 = arith.constant 0 : i32
    return %arg0, %arg1, %arg2 : i32, i32, i32
  }
}

</mosaic_0001>

<llo_original>
// kernel: vit_forward.15
$region0: #{vit_forward.15}
  #allocation0 [shape = 'u32[]', space=smem, size = 0x4, offset = 0x4, fixed_abs, tag = 'smem constant byte address 0x4 - core index']
  #allocation1 [shape = 'u32[144,128]{1,0:T(1,128)}', space=vmem, size = 0x12000, scoped, tag = 'internal scratch']
  %s0 = inlined_call_operand.vmem [shape: f32[3,34,32], index: 0, kind: input, shape index: {}]
  %s1 = inlined_call_operand.vmem [shape: bf16[3,32,32], index: 1, kind: input, shape index: {}]
  %s2 = inlined_call_operand.vmem [shape: f32[3,34,32], index: 2, kind: output, shape index: {}]
  %s3 = sld [smem:[#allocation0]]
  $region41: #{vit_forward.15} parent=0
    _
  %s5 = ssub.s32 1, %s3
  %s6 = scalar_select 0, %s5, %s3
  loop: start=0, step=1, limit=5
  $region2: #{vit_forward.15} parent=0 // loop_pre_header
    _
  $region3: #{vit_forward.15} parent=0 // loop_header
    %s8 = sphi 0, %s12
    %p9 = scmp.ge.s32.totalorder %s8, 5
    %s15 = sphi 0, %s41
    %s16 = sphi 0, %s37
    %s17 = sphi 0, %s33
    %s18 = sphi 0, %s29
    %s19 = sphi 0, %s15
    %s20 = sphi 0, %s16
    %s21 = sphi 0, %s17
    %s22 = sphi 0, %s18
    %s23 = sphi 0, %s19
    %s24 = sphi 0, %s20
    %s25 = sphi 0, %s21
    %s26 = sphi 0, %s22
    %s48 = sphi 0, %s50
    %s51 = sphi 0, %s48
    %s52 = sphi 0, %s51
    %s68 = sphi 0, %s52
    %s78 = sphi 0, %s80
    %s81 = sphi 0, %s78
    %s82 = sphi 0, %s81
    %s98 = sphi 0, %s82
    %s108 = sphi 0, %s110
    %s111 = sphi 0, %s108
    %s112 = sphi 0, %s111
    %s128 = sphi 0, %s112
  $region4: #{vit_forward.15} parent=0 // loop_header_branch
    %11 = sbr.rel (%p9) target = $region8
  $region5: #{vit_forward.15} parent=0 // loop_body
    %s13 = ssub.s32 %s8, 1
    %s14 = ssub.s32 %s8, 2
    %s27 = sadd.s32 1, %s18
    %p28 = scmp.ge.s32.totalorder %s27, 1
    %s29 = scalar_select %p28, 0, %s27
    %s30 = sadd.s32 1, %s17
    %s31 = scalar_select %p28, %s30, %s17
    %p32 = scmp.ge.s32.totalorder %s31, 1
    %s33 = scalar_select %p32, 0, %s31
    %s34 = sadd.s32 1, %s16
    %s35 = scalar_select %p32, %s34, %s16
    %p36 = scmp.ge.s32.totalorder %s35, 1
    %s37 = scalar_select %p36, 0, %s35
    %s38 = sadd.s32 1, %s15
    %s39 = scalar_select %p36, %s38, %s15
    %p40 = scmp.ge.s32.totalorder %s39, 3
    %s41 = scalar_select %p40, 0, %s39
    %s42 = ssub.s32 %s15, %s41
    %s43 = ssub.s32 %s16, %s37
    %s44 = sor.u32 %s42, %s43
    %s45 = ssub.s32 %s18, %s29
    %s46 = sor.u32 %s44, %s45
    %p47 = scmp.eq.s32.totalorder %s46, 0
    %s49 = sadd.s32 %s48, 1
    %s50 = scalar_select %p47, %s48, %s49
    %p53 = pneg %p47
    %p54 = scmp.eq.s32.totalorder %s8, 2
    %p55 = por %p53, %p54
    %p56 = scmp.ne.s32.totalorder %s48, %s51
    %p57 = scmp.eq.s32.totalorder %s8, 0
    %p58 = por %p56, %p57
    %p59 = scmp.ne.s32.totalorder %s48, %s51
    %p60 = scmp.eq.s32.totalorder %s13, 2
    %p61 = por %p59, %p60
    %p62 = scmp.ne.s32.totalorder %s51, %s52
    %p63 = scmp.eq.s32.totalorder %s13, 0
    %p64 = por %p62, %p63
    %p65 = scmp.ne.s32.totalorder %s51, %s52
    %p66 = scmp.eq.s32.totalorder %s14, 2
    %p67 = por %p65, %p66
    %p69 = scmp.ne.s32.totalorder %s52, %s68
    %p70 = scmp.eq.s32.totalorder %s14, 0
    %p71 = por %p69, %p70
    %s72 = ssub.s32 %s15, %s41
    %s73 = ssub.s32 %s18, %s29
    %s74 = sor.u32 %s72, %s73
    %s75 = ssub.s32 %s17, %s33
    %s76 = sor.u32 %s74, %s75
    %p77 = scmp.eq.s32.totalorder %s76, 0
    %s79 = sadd.s32 %s78, 1
    %s80 = scalar_select %p77, %s78, %s79
    %p83 = pneg %p77
    %p84 = scmp.eq.s32.totalorder %s8, 2
    %p85 = por %p83, %p84
    %p86 = scmp.ne.s32.totalorder %s78, %s81
    %p87 = scmp.eq.s32.totalorder %s8, 0
    %p88 = por %p86, %p87
    %p89 = scmp.ne.s32.totalorder %s78, %s81
    %p90 = scmp.eq.s32.totalorder %s13, 2
    %p91 = por %p89, %p90
    %p92 = scmp.ne.s32.totalorder %s81, %s82
    %p93 = scmp.eq.s32.totalorder %s13, 0
    %p94 = por %p92, %p93
    %p95 = scmp.ne.s32.totalorder %s81, %s82
    %p96 = scmp.eq.s32.totalorder %s14, 2
    %p97 = por %p95, %p96
    %p99 = scmp.ne.s32.totalorder %s82, %s98
    %p100 = scmp.eq.s32.totalorder %s14, 0
    %p101 = por %p99, %p100
    %s102 = ssub.s32 %s15, %s41
    %s103 = ssub.s32 %s16, %s37
    %s104 = sor.u32 %s102, %s103
    %s105 = ssub.s32 %s17, %s33
    %s106 = sor.u32 %s104, %s105
    %p107 = scmp.eq.s32.totalorder %s106, 0
    %s109 = sadd.s32 %s108, 1
    %s110 = scalar_select %p107, %s108, %s109
    %p113 = pneg %p107
    %p114 = scmp.eq.s32.totalorder %s8, 2
    %p115 = por %p113, %p114
    %p116 = scmp.ne.s32.totalorder %s108, %s111
    %p117 = scmp.eq.s32.totalorder %s8, 0
    %p118 = por %p116, %p117
    %p119 = scmp.ne.s32.totalorder %s108, %s111
    %p120 = scmp.eq.s32.totalorder %s13, 2
    %p121 = por %p119, %p120
    %p122 = scmp.ne.s32.totalorder %s111, %s112
    %p123 = scmp.eq.s32.totalorder %s13, 0
    %p124 = por %p122, %p123
    %p125 = scmp.ne.s32.totalorder %s111, %s112
    %p126 = scmp.eq.s32.totalorder %s14, 2
    %p127 = por %p125, %p126
    %p129 = scmp.ne.s32.totalorder %s112, %s128
    %p130 = scmp.eq.s32.totalorder %s14, 0
    %p131 = por %p129, %p130
    %p132 = scmp.le.s32.totalorder 1, %s8
    %p133 = scmp.lt.s32.totalorder %s8, 4
    %p134 = pnand %p132, %p133
    %p135 = pneg %p134
    // Predicated region
    $region9: #{vit_forward.15} parent=5 // pred_check
      _
    $region10: #{vit_forward.15} parent=5 // pred_check_branch
      %137 = sbr.rel (%p134) target = $region12
    $region11: #{vit_forward.15} parent=5 // pred_region
      %s138 = ssub.s32 %s8, 1
    $region12: #{vit_forward.15} parent=5 // pred_fallthru
      _
    %p139 = scmp.lt.s32.totalorder %s8, 3
    // Predicated region
    $region13: #{vit_forward.15} parent=5 // pred_check
      %p140 = pneg %p139
    $region14: #{vit_forward.15} parent=5 // pred_check_branch
      %142 = sbr.rel (%p140) target = $region16
    $region15: #{vit_forward.15} parent=5 // pred_region
      // Predicated region
      $region17: #{vit_forward.15} parent=15 // pred_check
        %p143 = pneg %p58
      $region18: #{vit_forward.15} parent=15 // pred_check_branch
        %145 = sbr.rel (%p143) target = $region20
      $region19: #{vit_forward.15} parent=15 // pred_region
        %s146 = smul.u32 5, %s16
        %p147 = scmp.lt.s32.totalorder %s15, 2
        %s148 = scalar_select %p147, %s15, 2
        %p149 = scmp.lt.s32.totalorder %s146, 4
        %s150 = scalar_select %p149, %s146, 4
        %p151 = scmp.lt.s32.totalorder %s18, 0
        %s152 = scalar_select %p151, %s18, 0
        %s153 = sadd.s32 %s152, %s150
        %s154 = smul.addr %s148, 5
        %s155 = sadd.s32 %s153, %s154
        %s156 = smul.addr %s155, 8
        %s157 = scalar_lea.vmem %s0, %s156
        %s158 = smul.u32 5, %s16
      $region20: #{vit_forward.15} parent=15 // pred_fallthru
        _
      // Predicated region
      $region21: #{vit_forward.15} parent=15 // pred_check
        %p159 = pneg %p88
      $region22: #{vit_forward.15} parent=15 // pred_check_branch
        %161 = sbr.rel (%p159) target = $region24
      $region23: #{vit_forward.15} parent=15 // pred_region
        %s162 = smul.u32 4, %s18
        %p163 = scmp.lt.s32.totalorder %s15, 2
        %s164 = scalar_select %p163, %s15, 2
        %p165 = scmp.lt.s32.totalorder %s162, 3
        %s166 = scalar_select %p165, %s162, 3
        %p167 = scmp.lt.s32.totalorder %s17, 0
        %s168 = scalar_select %p167, %s17, 0
        %s169 = sadd.s32 %s168, %s166
        %s170 = smul.addr %s164, 4
        %s171 = sadd.s32 %s169, %s170
        %s172 = smul.addr %s171, 4
        %s173 = scalar_lea.vmem %s1, %s172
        %s174 = smul.u32 4, %s18
      $region24: #{vit_forward.15} parent=15 // pred_fallthru
        _
    $region16: #{vit_forward.15} parent=5 // pred_fallthru
      _
    %p175 = scmp.le.s32.totalorder 1, %s8
    %p176 = scmp.lt.s32.totalorder %s8, 4
    %p177 = pnand %p175, %p176
    %p178 = pneg %p177
    // Predicated region
    $region25: #{vit_forward.15} parent=5 // pred_check
      _
    $region26: #{vit_forward.15} parent=5 // pred_check_branch
      %180 = sbr.rel (%p177) target = $region28
    $region27: #{vit_forward.15} parent=5 // pred_region
      %s181 = ssub.s32 %s8, 1
      %s182 = smul.u32 5, %s20
      %p183 = scmp.lt.s32.totalorder %s19, 2
      %s184 = scalar_select %p183, %s19, 2
      %p185 = scmp.lt.s32.totalorder %s182, 4
      %s186 = scalar_select %p185, %s182, 4
      %p187 = scmp.lt.s32.totalorder %s22, 0
      %s188 = scalar_select %p187, %s22, 0
      %s189 = sadd.s32 %s188, %s186
      %s190 = smul.addr %s184, 5
      %s191 = sadd.s32 %s189, %s190
      %s192 = smul.addr %s191, 8
      %s193 = scalar_lea.vmem %s0, %s192
      %p194 = pneg %p64
      %p195 = pneg %p61
      %s196 = smul.u32 4, %s22
      %p197 = scmp.lt.s32.totalorder %s19, 2
      %s198 = scalar_select %p197, %s19, 2
      %p199 = scmp.lt.s32.totalorder %s196, 3
      %s200 = scalar_select %p199, %s196, 3
      %p201 = scmp.lt.s32.totalorder %s21, 0
      %s202 = scalar_select %p201, %s21, 0
      %s203 = sadd.s32 %s202, %s200
      %s204 = smul.addr %s198, 4
      %s205 = sadd.s32 %s203, %s204
      %s206 = smul.addr %s205, 4
      %s207 = scalar_lea.vmem %s1, %s206
      %p208 = pneg %p94
      %p209 = pneg %p91
      %p210 = pneg %p124
      %p211 = pneg %p121
      %s212 = smul.u32 5, %s20
      %p213 = scmp.lt.s32.totalorder %s19, 2
      %s214 = scalar_select %p213, %s19, 2
      %p215 = scmp.lt.s32.totalorder %s212, 4
      %s216 = scalar_select %p215, %s212, 4
      %p217 = scmp.lt.s32.totalorder %s21, 0
      %s218 = scalar_select %p217, %s21, 0
      %s219 = sadd.s32 %s218, %s216
      %s220 = smul.addr %s214, 5
      %s221 = sadd.s32 %s219, %s220
      %s222 = smul.addr %s221, 8
      %s223 = scalar_lea.vmem %s2, %s222
      %s224 = smul.u32 5, %s20
      %p225 = scmp.lt.s32.totalorder %s19, 2
      %s226 = scalar_select %p225, %s19, 2
      %p227 = scmp.lt.s32.totalorder %s224, 4
      %s228 = scalar_select %p227, %s224, 4
      %p229 = scmp.lt.s32.totalorder %s22, 0
      %s230 = scalar_select %p229, %s22, 0
      %s231 = sadd.s32 %s230, %s228
      %s232 = smul.addr %s226, 5
      %s233 = sadd.s32 %s231, %s232
      %s234 = smul.addr %s233, 8
      %s235 = scalar_lea.vmem %s0, %s234
      %s236 = smul.u32 5, %s20
      %s237 = smul.u32 4, %s22
      %p238 = scmp.lt.s32.totalorder %s19, 2
      %s239 = scalar_select %p238, %s19, 2
      %p240 = scmp.lt.s32.totalorder %s237, 3
      %s241 = scalar_select %p240, %s237, 3
      %p242 = scmp.lt.s32.totalorder %s21, 0
      %s243 = scalar_select %p242, %s21, 0
      %s244 = sadd.s32 %s243, %s241
      %s245 = smul.addr %s239, 4
      %s246 = sadd.s32 %s244, %s245
      %s247 = smul.addr %s246, 4
      %s248 = scalar_lea.vmem %s1, %s247
      %s249 = smul.u32 4, %s22
      %s250 = smul.u32 5, %s20
      %p251 = scmp.lt.s32.totalorder %s19, 2
      %s252 = scalar_select %p251, %s19, 2
      %p253 = scmp.lt.s32.totalorder %s250, 4
      %s254 = scalar_select %p253, %s250, 4
      %p255 = scmp.lt.s32.totalorder %s21, 0
      %s256 = scalar_select %p255, %s21, 0
      %s257 = sadd.s32 %s256, %s254
      %s258 = smul.addr %s252, 5
      %s259 = sadd.s32 %s257, %s258
      %s260 = smul.addr %s259, 8
      %s261 = scalar_lea.vmem %s2, %s260
      %s262 = smul.u32 5, %s20
      %v264 = vld [vmem:[%s235] sm:$0xff]
      %v265 = vld [vmem:[%s235 + $0x8] sm:$0xff]
      %v266 = vld [vmem:[%s235 + $0x10] sm:$0xff]
      %v267 = vld [vmem:[%s235 + $0x18] sm:$0xff]
      %v268 = vld [vmem:[%s235 + $0x20] sm:$0x3]
      %v269 = vpack.c.bf16 %v265, %v264
      %v270 = vpack.c.bf16 %v267, %v266
      %v271 = vpack.c.bf16 %v268, %v268
      %v272 = vld [vmem:[%s248] sm:$0xf]
      %v273 = vld [vmem:[%s248 + $0x4] sm:$0xf]
      %v274 = vld [vmem:[%s248 + $0x8] sm:$0xf]
      %v275 = vld [vmem:[%s248 + $0xc] sm:$0xf]
      %v280 = vunpack.c.l.b16 %v272
      %v281 = vunpack.c.l.b16 %v273
      %v282 = vunpack.c.l.b16 %v274
      %v283 = vunpack.c.l.b16 %v275
      %v284 = vpack.c.b16 %v281, %v280
      %v285 = vpack.c.b16 %v283, %v282
      %vm288 = vcmask 261120
      %v290 = vsel %vm288, %v269, 0
      %v293 = vsel %vm288, %v270, 0
      %v296 = vsel %vm288, %v271, 0
      %298 = vmatprep.subr.bf16.mxu0 0
      %299 = vmatpush1.bf16.msra.mxu0 0
      %300 = vmatprep.subr.bf16.mxu0 0
      %301 = vmatpush1.bf16.msra.mxu0 0
      %302 = vmatprep.subr.bf16.mxu0 0
      %303 = vmatpush1.bf16.msra.mxu0 0
      %304 = vmatprep.subr.bf16.mxu0 0
      %305 = vmatpush1.bf16.msra.mxu0 0
      %306 = vmatprep.subr.bf16.mxu0 0
      %307 = vmatpush1.bf16.msra.mxu0 0
      %308 = vmatprep.subr.bf16.mxu0 0
      %309 = vmatpush1.bf16.msra.mxu0 0
      %310 = vmatprep.subr.bf16.mxu0 0
      %311 = vmatpush1.bf16.msra.mxu0 %v285
      %312 = vmatprep.subr.bf16.mxu0 0
      %313 = vmatpush1.bf16.msra.mxu0 %v284
      %314 = vmatprep.subr.bf16.mxu0 0
      %315 = vmatpush2.bf16.msra.mxu0 0
      %316 = vmatprep.subr.bf16.mxu0 0
      %317 = vmatpush2.bf16.msra.mxu0 0
      %318 = vmatprep.subr.bf16.mxu0 0
      %319 = vmatpush2.bf16.msra.mxu0 0
      %320 = vmatprep.subr.bf16.mxu0 0
      %321 = vmatpush2.bf16.msra.mxu0 0
      %322 = vmatprep.subr.bf16.mxu0 0
      %323 = vmatpush2.bf16.msra.mxu0 0
      %324 = vmatprep.subr.bf16.mxu0 0
      %325 = vmatpush2.bf16.msra.mxu0 0
      %326 = vmatprep.subr.bf16.mxu0 0
      %327 = vmatpush2.bf16.msra.mxu0 0
      %328 = vmatprep.subr.bf16.mxu0 0
      %329 = vmatpush2.bf16.msra.mxu0 0
      %330 = vmatprep.mubr.bf16.mxu0 0
      %331 = vmatmul.mubr.bf16.gmra.mxu0 %v290
      %v332 = vpop.f32.mrf.mxu0
      %v333 = vadd.f32 0.0, %v332
      %v334 = vpop.f32.mrf.mxu0
      %v335 = vpop.f32.mrf.mxu0
      %v336 = vadd.f32 0.0, %v335
      %v337 = vpop.f32.mrf.mxu0
      %338 = vmatprep.mubr.bf16.mxu0 0
      %339 = vmatmul.mubr.bf16.gmra.mxu0 %v293
      %v340 = vpop.f32.mrf.mxu0
      %v341 = vadd.f32 0.0, %v340
      %v342 = vpop.f32.mrf.mxu0
      %v343 = vpop.f32.mrf.mxu0
      %v344 = vadd.f32 0.0, %v343
      %v345 = vpop.f32.mrf.mxu0
      %346 = vmatprep.mubr.bf16.mxu0 0
      %347 = vmatmul.mubr.bf16.gmra.mxu0 %v296
      %v348 = vpop.f32.mrf.mxu0
      %v349 = vadd.f32 0.0, %v348
      %v350 = vpop.f32.mrf.mxu0
      %v351 = vpop.f32.mrf.mxu0
      %v352 = vpop.f32.mrf.mxu0
      %353 = vdwg.mxu0
      %354 = vst.msk [vmem:[%s261] sm:$0xff] %vm288, %v333
      %355 = vst.msk [vmem:[%s261 + $0x8] sm:$0xff] %vm288, %v336
      %356 = vst.msk [vmem:[%s261 + $0x10] sm:$0xff] %vm288, %v341
      %357 = vst.msk [vmem:[%s261 + $0x18] sm:$0xff] %vm288, %v344
      %vm358 = vcmask 254976
      %359 = vst.msk [vmem:[%s261 + $0x20] sm:$0x3] %vm358, %v349
      %s360 = smul.u32 5, %s20
      %p361 = scmp.lt.s32.totalorder %s19, 2
      %s362 = scalar_select %p361, %s19, 2
      %p363 = scmp.lt.s32.totalorder %s360, 4
      %s364 = scalar_select %p363, %s360, 4
      %p365 = scmp.lt.s32.totalorder %s21, 0
      %s366 = scalar_select %p365, %s21, 0
      %s367 = sadd.s32 %s366, %s364
      %s368 = smul.addr %s362, 5
      %s369 = sadd.s32 %s367, %s368
      %s370 = smul.addr %s369, 8
      %s371 = scalar_lea.vmem %s2, %s370
      // Predicated region
      $region29: #{vit_forward.15} parent=27 // pred_check
        %p372 = pneg %p121
      $region30: #{vit_forward.15} parent=27 // pred_check_branch
        %374 = sbr.rel (%p372) target = $region32
      $region31: #{vit_forward.15} parent=27 // pred_region
        %s375 = smul.u32 5, %s20
      $region32: #{vit_forward.15} parent=27 // pred_fallthru
        _
    $region28: #{vit_forward.15} parent=5 // pred_fallthru
      _
    %p376 = scmp.le.s32.totalorder 2, %s8
    // Predicated region
    $region33: #{vit_forward.15} parent=5 // pred_check
      %p377 = pneg %p376
    $region34: #{vit_forward.15} parent=5 // pred_check_branch
      %379 = sbr.rel (%p377) target = $region36
    $region35: #{vit_forward.15} parent=5 // pred_region
      %s380 = ssub.s32 %s8, 2
      // Predicated region
      $region37: #{vit_forward.15} parent=35 // pred_check
        %p381 = pneg %p127
      $region38: #{vit_forward.15} parent=35 // pred_check_branch
        %383 = sbr.rel (%p381) target = $region40
      $region39: #{vit_forward.15} parent=35 // pred_region
        %s384 = smul.u32 5, %s24
        %p385 = scmp.lt.s32.totalorder %s23, 2
        %s386 = scalar_select %p385, %s23, 2
        %p387 = scmp.lt.s32.totalorder %s384, 4
        %s388 = scalar_select %p387, %s384, 4
        %p389 = scmp.lt.s32.totalorder %s25, 0
        %s390 = scalar_select %p389, %s25, 0
        %s391 = sadd.s32 %s390, %s388
        %s392 = smul.addr %s386, 5
        %s393 = sadd.s32 %s391, %s392
        %s394 = smul.addr %s393, 8
        %s395 = scalar_lea.vmem %s2, %s394
      $region40: #{vit_forward.15} parent=35 // pred_fallthru
        _
    $region36: #{vit_forward.15} parent=5 // pred_fallthru
      _
  $region6: #{vit_forward.15} parent=0 // loop_footer
    %s12 = sadd.s32 1, %s8
  $region7: #{vit_forward.15} parent=0 // loop_footer_branch
    %7 = sbr.rel target = $region3
  $region8: #{vit_forward.15} parent=0 // loop_exit
    _

// kernel: vit_forward.13
$region0: #{vit_forward.13}
  #allocation0 [shape = 'u32[]', space=smem, size = 0x4, offset = 0x4, fixed_abs, tag = 'smem constant byte address 0x4 - core index']
  #allocation1 [shape = 'u32[144,128]{1,0:T(1,128)}', space=vmem, size = 0x12000, scoped, tag = 'internal scratch']
  %s0 = inlined_call_operand.vmem [shape: f32[1,32,48], index: 0, kind: input, shape index: {}]
  %s1 = inlined_call_operand.vmem [shape: bf16[1,48,32], index: 1, kind: input, shape index: {}]
  %s2 = inlined_call_operand.vmem [shape: f32[1,1,32], index: 2, kind: input, shape index: {}]
  %s3 = inlined_call_operand.vmem [shape: f32[1,1,32], index: 3, kind: input, shape index: {}]
  %s4 = inlined_call_operand.vmem [shape: f32[1,1,32], index: 4, kind: input, shape index: {}]
  %s5 = inlined_call_operand.vmem [shape: f32[1,32,32], index: 5, kind: output, shape index: {}]
  %s6 = sld [smem:[#allocation0]]
  $region30: #{vit_forward.13} parent=0
    _
  %s8 = ssub.s32 1, %s6
  %s9 = scalar_select 0, %s8, %s6
  // Predicated region
  $region2: #{vit_forward.13} parent=0 // pred_check
    _
  $region3: #{vit_forward.13} parent=0 // pred_check_branch
    %11 = sbr.rel (0) target = $region5
  $region4: #{vit_forward.13} parent=0 // pred_region
    _
  $region5: #{vit_forward.13} parent=0 // pred_fallthru
    _
  // Predicated region
  $region6: #{vit_forward.13} parent=0 // pred_check
    _
  $region7: #{vit_forward.13} parent=0 // pred_check_branch
    %13 = sbr.rel (0) target = $region9
  $region8: #{vit_forward.13} parent=0 // pred_region
    _
  $region9: #{vit_forward.13} parent=0 // pred_fallthru
    _
  // Predicated region
  $region10: #{vit_forward.13} parent=0 // pred_check
    _
  $region11: #{vit_forward.13} parent=0 // pred_check_branch
    %15 = sbr.rel (0) target = $region13
  $region12: #{vit_forward.13} parent=0 // pred_region
    _
  $region13: #{vit_forward.13} parent=0 // pred_fallthru
    _
  // Predicated region
  $region14: #{vit_forward.13} parent=0 // pred_check
    _
  $region15: #{vit_forward.13} parent=0 // pred_check_branch
    %17 = sbr.rel (0) target = $region17
  $region16: #{vit_forward.13} parent=0 // pred_region
    _
  $region17: #{vit_forward.13} parent=0 // pred_fallthru
    _
  // Predicated region
  $region18: #{vit_forward.13} parent=0 // pred_check
    _
  $region19: #{vit_forward.13} parent=0 // pred_check_branch
    %19 = sbr.rel (0) target = $region21
  $region20: #{vit_forward.13} parent=0 // pred_region
    _
  $region21: #{vit_forward.13} parent=0 // pred_fallthru
    _
  %v21 = vld [vmem:[%s0] sm:$0xff]
  %v22 = vld [vmem:[%s0 + $0x8] sm:$0xff]
  %v23 = vld [vmem:[%s0 + $0x10] sm:$0xff]
  %v24 = vld [vmem:[%s0 + $0x18] sm:$0xff]
  %v25 = vpack.c.bf16 %v22, %v21
  %v26 = vpack.c.bf16 %v24, %v23
  %v27 = vld [vmem:[%s1] sm:$0xf]
  %v28 = vld [vmem:[%s1 + $0x4] sm:$0xf]
  %v29 = vld [vmem:[%s1 + $0x8] sm:$0xf]
  %v30 = vld [vmem:[%s1 + $0xc] sm:$0xf]
  %v31 = vld [vmem:[%s1 + $0x10] sm:$0xf]
  %v32 = vld [vmem:[%s1 + $0x14] sm:$0xf]
  %v33 = vld [vmem:[%s2] sm:$0x1]
  %v35 = vlaneseq
  %v36 = vshrl.u32 %v35, 7
  %v37 = vsub.s32 0, %v36
  %v38 = vrot.slane %v33, %v37
  %v46 = vunpack.c.l.b16 %v27
  %v47 = vunpack.c.l.b16 %v28
  %v48 = vunpack.c.l.b16 %v29
  %v49 = vunpack.c.l.b16 %v30
  %v50 = vunpack.c.l.b16 %v31
  %v51 = vunpack.c.l.b16 %v32
  %v52 = vpack.c.b16 %v47, %v46
  %v53 = vpack.c.b16 %v49, %v48
  %v54 = vpack.c.b16 %v51, %v50
  %vm58 = vcmask 392192
  %v60 = vsel %vm58, %v25, 0
  %v63 = vsel %vm58, %v26, 0
  %65 = vmatprep.subr.bf16.mxu0 0
  %66 = vmatpush1.bf16.msra.mxu0 0
  %67 = vmatprep.subr.bf16.mxu0 0
  %68 = vmatpush1.bf16.msra.mxu0 0
  %69 = vmatprep.subr.bf16.mxu0 0
  %70 = vmatpush1.bf16.msra.mxu0 0
  %71 = vmatprep.subr.bf16.mxu0 0
  %72 = vmatpush1.bf16.msra.mxu0 0
  %73 = vmatprep.subr.bf16.mxu0 0
  %74 = vmatpush1.bf16.msra.mxu0 0
  %75 = vmatprep.subr.bf16.mxu0 0
  %76 = vmatpush1.bf16.msra.mxu0 %v54
  %77 = vmatprep.subr.bf16.mxu0 0
  %78 = vmatpush1.bf16.msra.mxu0 %v53
  %79 = vmatprep.subr.bf16.mxu0 0
  %80 = vmatpush1.bf16.msra.mxu0 %v52
  %81 = vmatprep.subr.bf16.mxu0 0
  %82 = vmatpush2.bf16.msra.mxu0 0
  %83 = vmatprep.subr.bf16.mxu0 0
  %84 = vmatpush2.bf16.msra.mxu0 0
  %85 = vmatprep.subr.bf16.mxu0 0
  %86 = vmatpush2.bf16.msra.mxu0 0
  %87 = vmatprep.subr.bf16.mxu0 0
  %88 = vmatpush2.bf16.msra.mxu0 0
  %89 = vmatprep.subr.bf16.mxu0 0
  %90 = vmatpush2.bf16.msra.mxu0 0
  %91 = vmatprep.subr.bf16.mxu0 0
  %92 = vmatpush2.bf16.msra.mxu0 0
  %93 = vmatprep.subr.bf16.mxu0 0
  %94 = vmatpush2.bf16.msra.mxu0 0
  %95 = vmatprep.subr.bf16.mxu0 0
  %96 = vmatpush2.bf16.msra.mxu0 0
  %97 = vmatprep.mubr.bf16.mxu0 0
  %98 = vmatmul.mubr.bf16.gmra.mxu0 %v60
  %v99 = vpop.f32.mrf.mxu0
  %v100 = vadd.f32 %v38, %v99
  %v101 = vpop.f32.mrf.mxu0
  %v102 = vpop.f32.mrf.mxu0
  %v103 = vadd.f32 %v38, %v102
  %v104 = vpop.f32.mrf.mxu0
  %105 = vmatprep.mubr.bf16.mxu0 0
  %106 = vmatmul.mubr.bf16.gmra.mxu0 %v63
  %v107 = vpop.f32.mrf.mxu0
  %v108 = vadd.f32 %v38, %v107
  %v109 = vpop.f32.mrf.mxu0
  %v110 = vpop.f32.mrf.mxu0
  %v111 = vadd.f32 %v38, %v110
  %v112 = vpop.f32.mrf.mxu0
  %113 = vdwg.mxu0
  %vm114 = vcmask 261120
  %v115 = vsel %vm114, %v100, 0.0
  %116 = vadd.xlane.f32.xlu0 %v115
  %v117 = vpop.xlane.xlu0 %116
  %v118 = vsel %vm114, %v103, 0.0
  %119 = vadd.xlane.f32.xlu0 %v118
  %v120 = vpop.xlane.xlu0 %119
  %v121 = vsel %vm114, %v108, 0.0
  %122 = vadd.xlane.f32.xlu0 %v121
  %v123 = vpop.xlane.xlu0 %122
  %v124 = vsel %vm114, %v111, 0.0
  %125 = vadd.xlane.f32.xlu0 %v124
  %v126 = vpop.xlane.xlu0 %125
  %v127 = vrcp.pop 32.0
  %v128 = vmul.f32 %v117, %v127
  %v129 = vmul.f32 %v120, %v127
  %v130 = vmul.f32 %v123, %v127
  %v131 = vmul.f32 %v126, %v127
  %v132 = vsub.f32 %v100, %v128
  %v133 = vsub.f32 %v103, %v129
  %v134 = vsub.f32 %v108, %v130
  %v135 = vsub.f32 %v111, %v131
  %v136 = vmul.f32 %v132, %v132
  %v137 = vmul.f32 %v133, %v133
  %v138 = vmul.f32 %v134, %v134
  %v139 = vmul.f32 %v135, %v135
  %v140 = vsel %vm114, %v136, 0.0
  %141 = vadd.xlane.f32.xlu0 %v140
  %v142 = vpop.xlane.xlu0 %141
  %v143 = vsel %vm114, %v137, 0.0
  %144 = vadd.xlane.f32.xlu0 %v143
  %v145 = vpop.xlane.xlu0 %144
  %v146 = vsel %vm114, %v138, 0.0
  %147 = vadd.xlane.f32.xlu0 %v146
  %v148 = vpop.xlane.xlu0 %147
  %v149 = vsel %vm114, %v139, 0.0
  %150 = vadd.xlane.f32.xlu0 %v149
  %v151 = vpop.xlane.xlu0 %150
  %v152 = vmul.f32 %v142, %v127
  %v153 = vmul.f32 %v145, %v127
  %v154 = vmul.f32 %v148, %v127
  %v155 = vmul.f32 %v151, %v127
  %v156 = vadd.f32 %v152, 1e-05
  %v157 = vadd.f32 %v153, 1e-05
  %v158 = vadd.f32 %v154, 1e-05
  %v159 = vadd.f32 %v155, 1e-05
  %v160 = vrsqrt.pop %v156
  %v161 = vrsqrt.pop %v157
  %v162 = vrsqrt.pop %v158
  %v163 = vrsqrt.pop %v159
  %v164 = vmul.f32 %v132, %v160
  %v165 = vmul.f32 %v133, %v161
  %v166 = vmul.f32 %v134, %v162
  %v167 = vmul.f32 %v135, %v163
  %v168 = vld [vmem:[%s3] sm:$0x1]
  %v170 = vlaneseq
  %v171 = vshrl.u32 %v170, 7
  %v172 = vsub.s32 0, %v171
  %v173 = vrot.slane %v168, %v172
  %v175 = vmul.f32 %v164, %v173
  %v176 = vmul.f32 %v165, %v173
  %v177 = vmul.f32 %v166, %v173
  %v178 = vmul.f32 %v167, %v173
  %v179 = vld [vmem:[%s4] sm:$0x1]
  %v181 = vlaneseq
  %v182 = vshrl.u32 %v181, 7
  %v183 = vsub.s32 0, %v182
  %v184 = vrot.slane %v179, %v183
  %v186 = vadd.f32 %v175, %v184
  %v187 = vadd.f32 %v176, %v184
  %v188 = vadd.f32 %v177, %v184
  %v189 = vadd.f32 %v178, %v184
  %190 = vst.msk [vmem:[%s5] sm:$0xff] %vm114, %v186
  %191 = vst.msk [vmem:[%s5 + $0x8] sm:$0xff] %vm114, %v187
  %192 = vst.msk [vmem:[%s5 + $0x10] sm:$0xff] %vm114, %v188
  %193 = vst.msk [vmem:[%s5 + $0x18] sm:$0xff] %vm114, %v189
  // Predicated region
  $region22: #{vit_forward.13} parent=0 // pred_check
    _
  $region23: #{vit_forward.13} parent=0 // pred_check_branch
    %195 = sbr.rel (0) target = $region25
  $region24: #{vit_forward.13} parent=0 // pred_region
    _
  $region25: #{vit_forward.13} parent=0 // pred_fallthru
    _
  // Predicated region
  $region26: #{vit_forward.13} parent=0 // pred_check
    _
  $region27: #{vit_forward.13} parent=0 // pred_check_branch
    %197 = sbr.rel (0) target = $region29
  $region28: #{vit_forward.13} parent=0 // pred_region
    _
  $region29: #{vit_forward.13} parent=0 // pred_fallthru
    _

// kernel: vit_forward.14
$region0: #{vit_forward.14}
  #allocation0 [shape = 'u32[]', space=smem, size = 0x4, offset = 0x4, fixed_abs, tag = 'smem constant byte address 0x4 - core index']
  #allocation1 [shape = 'u32[144,128]{1,0:T(1,128)}', space=vmem, size = 0x12000, scoped, tag = 'internal scratch']
  #allocation2 [shape = 'f32[6,6,32]{2,1,0:T(8,128)}', space=vmem, size = 0x6000, scoped, tag = 'scratch operand']
  %s0 = inlined_call_operand.vmem [shape: f32[2,17,32], index: 0, kind: input, shape index: {}]
  %s1 = inlined_call_operand.vmem [shape: f32[1,32], index: 1, kind: input, shape index: {}]
  %s2 = inlined_call_operand.vmem [shape: f32[1,32], index: 2, kind: input, shape index: {}]
  %s3 = inlined_call_operand.vmem [shape: f32[3,9,32], index: 3, kind: input, shape index: {}]
  %s4 = inlined_call_operand.vmem [shape: f32[3,32], index: 4, kind: input, shape index: {}]
  %s5 = inlined_call_operand.vmem [shape: f32[3,32], index: 5, kind: input, shape index: {}]
  %s6 = inlined_call_operand.vmem [shape: f32[3,2,17,32], index: 6, kind: output, shape index: {}]
  %s7 = sld [smem:[#allocation0]]
  $region91: #{vit_forward.14} parent=0
    _
  %s9 = ssub.s32 1, %s7
  %s10 = scalar_select 0, %s9, %s7
  $region1: #{vit_forward.14} parent=0
    #allocation3 [shape = 'u8[73728]{0}', space=vmem, size = 0x12000, scoped, tag = 'output window, operand 0']
    loop: start=0, step=1, limit=4
    $region2: #{vit_forward.14} parent=1 // loop_pre_header
      _
    $region3: #{vit_forward.14} parent=1 // loop_header
      %s12 = sphi 0, %s16
      %p13 = scmp.ge.s32.totalorder %s12, 4
      %s22 = sphi 0, %s24
      %s25 = sphi 0, %s22
      %s26 = sphi 0, %s25
      %s42 = sphi 0, %s26
      %s46 = sphi 0, %s46
      %s48 = sphi 0, %s46
      %s49 = sphi 0, %s48
      %s63 = sphi 0, %s49
      %s67 = sphi 0, %s67
      %s69 = sphi 0, %s67
      %s70 = sphi 0, %s69
      %s84 = sphi 0, %s70
      %s88 = sphi 0, %s88
      %s90 = sphi 0, %s88
      %s91 = sphi 0, %s90
      %s105 = sphi 0, %s91
      %s109 = sphi 0, %s109
      %s111 = sphi 0, %s109
      %s112 = sphi 0, %s111
      %s126 = sphi 0, %s112
      %s130 = sphi 0, %s130
      %s132 = sphi 0, %s130
      %s133 = sphi 0, %s132
      %s147 = sphi 0, %s133
      %s153 = sphi 0, %s155
      %s156 = sphi 0, %s153
      %s157 = sphi 0, %s156
      %s173 = sphi 0, %s157
    $region4: #{vit_forward.14} parent=1 // loop_header_branch
      %15 = sbr.rel (%p13) target = $region8
    $region5: #{vit_forward.14} parent=1 // loop_body
      %s17 = ssub.s32 %s12, 1
      %s18 = ssub.s32 %s12, 2
      %s19 = sadd.s32 %s12, 1
      %s20 = ssub.s32 %s12, %s19
      %p21 = scmp.eq.s32.totalorder %s20, 0
      %s23 = sadd.s32 %s22, 1
      %s24 = scalar_select %p21, %s22, %s23
      %p27 = pneg %p21
      %p28 = scmp.eq.s32.totalorder %s12, 1
      %p29 = por %p27, %p28
      %p30 = scmp.ne.s32.totalorder %s22, %s25
      %p31 = scmp.eq.s32.totalorder %s12, 0
      %p32 = por %p30, %p31
      %p33 = scmp.ne.s32.totalorder %s22, %s25
      %p34 = scmp.eq.s32.totalorder %s17, 1
      %p35 = por %p33, %p34
      %p36 = scmp.ne.s32.totalorder %s25, %s26
      %p37 = scmp.eq.s32.totalorder %s17, 0
      %p38 = por %p36, %p37
      %p39 = scmp.ne.s32.totalorder %s25, %s26
      %p40 = scmp.eq.s32.totalorder %s18, 1
      %p41 = por %p39, %p40
      %p43 = scmp.ne.s32.totalorder %s26, %s42
      %p44 = scmp.eq.s32.totalorder %s18, 0
      %p45 = por %p43, %p44
      %s47 = sadd.s32 %s46, 1
      %p50 = scmp.eq.s32.totalorder %s12, 1
      %p51 = scmp.ne.s32.totalorder %s46, %s48
      %p52 = scmp.eq.s32.totalorder %s12, 0
      %p53 = por %p51, %p52
      %p54 = scmp.ne.s32.totalorder %s46, %s48
      %p55 = scmp.eq.s32.totalorder %s17, 1
      %p56 = por %p54, %p55
      %p57 = scmp.ne.s32.totalorder %s48, %s49
      %p58 = scmp.eq.s32.totalorder %s17, 0
      %p59 = por %p57, %p58
      %p60 = scmp.ne.s32.totalorder %s48, %s49
      %p61 = scmp.eq.s32.totalorder %s18, 1
      %p62 = por %p60, %p61
      %p64 = scmp.ne.s32.totalorder %s49, %s63
      %p65 = scmp.eq.s32.totalorder %s18, 0
      %p66 = por %p64, %p65
      %s68 = sadd.s32 %s67, 1
      %p71 = scmp.eq.s32.totalorder %s12, 1
      %p72 = scmp.ne.s32.totalorder %s67, %s69
      %p73 = scmp.eq.s32.totalorder %s12, 0
      %p74 = por %p72, %p73
      %p75 = scmp.ne.s32.totalorder %s67, %s69
      %p76 = scmp.eq.s32.totalorder %s17, 1
      %p77 = por %p75, %p76
      %p78 = scmp.ne.s32.totalorder %s69, %s70
      %p79 = scmp.eq.s32.totalorder %s17, 0
      %p80 = por %p78, %p79
      %p81 = scmp.ne.s32.totalorder %s69, %s70
      %p82 = scmp.eq.s32.totalorder %s18, 1
      %p83 = por %p81, %p82
      %p85 = scmp.ne.s32.totalorder %s70, %s84
      %p86 = scmp.eq.s32.totalorder %s18, 0
      %p87 = por %p85, %p86
      %s89 = sadd.s32 %s88, 1
      %p92 = scmp.eq.s32.totalorder %s12, 1
      %p93 = scmp.ne.s32.totalorder %s88, %s90
      %p94 = scmp.eq.s32.totalorder %s12, 0
      %p95 = por %p93, %p94
      %p96 = scmp.ne.s32.totalorder %s88, %s90
      %p97 = scmp.eq.s32.totalorder %s17, 1
      %p98 = por %p96, %p97
      %p99 = scmp.ne.s32.totalorder %s90, %s91
      %p100 = scmp.eq.s32.totalorder %s17, 0
      %p101 = por %p99, %p100
      %p102 = scmp.ne.s32.totalorder %s90, %s91
      %p103 = scmp.eq.s32.totalorder %s18, 1
      %p104 = por %p102, %p103
      %p106 = scmp.ne.s32.totalorder %s91, %s105
      %p107 = scmp.eq.s32.totalorder %s18, 0
      %p108 = por %p106, %p107
      %s110 = sadd.s32 %s109, 1
      %p113 = scmp.eq.s32.totalorder %s12, 1
      %p114 = scmp.ne.s32.totalorder %s109, %s111
      %p115 = scmp.eq.s32.totalorder %s12, 0
      %p116 = por %p114, %p115
      %p117 = scmp.ne.s32.totalorder %s109, %s111
      %p118 = scmp.eq.s32.totalorder %s17, 1
      %p119 = por %p117, %p118
      %p120 = scmp.ne.s32.totalorder %s111, %s112
      %p121 = scmp.eq.s32.totalorder %s17, 0
      %p122 = por %p120, %p121
      %p123 = scmp.ne.s32.totalorder %s111, %s112
      %p124 = scmp.eq.s32.totalorder %s18, 1
      %p125 = por %p123, %p124
      %p127 = scmp.ne.s32.totalorder %s112, %s126
      %p128 = scmp.eq.s32.totalorder %s18, 0
      %p129 = por %p127, %p128
      %s131 = sadd.s32 %s130, 1
      %p134 = scmp.eq.s32.totalorder %s12, 1
      %p135 = scmp.ne.s32.totalorder %s130, %s132
      %p136 = scmp.eq.s32.totalorder %s12, 0
      %p137 = por %p135, %p136
      %p138 = scmp.ne.s32.totalorder %s130, %s132
      %p139 = scmp.eq.s32.totalorder %s17, 1
      %p140 = por %p138, %p139
      %p141 = scmp.ne.s32.totalorder %s132, %s133
      %p142 = scmp.eq.s32.totalorder %s17, 0
      %p143 = por %p141, %p142
      %p144 = scmp.ne.s32.totalorder %s132, %s133
      %p145 = scmp.eq.s32.totalorder %s18, 1
      %p146 = por %p144, %p145
      %p148 = scmp.ne.s32.totalorder %s133, %s147
      %p149 = scmp.eq.s32.totalorder %s18, 0
      %p150 = por %p148, %p149
      %s151 = ssub.s32 %s12, %s19
      %p152 = scmp.eq.s32.totalorder %s151, 0
      %s154 = sadd.s32 %s153, 1
      %s155 = scalar_select %p152, %s153, %s154
      %p158 = pneg %p152
      %p159 = scmp.eq.s32.totalorder %s12, 1
      %p160 = por %p158, %p159
      %p161 = scmp.ne.s32.totalorder %s153, %s156
      %p162 = scmp.eq.s32.totalorder %s12, 0
      %p163 = por %p161, %p162
      %p164 = scmp.ne.s32.totalorder %s153, %s156
      %p165 = scmp.eq.s32.totalorder %s17, 1
      %p166 = por %p164, %p165
      %p167 = scmp.ne.s32.totalorder %s156, %s157
      %p168 = scmp.eq.s32.totalorder %s17, 0
      %p169 = por %p167, %p168
      %p170 = scmp.ne.s32.totalorder %s156, %s157
      %p171 = scmp.eq.s32.totalorder %s18, 1
      %p172 = por %p170, %p171
      %p174 = scmp.ne.s32.totalorder %s157, %s173
      %p175 = scmp.eq.s32.totalorder %s18, 0
      %p176 = por %p174, %p175
      %p177 = scmp.le.s32.totalorder 1, %s12
      %p178 = scmp.lt.s32.totalorder %s12, 3
      %p179 = pnand %p177, %p178
      %p180 = pneg %p179
      // Predicated region
      $region9: #{vit_forward.14} parent=5 // pred_check
        _
      $region10: #{vit_forward.14} parent=5 // pred_check_branch
        %182 = sbr.rel (%p179) target = $region12
      $region11: #{vit_forward.14} parent=5 // pred_region
        %s183 = ssub.s32 %s12, 1
        // Predicated region
        $region13: #{vit_forward.14} parent=11 // pred_check
          %p184 = pneg %p59
        $region14: #{vit_forward.14} parent=11 // pred_check_branch
          %186 = sbr.rel (%p184) target = $region16
        $region15: #{vit_forward.14} parent=11 // pred_region
          _
        $region16: #{vit_forward.14} parent=11 // pred_fallthru
          _
        // Predicated region
        $region17: #{vit_forward.14} parent=11 // pred_check
          %p187 = pneg %p80
        $region18: #{vit_forward.14} parent=11 // pred_check_branch
          %189 = sbr.rel (%p187) target = $region20
        $region19: #{vit_forward.14} parent=11 // pred_region
          _
        $region20: #{vit_forward.14} parent=11 // pred_fallthru
          _
        // Predicated region
        $region21: #{vit_forward.14} parent=11 // pred_check
          %p190 = pneg %p101
        $region22: #{vit_forward.14} parent=11 // pred_check_branch
          %192 = sbr.rel (%p190) target = $region24
        $region23: #{vit_forward.14} parent=11 // pred_region
          _
        $region24: #{vit_forward.14} parent=11 // pred_fallthru
          _
        // Predicated region
        $region25: #{vit_forward.14} parent=11 // pred_check
          %p193 = pneg %p122
        $region26: #{vit_forward.14} parent=11 // pred_check_branch
          %195 = sbr.rel (%p193) target = $region28
        $region27: #{vit_forward.14} parent=11 // pred_region
          _
        $region28: #{vit_forward.14} parent=11 // pred_fallthru
          _
        // Predicated region
        $region29: #{vit_forward.14} parent=11 // pred_check
          %p196 = pneg %p143
        $region30: #{vit_forward.14} parent=11 // pred_check_branch
          %198 = sbr.rel (%p196) target = $region32
        $region31: #{vit_forward.14} parent=11 // pred_region
          _
        $region32: #{vit_forward.14} parent=11 // pred_fallthru
          _
      $region12: #{vit_forward.14} parent=5 // pred_fallthru
        _
      %p199 = scmp.lt.s32.totalorder %s12, 2
      // Predicated region
      $region33: #{vit_forward.14} parent=5 // pred_check
        %p200 = pneg %p199
      $region34: #{vit_forward.14} parent=5 // pred_check_branch
        %202 = sbr.rel (%p200) target = $region36
      $region35: #{vit_forward.14} parent=5 // pred_region
        // Predicated region
        $region37: #{vit_forward.14} parent=35 // pred_check
          %p203 = pneg %p32
        $region38: #{vit_forward.14} parent=35 // pred_check_branch
          %205 = sbr.rel (%p203) target = $region40
        $region39: #{vit_forward.14} parent=35 // pred_region
          %p206 = scmp.lt.s32.totalorder %s12, 1
          %s207 = scalar_select %p206, %s12, 1
          %s208 = smul.addr %s207, 3
          %s209 = smul.addr %s208, 8
          %s210 = scalar_lea.vmem %s0, %s209
        $region40: #{vit_forward.14} parent=35 // pred_fallthru
          _
      $region36: #{vit_forward.14} parent=5 // pred_fallthru
        _
      %p211 = scmp.le.s32.totalorder 1, %s12
      %p212 = scmp.lt.s32.totalorder %s12, 3
      %p213 = pnand %p211, %p212
      %p214 = pneg %p213
      // Predicated region
      $region41: #{vit_forward.14} parent=5 // pred_check
        _
      $region42: #{vit_forward.14} parent=5 // pred_check_branch
        %216 = sbr.rel (%p213) target = $region44
      $region43: #{vit_forward.14} parent=5 // pred_region
        %s217 = ssub.s32 %s12, 1
        %p218 = scmp.lt.s32.totalorder %s17, 1
        %s219 = scalar_select %p218, %s17, 1
        %s220 = smul.addr %s219, 3
        %s221 = smul.addr %s220, 8
        %s222 = scalar_lea.vmem %s0, %s221
        %p223 = pneg %p38
        %p224 = pneg %p35
        %p225 = pneg %p59
        %p226 = pneg %p56
        %p227 = pneg %p80
        %p228 = pneg %p77
        %p229 = pneg %p101
        %p230 = pneg %p98
        %p231 = pneg %p122
        %p232 = pneg %p119
        %p233 = pneg %p143
        %p234 = pneg %p140
        %p235 = pneg %p169
        %p236 = pneg %p166
        %s237 = sand.u32 %s156, 1
        %s238 = sand.u32 %s156, 1
        %s239 = smul.addr %s238, 72
        %s240 = scalar_lea.vmem [#allocation3], %s239
        %p241 = scmp.lt.s32.totalorder %s17, 1
        %s242 = scalar_select %p241, %s17, 1
        %s243 = smul.addr %s242, 3
        %s244 = smul.addr %s243, 8
        %s245 = scalar_lea.vmem %s0, %s244
        %v246 = vld [vmem:[%s1] sm:$0x1]
        %v247 = vld [vmem:[%s2] sm:$0x1]
        %v248 = vld [vmem:[%s3] sm:$0xff]
        %v249 = vld [vmem:[%s3 + $0x8] sm:$0x1]
        %v250 = vld [vmem:[%s3 + $0x10] sm:$0xff]
        %v251 = vld [vmem:[%s3 + $0x18] sm:$0x1]
        %v252 = vld [vmem:[%s3 + $0x20] sm:$0xff]
        %v253 = vld [vmem:[%s3 + $0x28] sm:$0x1]
        %v254 = vld [vmem:[%s4] sm:$0x7]
        %v255 = vld [vmem:[%s5] sm:$0x7]
        %vm256 = vcmask 259072
        %257 = vst.msk [vmem:[#allocation2] sm:$0x3f] %vm256, 0.0
        %258 = vst.msk [vmem:[#allocation2 + $0x8] sm:$0x3f] %vm256, 0.0
        %259 = vst.msk [vmem:[#allocation2 + $0x10] sm:$0x3f] %vm256, 0.0
        %260 = vst.msk [vmem:[#allocation2 + $0x18] sm:$0x3f] %vm256, 0.0
        %261 = vst.msk [vmem:[#allocation2 + $0x20] sm:$0x3f] %vm256, 0.0
        %262 = vst.msk [vmem:[#allocation2 + $0x28] sm:$0x3f] %vm256, 0.0
        %v263 = vld [vmem:[%s245] sm:$0xff]
        %v264 = vld [vmem:[%s245 + $0x8] sm:$0xff]
        %v265 = vld [vmem:[%s245 + $0x10] sm:$0x1]
        %vm266 = vcmask 261120
        %v267 = vsel %vm266, %v263, 0.0
        %268 = vadd.xlane.f32.xlu0 %v267
        %v269 = vpop.xlane.xlu0 %268
        %v270 = vsel %vm266, %v264, 0.0
        %271 = vadd.xlane.f32.xlu0 %v270
        %v272 = vpop.xlane.xlu0 %271
        %vm273 = vcmask 253952
        %v274 = vsel %vm273, %v265, 0.0
        %275 = vadd.xlane.f32.xlu0 %v274
        %v276 = vpop.xlane.xlu0 %275
        %v277 = vrcp.pop 32.0
        %v278 = vmul.f32 %v269, %v277
        %v279 = vmul.f32 %v272, %v277
        %v280 = vmul.f32 %v276, %v277
        %v281 = vsub.f32 %v263, %v278
        %v282 = vsub.f32 %v264, %v279
        %v283 = vsub.f32 %v265, %v280
        %v284 = vmul.f32 %v281, %v281
        %v285 = vmul.f32 %v282, %v282
        %v286 = vmul.f32 %v283, %v283
        %v287 = vsel %vm266, %v284, 0.0
        %288 = vadd.xlane.f32.xlu0 %v287
        %v289 = vpop.xlane.xlu0 %288
        %v290 = vsel %vm266, %v285, 0.0
        %291 = vadd.xlane.f32.xlu0 %v290
        %v292 = vpop.xlane.xlu0 %291
        %v293 = vsel %vm273, %v286, 0.0
        %294 = vadd.xlane.f32.xlu0 %v293
        %v295 = vpop.xlane.xlu0 %294
        %v296 = vmul.f32 %v289, %v277
        %v297 = vmul.f32 %v292, %v277
        %v298 = vmul.f32 %v295, %v277
        %v299 = vadd.f32 %v296, 1e-05
        %v300 = vadd.f32 %v297, 1e-05
        %v301 = vadd.f32 %v298, 1e-05
        %v302 = vrsqrt.pop %v299
        %v303 = vrsqrt.pop %v300
        %v304 = vrsqrt.pop %v301
        %v305 = vmul.f32 %v281, %v302
        %v306 = vmul.f32 %v282, %v303
        %v307 = vmul.f32 %v283, %v304
        %v309 = vlaneseq
        %v310 = vshrl.u32 %v309, 7
        %v311 = vsub.s32 0, %v310
        %v312 = vrot.slane %v246, %v311
        %v314 = vmul.f32 %v305, %v312
        %v315 = vmul.f32 %v306, %v312
        %v316 = vmul.f32 %v307, %v312
        %v318 = vlaneseq
        %v319 = vshrl.u32 %v318, 7
        %v320 = vsub.s32 0, %v319
        %v321 = vrot.slane %v247, %v320
        %v323 = vadd.f32 %v314, %v321
        %v324 = vadd.f32 %v315, %v321
        %v325 = vadd.f32 %v316, %v321
        %v329 = vcombine.high %v323, %v323
        %v330 = vcombine.high %v324, %v324
        %vm331 = vcmask 1042432
        %vm332 = vcmask 1046532
        %vm333 = vmor %vm331, %vm332
        %v334 = vrot.slane %v323, 5
        %v335 = vrot.slane %v334, 4
        %v336 = vrot.slane %v329, 5
        %v337 = vsel %vm333, %v335, %v336
        %v338 = vrot.slane %v336, 4
        %v339 = vrot.slane %v324, 5
        %v340 = vsel %vm333, %v338, %v339
        %v341 = vrot.slane %v339, 4
        %v342 = vrot.slane %v330, 5
        %v343 = vsel %vm333, %v341, %v342
        %v344 = vrot.slane %v342, 4
        %v345 = vrot.slane %v325, 5
        %v346 = vsel %vm333, %v344, %v345
        %s351 = scalar_lea.vmem [#allocation2], 8
        %vm352 = vcmask 257024
        %353 = vst.msk [vmem:[%s351 + $0x1] sm:$0xf] %vm352, %v337
        %354 = vst.msk [vmem:[%s351 + $0x9] sm:$0xf] %vm352, %v340
        %355 = vst.msk [vmem:[%s351 + $0x11] sm:$0xf] %vm352, %v343
        %356 = vst.msk [vmem:[%s351 + $0x19] sm:$0xf] %vm352, %v346
        %v357 = vld [vmem:[#allocation2] sm:$0xf]
        %v358 = vld [vmem:[#allocation2 + $0x8] sm:$0xf]
        %v359 = vld [vmem:[#allocation2 + $0x10] sm:$0xf]
        %v360 = vld [vmem:[#allocation2 + $0x18] sm:$0xf]
        %v361 = vld [vmem:[#allocation2 + $0x1] sm:$0xf]
        %v362 = vld [vmem:[#allocation2 + $0x9] sm:$0xf]
        %v363 = vld [vmem:[#allocation2 + $0x11] sm:$0xf]
        %v364 = vld [vmem:[#allocation2 + $0x19] sm:$0xf]
        %v365 = vld [vmem:[#allocation2 + $0x2] sm:$0xf]
        %v366 = vld [vmem:[#allocation2 + $0xa] sm:$0xf]
        %v367 = vld [vmem:[#allocation2 + $0x12] sm:$0xf]
        %v368 = vld [vmem:[#allocation2 + $0x1a] sm:$0xf]
        %v369 = vld [vmem:[%s351] sm:$0xf]
        %v370 = vld [vmem:[%s351 + $0x8] sm:$0xf]
        %v371 = vld [vmem:[%s351 + $0x10] sm:$0xf]
        %v372 = vld [vmem:[%s351 + $0x18] sm:$0xf]
        %v373 = vld [vmem:[%s351 + $0x1] sm:$0xf]
        %v374 = vld [vmem:[%s351 + $0x9] sm:$0xf]
        %v375 = vld [vmem:[%s351 + $0x11] sm:$0xf]
        %v376 = vld [vmem:[%s351 + $0x19] sm:$0xf]
        %v377 = vld [vmem:[%s351 + $0x2] sm:$0xf]
        %v378 = vld [vmem:[%s351 + $0xa] sm:$0xf]
        %v379 = vld [vmem:[%s351 + $0x12] sm:$0xf]
        %v380 = vld [vmem:[%s351 + $0x1a] sm:$0xf]
        %s381 = scalar_lea.vmem [#allocation2], 16
        %v382 = vld [vmem:[%s381] sm:$0xf]
        %v383 = vld [vmem:[%s381 + $0x8] sm:$0xf]
        %v384 = vld [vmem:[%s381 + $0x10] sm:$0xf]
        %v385 = vld [vmem:[%s381 + $0x18] sm:$0xf]
        %v386 = vld [vmem:[%s381 + $0x1] sm:$0xf]
        %v387 = vld [vmem:[%s381 + $0x9] sm:$0xf]
        %v388 = vld [vmem:[%s381 + $0x11] sm:$0xf]
        %v389 = vld [vmem:[%s381 + $0x19] sm:$0xf]
        %v390 = vld [vmem:[%s381 + $0x2] sm:$0xf]
        %v391 = vld [vmem:[%s381 + $0xa] sm:$0xf]
        %v392 = vld [vmem:[%s381 + $0x12] sm:$0xf]
        %v393 = vld [vmem:[%s381 + $0x1a] sm:$0xf]
        %v394 = vlaneseq
        %v395 = vshrl.u32 %v394, 7
        %v396 = vsub.s32 0, %v395
        %v397 = vrot.slane %v248, %v396
        %v398 = vmul.f32 %v357, %v397
        %v399 = vmul.f32 %v358, %v397
        %v400 = vmul.f32 %v359, %v397
        %v401 = vmul.f32 %v360, %v397
        %v402 = vlaneseq
        %v403 = vshrl.u32 %v402, 7
        %v404 = vsub.s32 1, %v403
        %v405 = vrot.slane %v248, %v404
        %v406 = vmul.f32 %v361, %v405
        %v407 = vmul.f32 %v362, %v405
        %v408 = vmul.f32 %v363, %v405
        %v409 = vmul.f32 %v364, %v405
        %v410 = vadd.f32 %v398, %v406
        %v411 = vadd.f32 %v399, %v407
        %v412 = vadd.f32 %v400, %v408
        %v413 = vadd.f32 %v401, %v409
        %v414 = vlaneseq
        %v415 = vshrl.u32 %v414, 7
        %v416 = vsub.s32 2, %v415
        %v417 = vrot.slane %v248, %v416
        %v418 = vmul.f32 %v365, %v417
        %v419 = vmul.f32 %v366, %v417
        %v420 = vmul.f32 %v367, %v417
        %v421 = vmul.f32 %v368, %v417
        %v422 = vadd.f32 %v410, %v418
        %v423 = vadd.f32 %v411, %v419
        %v424 = vadd.f32 %v412, %v420
        %v425 = vadd.f32 %v413, %v421
        %v426 = vlaneseq
        %v427 = vshrl.u32 %v426, 7
        %v428 = vsub.s32 3, %v427
        %v429 = vrot.slane %v248, %v428
        %v430 = vmul.f32 %v369, %v429
        %v431 = vmul.f32 %v370, %v429
        %v432 = vmul.f32 %v371, %v429
        %v433 = vmul.f32 %v372, %v429
        %v434 = vadd.f32 %v422, %v430
        %v435 = vadd.f32 %v423, %v431
        %v436 = vadd.f32 %v424, %v432
        %v437 = vadd.f32 %v425, %v433
        %v438 = vlaneseq
        %v439 = vshrl.u32 %v438, 7
        %v440 = vsub.s32 4, %v439
        %v441 = vrot.slane %v248, %v440
        %v442 = vmul.f32 %v373, %v441
        %v443 = vmul.f32 %v374, %v441
        %v444 = vmul.f32 %v375, %v441
        %v445 = vmul.f32 %v376, %v441
        %v446 = vadd.f32 %v434, %v442
        %v447 = vadd.f32 %v435, %v443
        %v448 = vadd.f32 %v436, %v444
        %v449 = vadd.f32 %v437, %v445
        %v450 = vlaneseq
        %v451 = vshrl.u32 %v450, 7
        %v452 = vsub.s32 5, %v451
        %v453 = vrot.slane %v248, %v452
        %v454 = vmul.f32 %v377, %v453
        %v455 = vmul.f32 %v378, %v453
        %v456 = vmul.f32 %v379, %v453
        %v457 = vmul.f32 %v380, %v453
        %v458 = vadd.f32 %v446, %v454
        %v459 = vadd.f32 %v447, %v455
        %v460 = vadd.f32 %v448, %v456
        %v461 = vadd.f32 %v449, %v457
        %v462 = vlaneseq
        %v463 = vshrl.u32 %v462, 7
        %v464 = vsub.s32 6, %v463
        %v465 = vrot.slane %v248, %v464
        %v466 = vmul.f32 %v382, %v465
        %v467 = vmul.f32 %v383, %v465
        %v468 = vmul.f32 %v384, %v465
        %v469 = vmul.f32 %v385, %v465
        %v470 = vadd.f32 %v458, %v466
        %v471 = vadd.f32 %v459, %v467
        %v472 = vadd.f32 %v460, %v468
        %v473 = vadd.f32 %v461, %v469
        %v474 = vlaneseq
        %v475 = vshrl.u32 %v474, 7
        %v476 = vsub.s32 7, %v475
        %v477 = vrot.slane %v248, %v476
        %v478 = vmul.f32 %v386, %v477
        %v479 = vmul.f32 %v387, %v477
        %v480 = vmul.f32 %v388, %v477
        %v481 = vmul.f32 %v389, %v477
        %v482 = vadd.f32 %v470, %v478
        %v483 = vadd.f32 %v471, %v479
        %v484 = vadd.f32 %v472, %v480
        %v485 = vadd.f32 %v473, %v481
        %v486 = vlaneseq
        %v487 = vshrl.u32 %v486, 7
        %v488 = vsub.s32 0, %v487
        %v489 = vrot.slane %v249, %v488
        %v490 = vmul.f32 %v390, %v489
        %v491 = vmul.f32 %v391, %v489
        %v492 = vmul.f32 %v392, %v489
        %v493 = vmul.f32 %v393, %v489
        %v494 = vadd.f32 %v482, %v490
        %v495 = vadd.f32 %v483, %v491
        %v496 = vadd.f32 %v484, %v492
        %v497 = vadd.f32 %v485, %v493
        %v498 = vlaneseq
        %v499 = vshrl.u32 %v498, 7
        %v500 = vsub.s32 0, %v499
        %v501 = vrot.slane %v254, %v500
        %v502 = vmul.f32 %v494, %v501
        %v503 = vmul.f32 %v495, %v501
        %v504 = vmul.f32 %v496, %v501
        %v505 = vmul.f32 %v497, %v501
        %v506 = vlaneseq
        %v507 = vshrl.u32 %v506, 7
        %v508 = vsub.s32 0, %v507
        %v509 = vrot.slane %v255, %v508
        %v510 = vadd.f32 %v502, %v509
        %v511 = vadd.f32 %v503, %v509
        %v512 = vadd.f32 %v504, %v509
        %v513 = vadd.f32 %v505, %v509
        %v518 = vcombine.low %v510, %v511
        %v519 = vcombine.low %v512, %v513
        %vm520 = vcmask 1040384
        %v521 = vrot.slane %v518, 7
        %v522 = vrot.slane %v519, 7
        %v523 = vsel %vm520, %v521, %v522
        %v527 = vsel %vm520, %v323, %v521
        %528 = vst.msk [vmem:[%s240] sm:$0xff] %vm266, %v527
        %529 = vst.msk [vmem:[%s240 + $0x8] sm:$0xff] %vm266, %v523
        %530 = vst.msk [vmem:[%s240 + $0x10] sm:$0x1] %vm273, %v522
        %v531 = vlaneseq
        %v532 = vshrl.u32 %v531, 7
        %v533 = vsub.s32 0, %v532
        %v534 = vrot.slane %v250, %v533
        %v535 = vmul.f32 %v357, %v534
        %v536 = vmul.f32 %v358, %v534
        %v537 = vmul.f32 %v359, %v534
        %v538 = vmul.f32 %v360, %v534
        %v539 = vlaneseq
        %v540 = vshrl.u32 %v539, 7
        %v541 = vsub.s32 1, %v540
        %v542 = vrot.slane %v250, %v541
        %v543 = vmul.f32 %v361, %v542
        %v544 = vmul.f32 %v362, %v542
        %v545 = vmul.f32 %v363, %v542
        %v546 = vmul.f32 %v364, %v542
        %v547 = vadd.f32 %v535, %v543
        %v548 = vadd.f32 %v536, %v544
        %v549 = vadd.f32 %v537, %v545
        %v550 = vadd.f32 %v538, %v546
        %v551 = vlaneseq
        %v552 = vshrl.u32 %v551, 7
        %v553 = vsub.s32 2, %v552
        %v554 = vrot.slane %v250, %v553
        %v555 = vmul.f32 %v365, %v554
        %v556 = vmul.f32 %v366, %v554
        %v557 = vmul.f32 %v367, %v554
        %v558 = vmul.f32 %v368, %v554
        %v559 = vadd.f32 %v547, %v555
        %v560 = vadd.f32 %v548, %v556
        %v561 = vadd.f32 %v549, %v557
        %v562 = vadd.f32 %v550, %v558
        %v563 = vlaneseq
        %v564 = vshrl.u32 %v563, 7
        %v565 = vsub.s32 3, %v564
        %v566 = vrot.slane %v250, %v565
        %v567 = vmul.f32 %v369, %v566
        %v568 = vmul.f32 %v370, %v566
        %v569 = vmul.f32 %v371, %v566
        %v570 = vmul.f32 %v372, %v566
        %v571 = vadd.f32 %v559, %v567
        %v572 = vadd.f32 %v560, %v568
        %v573 = vadd.f32 %v561, %v569
        %v574 = vadd.f32 %v562, %v570
        %v575 = vlaneseq
        %v576 = vshrl.u32 %v575, 7
        %v577 = vsub.s32 4, %v576
        %v578 = vrot.slane %v250, %v577
        %v579 = vmul.f32 %v373, %v578
        %v580 = vmul.f32 %v374, %v578
        %v581 = vmul.f32 %v375, %v578
        %v582 = vmul.f32 %v376, %v578
        %v583 = vadd.f32 %v571, %v579
        %v584 = vadd.f32 %v572, %v580
        %v585 = vadd.f32 %v573, %v581
        %v586 = vadd.f32 %v574, %v582
        %v587 = vlaneseq
        %v588 = vshrl.u32 %v587, 7
        %v589 = vsub.s32 5, %v588
        %v590 = vrot.slane %v250, %v589
        %v591 = vmul.f32 %v377, %v590
        %v592 = vmul.f32 %v378, %v590
        %v593 = vmul.f32 %v379, %v590
        %v594 = vmul.f32 %v380, %v590
        %v595 = vadd.f32 %v583, %v591
        %v596 = vadd.f32 %v584, %v592
        %v597 = vadd.f32 %v585, %v593
        %v598 = vadd.f32 %v586, %v594
        %v599 = vlaneseq
        %v600 = vshrl.u32 %v599, 7
        %v601 = vsub.s32 6, %v600
        %v602 = vrot.slane %v250, %v601
        %v603 = vmul.f32 %v382, %v602
        %v604 = vmul.f32 %v383, %v602
        %v605 = vmul.f32 %v384, %v602
        %v606 = vmul.f32 %v385, %v602
        %v607 = vadd.f32 %v595, %v603
        %v608 = vadd.f32 %v596, %v604
        %v609 = vadd.f32 %v597, %v605
        %v610 = vadd.f32 %v598, %v606
        %v611 = vlaneseq
        %v612 = vshrl.u32 %v611, 7
        %v613 = vsub.s32 7, %v612
        %v614 = vrot.slane %v250, %v613
        %v615 = vmul.f32 %v386, %v614
        %v616 = vmul.f32 %v387, %v614
        %v617 = vmul.f32 %v388, %v614
        %v618 = vmul.f32 %v389, %v614
        %v619 = vadd.f32 %v607, %v615
        %v620 = vadd.f32 %v608, %v616
        %v621 = vadd.f32 %v609, %v617
        %v622 = vadd.f32 %v610, %v618
        %v623 = vlaneseq
        %v624 = vshrl.u32 %v623, 7
        %v625 = vsub.s32 0, %v624
        %v626 = vrot.slane %v251, %v625
        %v627 = vmul.f32 %v390, %v626
        %v628 = vmul.f32 %v391, %v626
        %v629 = vmul.f32 %v392, %v626
        %v630 = vmul.f32 %v393, %v626
        %v631 = vadd.f32 %v619, %v627
        %v632 = vadd.f32 %v620, %v628
        %v633 = vadd.f32 %v621, %v629
        %v634 = vadd.f32 %v622, %v630
        %v635 = vlaneseq
        %v636 = vshrl.u32 %v635, 7
        %v637 = vsub.s32 1, %v636
        %v638 = vrot.slane %v254, %v637
        %v639 = vmul.f32 %v631, %v638
        %v640 = vmul.f32 %v632, %v638
        %v641 = vmul.f32 %v633, %v638
        %v642 = vmul.f32 %v634, %v638
        %v643 = vlaneseq
        %v644 = vshrl.u32 %v643, 7
        %v645 = vsub.s32 1, %v644
        %v646 = vrot.slane %v255, %v645
        %v647 = vadd.f32 %v639, %v646
        %v648 = vadd.f32 %v640, %v646
        %v649 = vadd.f32 %v641, %v646
        %v650 = vadd.f32 %v642, %v646
        %v655 = vcombine.low %v647, %v648
        %v656 = vcombine.low %v649, %v650
        %v657 = vrot.slane %v655, 7
        %v658 = vrot.slane %v656, 7
        %v659 = vsel %vm520, %v657, %v658
        %v663 = vsel %vm520, %v323, %v657
        %s664 = scalar_lea.vmem %s240, 24 [#allocation3]
        %665 = vst.msk [vmem:[%s664] sm:$0xff] %vm266, %v663
        %666 = vst.msk [vmem:[%s664 + $0x8] sm:$0xff] %vm266, %v659
        %667 = vst.msk [vmem:[%s664 + $0x10] sm:$0x1] %vm273, %v658
        %v668 = vlaneseq
        %v669 = vshrl.u32 %v668, 7
        %v670 = vsub.s32 0, %v669
        %v671 = vrot.slane %v252, %v670
        %v672 = vmul.f32 %v357, %v671
        %v673 = vmul.f32 %v358, %v671
        %v674 = vmul.f32 %v359, %v671
        %v675 = vmul.f32 %v360, %v671
        %v676 = vlaneseq
        %v677 = vshrl.u32 %v676, 7
        %v678 = vsub.s32 1, %v677
        %v679 = vrot.slane %v252, %v678
        %v680 = vmul.f32 %v361, %v679
        %v681 = vmul.f32 %v362, %v679
        %v682 = vmul.f32 %v363, %v679
        %v683 = vmul.f32 %v364, %v679
        %v684 = vadd.f32 %v672, %v680
        %v685 = vadd.f32 %v673, %v681
        %v686 = vadd.f32 %v674, %v682
        %v687 = vadd.f32 %v675, %v683
        %v688 = vlaneseq
        %v689 = vshrl.u32 %v688, 7
        %v690 = vsub.s32 2, %v689
        %v691 = vrot.slane %v252, %v690
        %v692 = vmul.f32 %v365, %v691
        %v693 = vmul.f32 %v366, %v691
        %v694 = vmul.f32 %v367, %v691
        %v695 = vmul.f32 %v368, %v691
        %v696 = vadd.f32 %v684, %v692
        %v697 = vadd.f32 %v685, %v693
        %v698 = vadd.f32 %v686, %v694
        %v699 = vadd.f32 %v687, %v695
        %v700 = vlaneseq
        %v701 = vshrl.u32 %v700, 7
        %v702 = vsub.s32 3, %v701
        %v703 = vrot.slane %v252, %v702
        %v704 = vmul.f32 %v369, %v703
        %v705 = vmul.f32 %v370, %v703
        %v706 = vmul.f32 %v371, %v703
        %v707 = vmul.f32 %v372, %v703
        %v708 = vadd.f32 %v696, %v704
        %v709 = vadd.f32 %v697, %v705
        %v710 = vadd.f32 %v698, %v706
        %v711 = vadd.f32 %v699, %v707
        %v712 = vlaneseq
        %v713 = vshrl.u32 %v712, 7
        %v714 = vsub.s32 4, %v713
        %v715 = vrot.slane %v252, %v714
        %v716 = vmul.f32 %v373, %v715
        %v717 = vmul.f32 %v374, %v715
        %v718 = vmul.f32 %v375, %v715
        %v719 = vmul.f32 %v376, %v715
        %v720 = vadd.f32 %v708, %v716
        %v721 = vadd.f32 %v709, %v717
        %v722 = vadd.f32 %v710, %v718
        %v723 = vadd.f32 %v711, %v719
        %v724 = vlaneseq
        %v725 = vshrl.u32 %v724, 7
        %v726 = vsub.s32 5, %v725
        %v727 = vrot.slane %v252, %v726
        %v728 = vmul.f32 %v377, %v727
        %v729 = vmul.f32 %v378, %v727
        %v730 = vmul.f32 %v379, %v727
        %v731 = vmul.f32 %v380, %v727
        %v732 = vadd.f32 %v720, %v728
        %v733 = vadd.f32 %v721, %v729
        %v734 = vadd.f32 %v722, %v730
        %v735 = vadd.f32 %v723, %v731
        %v736 = vlaneseq
        %v737 = vshrl.u32 %v736, 7
        %v738 = vsub.s32 6, %v737
        %v739 = vrot.slane %v252, %v738
        %v740 = vmul.f32 %v382, %v739
        %v741 = vmul.f32 %v383, %v739
        %v742 = vmul.f32 %v384, %v739
        %v743 = vmul.f32 %v385, %v739
        %v744 = vadd.f32 %v732, %v740
        %v745 = vadd.f32 %v733, %v741
        %v746 = vadd.f32 %v734, %v742
        %v747 = vadd.f32 %v735, %v743
        %v748 = vlaneseq
        %v749 = vshrl.u32 %v748, 7
        %v750 = vsub.s32 7, %v749
        %v751 = vrot.slane %v252, %v750
        %v752 = vmul.f32 %v386, %v751
        %v753 = vmul.f32 %v387, %v751
        %v754 = vmul.f32 %v388, %v751
        %v755 = vmul.f32 %v389, %v751
        %v756 = vadd.f32 %v744, %v752
        %v757 = vadd.f32 %v745, %v753
        %v758 = vadd.f32 %v746, %v754
        %v759 = vadd.f32 %v747, %v755
        %v760 = vlaneseq
        %v761 = vshrl.u32 %v760, 7
        %v762 = vsub.s32 0, %v761
        %v763 = vrot.slane %v253, %v762
        %v764 = vmul.f32 %v390, %v763
        %v765 = vmul.f32 %v391, %v763
        %v766 = vmul.f32 %v392, %v763
        %v767 = vmul.f32 %v393, %v763
        %v768 = vadd.f32 %v756, %v764
        %v769 = vadd.f32 %v757, %v765
        %v770 = vadd.f32 %v758, %v766
        %v771 = vadd.f32 %v759, %v767
        %v772 = vlaneseq
        %v773 = vshrl.u32 %v772, 7
        %v774 = vsub.s32 2, %v773
        %v775 = vrot.slane %v254, %v774
        %v776 = vmul.f32 %v768, %v775
        %v777 = vmul.f32 %v769, %v775
        %v778 = vmul.f32 %v770, %v775
        %v779 = vmul.f32 %v771, %v775
        %v780 = vlaneseq
        %v781 = vshrl.u32 %v780, 7
        %v782 = vsub.s32 2, %v781
        %v783 = vrot.slane %v255, %v782
        %v784 = vadd.f32 %v776, %v783
        %v785 = vadd.f32 %v777, %v783
        %v786 = vadd.f32 %v778, %v783
        %v787 = vadd.f32 %v779, %v783
        %v792 = vcombine.low %v784, %v785
        %v793 = vcombine.low %v786, %v787
        %v794 = vrot.slane %v792, 7
        %v795 = vrot.slane %v793, 7
        %v796 = vsel %vm520, %v794, %v795
        %v800 = vsel %vm520, %v323, %v794
        %s801 = scalar_lea.vmem %s240, 48 [#allocation3]
        %802 = vst.msk [vmem:[%s801] sm:$0xff] %vm266, %v800
        %803 = vst.msk [vmem:[%s801 + $0x8] sm:$0xff] %vm266, %v796
        %804 = vst.msk [vmem:[%s801 + $0x10] sm:$0x1] %vm273, %v795
        %s805 = sand.u32 %s156, 1
        %s806 = sand.u32 %s156, 1
        %s807 = smul.addr %s806, 72
        %s808 = scalar_lea.vmem [#allocation3], %s807
        // Predicated region
        $region45: #{vit_forward.14} parent=43 // pred_check
          %p809 = pneg %p166
        $region46: #{vit_forward.14} parent=43 // pred_check_branch
          %811 = sbr.rel (%p809) target = $region48
        $region47: #{vit_forward.14} parent=43 // pred_region
          %s812 = smul.addr %s17, 3
          %s813 = smul.addr %s812, 8
          %s814 = scalar_lea.vmem %s6, %s813
          // Predicated region
          $region49: #{vit_forward.14} parent=47 // pred_check
            _
          $region50: #{vit_forward.14} parent=47 // pred_check_branch
            %816 = sbr.rel (0) target = $region52
          $region51: #{vit_forward.14} parent=47 // pred_region
            // Predicated region
            $region53: #{vit_forward.14} parent=51 // pred_check
              _
            $region54: #{vit_forward.14} parent=51 // pred_check_branch
              %818 = sbr.rel (0) target = $region56
            $region55: #{vit_forward.14} parent=51 // pred_region
              // Predicated region
              $region68: #{vit_forward.14} parent=55 // pred_check
                _
              $region69: #{vit_forward.14} parent=55 // pred_check_branch
                %850 = sbr.rel (0) target = $region71
              $region70: #{vit_forward.14} parent=55 // pred_region
                loop: start=0, step=1, limit=1
                $region72: #{vit_forward.14} parent=70 // loop_pre_header
                  _
                $region73: #{vit_forward.14} parent=70 // loop_header
                  %s852 = sphi 0, %s856
                  %p853 = scmp.ge.s32.totalorder %s852, 1
                  %s857 = sphi %s808, %s808
                  %s858 = sphi %s814, %s814
                $region74: #{vit_forward.14} parent=70 // loop_header_branch
                  %855 = sbr.rel (%p853) target = $region78
                $region75: #{vit_forward.14} parent=70 // loop_body
                  %v859 = vld [vmem:[%s857] sm:$0xff]
                  %860 = vst [vmem:[%s858] sm:$0xff] %v859
                  %v861 = vld [vmem:[%s857 + $0x8] sm:$0xff]
                  %862 = vst [vmem:[%s858 + $0x8] sm:$0xff] %v861
                  %v863 = vld [vmem:[%s857 + $0x10] sm:$0xff]
                  %864 = vst [vmem:[%s858 + $0x10] sm:$0xff] %v863
                  %v865 = vld [vmem:[%s857 + $0x18] sm:$0xff]
                  %866 = vst [vmem:[%s858 + $0x30] sm:$0xff] %v865
                  %v867 = vld [vmem:[%s857 + $0x20] sm:$0xff]
                  %868 = vst [vmem:[%s858 + $0x38] sm:$0xff] %v867
                  %v869 = vld [vmem:[%s857 + $0x28] sm:$0xff]
                  %870 = vst [vmem:[%s858 + $0x40] sm:$0xff] %v869
                  %v871 = vld [vmem:[%s857 + $0x30] sm:$0xff]
                  %872 = vst [vmem:[%s858 + $0x60] sm:$0xff] %v871
                  %v873 = vld [vmem:[%s857 + $0x38] sm:$0xff]
                  %874 = vst [vmem:[%s858 + $0x68] sm:$0xff] %v873
                  %v875 = vld [vmem:[%s857 + $0x40] sm:$0xff]
                  %876 = vst [vmem:[%s858 + $0x70] sm:$0xff] %v875
                $region76: #{vit_forward.14} parent=70 // loop_footer
                  %s856 = sadd.s32 1, %s852
                $region77: #{vit_forward.14} parent=70 // loop_footer_branch
                  %851 = sbr.rel target = $region73
                $region78: #{vit_forward.14} parent=70 // loop_exit
                  _
              $region71: #{vit_forward.14} parent=55 // pred_fallthru
                _
              // Predicated region
              $region79: #{vit_forward.14} parent=55 // pred_check
                _
              $region80: #{vit_forward.14} parent=55 // pred_check_branch
                %878 = sbr.rel target = $region82
              $region81: #{vit_forward.14} parent=55 // pred_region
                _
              $region82: #{vit_forward.14} parent=55 // pred_fallthru
                _
            $region56: #{vit_forward.14} parent=51 // pred_fallthru
              _
            // Predicated region
            $region57: #{vit_forward.14} parent=51 // pred_check
              _
            $region58: #{vit_forward.14} parent=51 // pred_check_branch
              %820 = sbr.rel target = $region60
            $region59: #{vit_forward.14} parent=51 // pred_region
              %s822 = ssub.s32 256, 1
              loop: start=0, step=1, limit=1
              $region61: #{vit_forward.14} parent=59 // loop_pre_header
                _
              $region62: #{vit_forward.14} parent=59 // loop_header
                %s824 = sphi 0, %s828
                %p825 = scmp.ge.s32.totalorder %s824, 1
                %s829 = sphi %s808, %s808
                %s830 = sphi %s814, %s814
              $region63: #{vit_forward.14} parent=59 // loop_header_branch
                %827 = sbr.rel (%p825) target = $region67
              $region64: #{vit_forward.14} parent=59 // loop_body
                %v831 = vld [vmem:[%s829] sm:%s822]
                %832 = vst [vmem:[%s830] sm:%s822] %v831
                %v833 = vld [vmem:[%s829 + $0x8] sm:%s822]
                %834 = vst [vmem:[%s830 + $0x8] sm:%s822] %v833
                %v835 = vld [vmem:[%s829 + $0x10] sm:%s822]
                %836 = vst [vmem:[%s830 + $0x10] sm:%s822] %v835
                %v837 = vld [vmem:[%s829 + $0x18] sm:%s822]
                %838 = vst [vmem:[%s830 + $0x30] sm:%s822] %v837
                %v839 = vld [vmem:[%s829 + $0x20] sm:%s822]
                %840 = vst [vmem:[%s830 + $0x38] sm:%s822] %v839
                %v841 = vld [vmem:[%s829 + $0x28] sm:%s822]
                %842 = vst [vmem:[%s830 + $0x40] sm:%s822] %v841
                %v843 = vld [vmem:[%s829 + $0x30] sm:%s822]
                %844 = vst [vmem:[%s830 + $0x60] sm:%s822] %v843
                %v845 = vld [vmem:[%s829 + $0x38] sm:%s822]
                %846 = vst [vmem:[%s830 + $0x68] sm:%s822] %v845
                %v847 = vld [vmem:[%s829 + $0x40] sm:%s822]
                %848 = vst [vmem:[%s830 + $0x70] sm:%s822] %v847
              $region65: #{vit_forward.14} parent=59 // loop_footer
                %s828 = sadd.s32 1, %s824
              $region66: #{vit_forward.14} parent=59 // loop_footer_branch
                %823 = sbr.rel target = $region62
              $region67: #{vit_forward.14} parent=59 // loop_exit
                _
            $region60: #{vit_forward.14} parent=51 // pred_fallthru
              _
          $region52: #{vit_forward.14} parent=47 // pred_fallthru
            _
          %879 = vnop
        $region48: #{vit_forward.14} parent=43 // pred_fallthru
          _
      $region44: #{vit_forward.14} parent=5 // pred_fallthru
        _
      %p880 = scmp.le.s32.totalorder 2, %s12
      // Predicated region
      $region83: #{vit_forward.14} parent=5 // pred_check
        %p881 = pneg %p880
      $region84: #{vit_forward.14} parent=5 // pred_check_branch
        %883 = sbr.rel (%p881) target = $region86
      $region85: #{vit_forward.14} parent=5 // pred_region
        %s884 = ssub.s32 %s12, 2
        // Predicated region
        $region87: #{vit_forward.14} parent=85 // pred_check
          %p885 = pneg %p172
        $region88: #{vit_forward.14} parent=85 // pred_check_branch
          %887 = sbr.rel (%p885) target = $region90
        $region89: #{vit_forward.14} parent=85 // pred_region
          %s888 = sand.u32 %s157, 1
          %s889 = sand.u32 %s157, 1
          %s890 = smul.addr %s889, 72
          %s891 = scalar_lea.vmem [#allocation3], %s890
        $region90: #{vit_forward.14} parent=85 // pred_fallthru
          _
      $region86: #{vit_forward.14} parent=5 // pred_fallthru
        _
    $region6: #{vit_forward.14} parent=1 // loop_footer
      %s16 = sadd.s32 1, %s12
    $region7: #{vit_forward.14} parent=1 // loop_footer_branch
      %11 = sbr.rel target = $region3
    $region8: #{vit_forward.14} parent=1 // loop_exit
      _

// kernel: vit_forward.16
$region0: #{vit_forward.16}
  #allocation0 [shape = 'u32[]', space=smem, size = 0x4, offset = 0x4, fixed_abs, tag = 'smem constant byte address 0x4 - core index']
  #allocation1 [shape = 'u32[144,128]{1,0:T(1,128)}', space=vmem, size = 0x12000, scoped, tag = 'internal scratch']
  %s0 = inlined_call_operand.vmem [shape: f32[3,2,17,32], index: 0, kind: input, shape index: {}]
  %s1 = inlined_call_operand.vmem [shape: f32[2,17,32], index: 1, kind: output, shape index: {}]
  %s2 = sld [smem:[#allocation0]]
  $region75: #{vit_forward.16} parent=0
    _
  %s4 = ssub.s32 1, %s2
  %s5 = scalar_select 0, %s4, %s2
  $region1: #{vit_forward.16} parent=0
    #allocation2 [shape = 'u8[73728]{0}', space=vmem, size = 0x12000, scoped, tag = 'input window, operand 0']
    loop: start=0, step=1, limit=4
    $region2: #{vit_forward.16} parent=1 // loop_pre_header
      _
    $region3: #{vit_forward.16} parent=1 // loop_header
      %s7 = sphi 0, %s11
      %p8 = scmp.ge.s32.totalorder %s7, 4
      %s17 = sphi 0, %s19
      %s20 = sphi 0, %s17
      %s21 = sphi 0, %s20
      %s37 = sphi 0, %s21
      %s43 = sphi 0, %s45
      %s46 = sphi 0, %s43
      %s47 = sphi 0, %s46
      %s63 = sphi 0, %s47
    $region4: #{vit_forward.16} parent=1 // loop_header_branch
      %10 = sbr.rel (%p8) target = $region8
    $region5: #{vit_forward.16} parent=1 // loop_body
      %s12 = ssub.s32 %s7, 1
      %s13 = ssub.s32 %s7, 2
      %s14 = sadd.s32 %s7, 1
      %s15 = ssub.s32 %s7, %s14
      %p16 = scmp.eq.s32.totalorder %s15, 0
      %s18 = sadd.s32 %s17, 1
      %s19 = scalar_select %p16, %s17, %s18
      %p22 = pneg %p16
      %p23 = scmp.eq.s32.totalorder %s7, 1
      %p24 = por %p22, %p23
      %p25 = scmp.ne.s32.totalorder %s17, %s20
      %p26 = scmp.eq.s32.totalorder %s7, 0
      %p27 = por %p25, %p26
      %p28 = scmp.ne.s32.totalorder %s17, %s20
      %p29 = scmp.eq.s32.totalorder %s12, 1
      %p30 = por %p28, %p29
      %p31 = scmp.ne.s32.totalorder %s20, %s21
      %p32 = scmp.eq.s32.totalorder %s12, 0
      %p33 = por %p31, %p32
      %p34 = scmp.ne.s32.totalorder %s20, %s21
      %p35 = scmp.eq.s32.totalorder %s13, 1
      %p36 = por %p34, %p35
      %p38 = scmp.ne.s32.totalorder %s21, %s37
      %p39 = scmp.eq.s32.totalorder %s13, 0
      %p40 = por %p38, %p39
      %s41 = ssub.s32 %s7, %s14
      %p42 = scmp.eq.s32.totalorder %s41, 0
      %s44 = sadd.s32 %s43, 1
      %s45 = scalar_select %p42, %s43, %s44
      %p48 = pneg %p42
      %p49 = scmp.eq.s32.totalorder %s7, 1
      %p50 = por %p48, %p49
      %p51 = scmp.ne.s32.totalorder %s43, %s46
      %p52 = scmp.eq.s32.totalorder %s7, 0
      %p53 = por %p51, %p52
      %p54 = scmp.ne.s32.totalorder %s43, %s46
      %p55 = scmp.eq.s32.totalorder %s12, 1
      %p56 = por %p54, %p55
      %p57 = scmp.ne.s32.totalorder %s46, %s47
      %p58 = scmp.eq.s32.totalorder %s12, 0
      %p59 = por %p57, %p58
      %p60 = scmp.ne.s32.totalorder %s46, %s47
      %p61 = scmp.eq.s32.totalorder %s13, 1
      %p62 = por %p60, %p61
      %p64 = scmp.ne.s32.totalorder %s47, %s63
      %p65 = scmp.eq.s32.totalorder %s13, 0
      %p66 = por %p64, %p65
      %p67 = scmp.le.s32.totalorder 1, %s7
      %p68 = scmp.lt.s32.totalorder %s7, 3
      %p69 = pnand %p67, %p68
      %p70 = pneg %p69
      // Predicated region
      $region9: #{vit_forward.16} parent=5 // pred_check
        _
      $region10: #{vit_forward.16} parent=5 // pred_check_branch
        %72 = sbr.rel (%p69) target = $region12
      $region11: #{vit_forward.16} parent=5 // pred_region
        %s73 = ssub.s32 %s7, 1
      $region12: #{vit_forward.16} parent=5 // pred_fallthru
        _
      %p74 = scmp.lt.s32.totalorder %s7, 2
      // Predicated region
      $region13: #{vit_forward.16} parent=5 // pred_check
        %p75 = pneg %p74
      $region14: #{vit_forward.16} parent=5 // pred_check_branch
        %77 = sbr.rel (%p75) target = $region16
      $region15: #{vit_forward.16} parent=5 // pred_region
        // Predicated region
        $region17: #{vit_forward.16} parent=15 // pred_check
          %p78 = pneg %p27
        $region18: #{vit_forward.16} parent=15 // pred_check_branch
          %80 = sbr.rel (%p78) target = $region20
        $region19: #{vit_forward.16} parent=15 // pred_region
          %s81 = sand.u32 %s17, 1
          %s82 = sand.u32 %s17, 1
          %s83 = smul.addr %s82, 72
          %s84 = scalar_lea.vmem [#allocation2], %s83
          %s85 = smul.addr %s7, 3
          %s86 = smul.addr %s85, 8
          %s87 = scalar_lea.vmem %s0, %s86
          // Predicated region
          $region21: #{vit_forward.16} parent=19 // pred_check
            _
          $region22: #{vit_forward.16} parent=19 // pred_check_branch
            %89 = sbr.rel (0) target = $region24
          $region23: #{vit_forward.16} parent=19 // pred_region
            // Predicated region
            $region25: #{vit_forward.16} parent=23 // pred_check
              _
            $region26: #{vit_forward.16} parent=23 // pred_check_branch
              %91 = sbr.rel (0) target = $region28
            $region27: #{vit_forward.16} parent=23 // pred_region
              // Predicated region
              $region40: #{vit_forward.16} parent=27 // pred_check
                _
              $region41: #{vit_forward.16} parent=27 // pred_check_branch
                %123 = sbr.rel (0) target = $region43
              $region42: #{vit_forward.16} parent=27 // pred_region
                loop: start=0, step=1, limit=1
                $region44: #{vit_forward.16} parent=42 // loop_pre_header
                  _
                $region45: #{vit_forward.16} parent=42 // loop_header
                  %s125 = sphi 0, %s129
                  %p126 = scmp.ge.s32.totalorder %s125, 1
                  %s130 = sphi %s87, %s87
                  %s131 = sphi %s84, %s84
                $region46: #{vit_forward.16} parent=42 // loop_header_branch
                  %128 = sbr.rel (%p126) target = $region50
                $region47: #{vit_forward.16} parent=42 // loop_body
                  %v132 = vld [vmem:[%s130] sm:$0xff]
                  %133 = vst [vmem:[%s131] sm:$0xff] %v132
                  %v134 = vld [vmem:[%s130 + $0x8] sm:$0xff]
                  %135 = vst [vmem:[%s131 + $0x8] sm:$0xff] %v134
                  %v136 = vld [vmem:[%s130 + $0x10] sm:$0xff]
                  %137 = vst [vmem:[%s131 + $0x10] sm:$0xff] %v136
                  %v138 = vld [vmem:[%s130 + $0x30] sm:$0xff]
                  %139 = vst [vmem:[%s131 + $0x18] sm:$0xff] %v138
                  %v140 = vld [vmem:[%s130 + $0x38] sm:$0xff]
                  %141 = vst [vmem:[%s131 + $0x20] sm:$0xff] %v140
                  %v142 = vld [vmem:[%s130 + $0x40] sm:$0xff]
                  %143 = vst [vmem:[%s131 + $0x28] sm:$0xff] %v142
                  %v144 = vld [vmem:[%s130 + $0x60] sm:$0xff]
                  %145 = vst [vmem:[%s131 + $0x30] sm:$0xff] %v144
                  %v146 = vld [vmem:[%s130 + $0x68] sm:$0xff]
                  %147 = vst [vmem:[%s131 + $0x38] sm:$0xff] %v146
                  %v148 = vld [vmem:[%s130 + $0x70] sm:$0xff]
                  %149 = vst [vmem:[%s131 + $0x40] sm:$0xff] %v148
                $region48: #{vit_forward.16} parent=42 // loop_footer
                  %s129 = sadd.s32 1, %s125
                $region49: #{vit_forward.16} parent=42 // loop_footer_branch
                  %124 = sbr.rel target = $region45
                $region50: #{vit_forward.16} parent=42 // loop_exit
                  _
              $region43: #{vit_forward.16} parent=27 // pred_fallthru
                _
              // Predicated region
              $region51: #{vit_forward.16} parent=27 // pred_check
                _
              $region52: #{vit_forward.16} parent=27 // pred_check_branch
                %151 = sbr.rel target = $region54
              $region53: #{vit_forward.16} parent=27 // pred_region
                _
              $region54: #{vit_forward.16} parent=27 // pred_fallthru
                _
            $region28: #{vit_forward.16} parent=23 // pred_fallthru
              _
            // Predicated region
            $region29: #{vit_forward.16} parent=23 // pred_check
              _
            $region30: #{vit_forward.16} parent=23 // pred_check_branch
              %93 = sbr.rel target = $region32
            $region31: #{vit_forward.16} parent=23 // pred_region
              %s95 = ssub.s32 256, 1
              loop: start=0, step=1, limit=1
              $region33: #{vit_forward.16} parent=31 // loop_pre_header
                _
              $region34: #{vit_forward.16} parent=31 // loop_header
                %s97 = sphi 0, %s101
                %p98 = scmp.ge.s32.totalorder %s97, 1
                %s102 = sphi %s87, %s87
                %s103 = sphi %s84, %s84
              $region35: #{vit_forward.16} parent=31 // loop_header_branch
                %100 = sbr.rel (%p98) target = $region39
              $region36: #{vit_forward.16} parent=31 // loop_body
                %v104 = vld [vmem:[%s102] sm:%s95]
                %105 = vst [vmem:[%s103] sm:%s95] %v104
                %v106 = vld [vmem:[%s102 + $0x8] sm:%s95]
                %107 = vst [vmem:[%s103 + $0x8] sm:%s95] %v106
                %v108 = vld [vmem:[%s102 + $0x10] sm:%s95]
                %109 = vst [vmem:[%s103 + $0x10] sm:%s95] %v108
                %v110 = vld [vmem:[%s102 + $0x30] sm:%s95]
                %111 = vst [vmem:[%s103 + $0x18] sm:%s95] %v110
                %v112 = vld [vmem:[%s102 + $0x38] sm:%s95]
                %113 = vst [vmem:[%s103 + $0x20] sm:%s95] %v112
                %v114 = vld [vmem:[%s102 + $0x40] sm:%s95]
                %115 = vst [vmem:[%s103 + $0x28] sm:%s95] %v114
                %v116 = vld [vmem:[%s102 + $0x60] sm:%s95]
                %117 = vst [vmem:[%s103 + $0x30] sm:%s95] %v116
                %v118 = vld [vmem:[%s102 + $0x68] sm:%s95]
                %119 = vst [vmem:[%s103 + $0x38] sm:%s95] %v118
                %v120 = vld [vmem:[%s102 + $0x70] sm:%s95]
                %121 = vst [vmem:[%s103 + $0x40] sm:%s95] %v120
              $region37: #{vit_forward.16} parent=31 // loop_footer
                %s101 = sadd.s32 1, %s97
              $region38: #{vit_forward.16} parent=31 // loop_footer_branch
                %96 = sbr.rel target = $region34
              $region39: #{vit_forward.16} parent=31 // loop_exit
                _
            $region32: #{vit_forward.16} parent=23 // pred_fallthru
              _
          $region24: #{vit_forward.16} parent=19 // pred_fallthru
            _
          %152 = vnop
        $region20: #{vit_forward.16} parent=15 // pred_fallthru
          _
      $region16: #{vit_forward.16} parent=5 // pred_fallthru
        _
      %p153 = scmp.le.s32.totalorder 1, %s7
      %p154 = scmp.lt.s32.totalorder %s7, 3
      %p155 = pnand %p153, %p154
      %p156 = pneg %p155
      // Predicated region
      $region55: #{vit_forward.16} parent=5 // pred_check
        _
      $region56: #{vit_forward.16} parent=5 // pred_check_branch
        %158 = sbr.rel (%p155) target = $region58
      $region57: #{vit_forward.16} parent=5 // pred_region
        %s159 = ssub.s32 %s7, 1
        %s160 = sand.u32 %s20, 1
        %s161 = sand.u32 %s20, 1
        %s162 = smul.addr %s161, 72
        %s163 = scalar_lea.vmem [#allocation2], %s162
        // Predicated region
        $region59: #{vit_forward.16} parent=57 // pred_check
          %p164 = pneg %p33
        $region60: #{vit_forward.16} parent=57 // pred_check_branch
          %166 = sbr.rel (%p164) target = $region62
        $region61: #{vit_forward.16} parent=57 // pred_region
          _
        $region62: #{vit_forward.16} parent=57 // pred_fallthru
          _
        %s167 = sand.u32 %s20, 1
        %s168 = sand.u32 %s20, 1
        %s169 = smul.addr %s168, 72
        %s170 = scalar_lea.vmem [#allocation2], %s169
        %p171 = pneg %p33
        %p172 = pneg %p30
        %p173 = pneg %p59
        %p174 = pneg %p56
        %p175 = scmp.lt.s32.totalorder %s12, 1
        %s176 = scalar_select %p175, %s12, 1
        %s177 = smul.addr %s176, 3
        %s178 = smul.addr %s177, 8
        %s179 = scalar_lea.vmem %s1, %s178
        %p180 = scmp.lt.s32.totalorder %s12, 1
        %s181 = scalar_select %p180, %s12, 1
        %s182 = smul.addr %s181, 3
        %s183 = smul.addr %s182, 8
        %s184 = scalar_lea.vmem %s1, %s183
        %v185 = vld [vmem:[%s163] sm:$0xff]
        %v186 = vld [vmem:[%s163 + $0x8] sm:$0xff]
        %v187 = vld [vmem:[%s163 + $0x10] sm:$0x1]
        %s188 = scalar_lea.vmem %s163, 24 [#allocation2]
        %v189 = vld [vmem:[%s188] sm:$0xff]
        %v190 = vld [vmem:[%s188 + $0x8] sm:$0xff]
        %v191 = vld [vmem:[%s188 + $0x10] sm:$0x1]
        %s192 = scalar_lea.vmem %s163, 48 [#allocation2]
        %v193 = vld [vmem:[%s192] sm:$0xff]
        %v194 = vld [vmem:[%s192 + $0x8] sm:$0xff]
        %v195 = vld [vmem:[%s192 + $0x10] sm:$0x1]
        %vm196 = vcmask 64512
        %v198 = vsel %vm196, %v185, 0
        %v201 = vsel %vm196, %v186, 0
        %v204 = vsel %vm196, %v187, 0
        %v207 = vsel %vm196, %v189, 0
        %v210 = vsel %vm196, %v190, 0
        %v213 = vsel %vm196, %v191, 0
        %215 = vmatprep.subr.mxu0 0.0
        %216 = vmatpush1.xpose.msra.mxu0 0.0
        %217 = vmatprep.subr.mxu0 0.0
        %218 = vmatpush1.xpose.msra.mxu0 0.0
        %219 = vmatprep.subr.mxu0 0.0
        %220 = vmatpush1.xpose.msra.mxu0 0.0
        %221 = vmatprep.subr.mxu0 0.0
        %222 = vmatpush1.xpose.msra.mxu0 0.0
        %223 = vmatprep.subr.mxu0 0.0
        %224 = vmatpush1.xpose.msra.mxu0 0.0
        %225 = vmatprep.subr.mxu0 0.0
        %226 = vmatpush1.xpose.msra.mxu0 0.0
        %227 = vmatprep.subr.mxu0 0.0
        %228 = vmatpush1.xpose.msra.mxu0 0.0
        %229 = vmatprep.subr.mxu0 0.0
        %230 = vmatpush1.xpose.msra.mxu0 0.0
        %231 = vmatprep.subr.mxu0 0.0
        %232 = vmatpush1.xpose.msra.mxu0 0.0
        %233 = vmatprep.subr.mxu0 0.0
        %234 = vmatpush1.xpose.msra.mxu0 0.0
        %235 = vmatprep.subr.mxu0 0.0
        %236 = vmatpush1.xpose.msra.mxu0 0.0
        %237 = vmatprep.subr.mxu0 0.0
        %238 = vmatpush1.xpose.msra.mxu0 0.0
        %239 = vmatprep.subr.mxu0 0.0
        %240 = vmatpush1.xpose.msra.mxu0 0.0
        %241 = vmatprep.subr.mxu0 0.0
        %242 = vmatpush1.xpose.msra.mxu0 %v213
        %243 = vmatprep.subr.mxu0 0.0
        %244 = vmatpush1.xpose.msra.mxu0 %v210
        %245 = vmatprep.subr.mxu0 0.0
        %246 = vmatpush1.xpose.msra.mxu0 %v207
        %247 = vmatprep.subr.mxu0 0.0
        %248 = vmatpush2.xpose.msra.mxu0 0.0
        %249 = vmatprep.subr.mxu0 0.0
        %250 = vmatpush2.xpose.msra.mxu0 0.0
        %251 = vmatprep.subr.mxu0 0.0
        %252 = vmatpush2.xpose.msra.mxu0 0.0
        %253 = vmatprep.subr.mxu0 0.0
        %254 = vmatpush2.xpose.msra.mxu0 0.0
        %255 = vmatprep.subr.mxu0 0.0
        %256 = vmatpush2.xpose.msra.mxu0 0.0
        %257 = vmatprep.subr.mxu0 0.0
        %258 = vmatpush2.xpose.msra.mxu0 0.0
        %259 = vmatprep.subr.mxu0 0.0
        %260 = vmatpush2.xpose.msra.mxu0 0.0
        %261 = vmatprep.subr.mxu0 0.0
        %262 = vmatpush2.xpose.msra.mxu0 0.0
        %263 = vmatprep.subr.mxu0 0.0
        %264 = vmatpush2.xpose.msra.mxu0 0.0
        %265 = vmatprep.subr.mxu0 0.0
        %266 = vmatpush2.xpose.msra.mxu0 0.0
        %267 = vmatprep.subr.mxu0 0.0
        %268 = vmatpush2.xpose.msra.mxu0 0.0
        %269 = vmatprep.subr.mxu0 0.0
        %270 = vmatpush2.xpose.msra.mxu0 0.0
        %271 = vmatprep.subr.mxu0 0.0
        %272 = vmatpush2.xpose.msra.mxu0 0.0
        %273 = vmatprep.subr.mxu0 0.0
        %274 = vmatpush2.xpose.msra.mxu0 0.0
        %275 = vmatprep.subr.mxu0 0.0
        %276 = vmatpush2.xpose.msra.mxu0 0.0
        %277 = vmatprep.subr.mxu0 0.0
        %278 = vmatpush2.xpose.msra.mxu0 0.0
        %279 = vmatprep.mubr.f32.mxu0 0.0
        %280 = vmatmul.mubr.f32.gmra.mxu0 %v198
        %v281 = vpop.f32.mrf.mxu0
        %v282 = vadd.f32 0.0, %v281
        %v283 = vpop.f32.mrf.mxu0
        %284 = vmatprep.mubr.f32.mxu0 0.0
        %285 = vmatmul.mubr.f32.gmra.mxu0 %v201
        %v286 = vpop.f32.mrf.mxu0
        %v287 = vadd.f32 0.0, %v286
        %v288 = vpop.f32.mrf.mxu0
        %289 = vmatprep.mubr.f32.mxu0 0.0
        %290 = vmatmul.mubr.f32.gmra.mxu0 %v204
        %v291 = vpop.f32.mrf.mxu0
        %v292 = vadd.f32 0.0, %v291
        %v293 = vpop.f32.mrf.mxu0
        %294 = vdwg.mxu0
        %v295 = vmul.f32 %v282, 0.17677669
        %v296 = vmul.f32 %v287, 0.17677669
        %v297 = vmul.f32 %v292, 0.17677669
        %vm298 = vcmask 138240
        %v299 = vsel %vm298, %v295, -inf
        %300 = vmax.xlane.f32.xlu0 %v299
        %v301 = vpop.xlane.xlu0 %300
        %v302 = vsel %vm298, %v296, -inf
        %303 = vmax.xlane.f32.xlu0 %v302
        %v304 = vpop.xlane.xlu0 %303
        %vm305 = vcmask 131072
        %v306 = vsel %vm305, %v297, -inf
        %307 = vmax.xlane.f32.xlu0 %v306
        %v308 = vpop.xlane.xlu0 %307
        %v309 = vsub.f32 %v295, %v301
        %v310 = vsub.f32 %v296, %v304
        %v311 = vsub.f32 %v297, %v308
        %v312 = vmul.f32 %v309, 1.442695
        %v313 = vpow.pop %v312
        %v314 = vmul.f32 %v310, 1.442695
        %v315 = vpow.pop %v314
        %v316 = vmul.f32 %v311, 1.442695
        %v317 = vpow.pop %v316
        %v318 = vsel %vm298, %v313, 0.0
        %319 = vadd.xlane.f32.xlu0 %v318
        %v320 = vpop.xlane.xlu0 %319
        %v321 = vsel %vm298, %v315, 0.0
        %322 = vadd.xlane.f32.xlu0 %v321
        %v323 = vpop.xlane.xlu0 %322
        %v324 = vsel %vm305, %v317, 0.0
        %325 = vadd.xlane.f32.xlu0 %v324
        %v326 = vpop.xlane.xlu0 %325
        %v327 = vrcp.pop %v320
        %v328 = vmul.f32 %v313, %v327
        %v329 = vrcp.pop %v323
        %v330 = vmul.f32 %v315, %v329
        %v331 = vrcp.pop %v326
        %v332 = vmul.f32 %v317, %v331
        %v334 = vsel %vm298, %v328, 0
        %v337 = vsel %vm298, %v330, 0
        %v340 = vsel %vm298, %v332, 0
        %vm342 = vcmask 1040384
        %v344 = vsel %vm342, %v195, 0
        %346 = vmatprep.subr.mxu0 0.0
        %347 = vmatpush1.msra.mxu0 0.0
        %348 = vmatprep.subr.mxu0 0.0
        %349 = vmatpush1.msra.mxu0 0.0
        %350 = vmatprep.subr.mxu0 0.0
        %351 = vmatpush1.msra.mxu0 0.0
        %352 = vmatprep.subr.mxu0 0.0
        %353 = vmatpush1.msra.mxu0 0.0
        %354 = vmatprep.subr.mxu0 0.0
        %355 = vmatpush1.msra.mxu0 0.0
        %356 = vmatprep.subr.mxu0 0.0
        %357 = vmatpush1.msra.mxu0 0.0
        %358 = vmatprep.subr.mxu0 0.0
        %359 = vmatpush1.msra.mxu0 0.0
        %360 = vmatprep.subr.mxu0 0.0
        %361 = vmatpush1.msra.mxu0 0.0
        %362 = vmatprep.subr.mxu0 0.0
        %363 = vmatpush1.msra.mxu0 0.0
        %364 = vmatprep.subr.mxu0 0.0
        %365 = vmatpush1.msra.mxu0 0.0
        %366 = vmatprep.subr.mxu0 0.0
        %367 = vmatpush1.msra.mxu0 0.0
        %368 = vmatprep.subr.mxu0 0.0
        %369 = vmatpush1.msra.mxu0 0.0
        %370 = vmatprep.subr.mxu0 0.0
        %371 = vmatpush1.msra.mxu0 0.0
        %372 = vmatprep.subr.mxu0 0.0
        %373 = vmatpush1.msra.mxu0 %v344
        %374 = vmatprep.subr.mxu0 0.0
        %375 = vmatpush1.msra.mxu0 %v194
        %376 = vmatprep.subr.mxu0 0.0
        %377 = vmatpush1.msra.mxu0 %v193
        %378 = vmatprep.subr.mxu0 0.0
        %379 = vmatpush2.msra.mxu0 0.0
        %380 = vmatprep.subr.mxu0 0.0
        %381 = vmatpush2.msra.mxu0 0.0
        %382 = vmatprep.subr.mxu0 0.0
        %383 = vmatpush2.msra.mxu0 0.0
        %384 = vmatprep.subr.mxu0 0.0
        %385 = vmatpush2.msra.mxu0 0.0
        %386 = vmatprep.subr.mxu0 0.0
        %387 = vmatpush2.msra.mxu0 0.0
        %388 = vmatprep.subr.mxu0 0.0
        %389 = vmatpush2.msra.mxu0 0.0
        %390 = vmatprep.subr.mxu0 0.0
        %391 = vmatpush2.msra.mxu0 0.0
        %392 = vmatprep.subr.mxu0 0.0
        %393 = vmatpush2.msra.mxu0 0.0
        %394 = vmatprep.subr.mxu0 0.0
        %395 = vmatpush2.msra.mxu0 0.0
        %396 = vmatprep.subr.mxu0 0.0
        %397 = vmatpush2.msra.mxu0 0.0
        %398 = vmatprep.subr.mxu0 0.0
        %399 = vmatpush2.msra.mxu0 0.0
        %400 = vmatprep.subr.mxu0 0.0
        %401 = vmatpush2.msra.mxu0 0.0
        %402 = vmatprep.subr.mxu0 0.0
        %403 = vmatpush2.msra.mxu0 0.0
        %404 = vmatprep.subr.mxu0 0.0
        %405 = vmatpush2.msra.mxu0 0.0
        %406 = vmatprep.subr.mxu0 0.0
        %407 = vmatpush2.msra.mxu0 0.0
        %408 = vmatprep.subr.mxu0 0.0
        %409 = vmatpush2.msra.mxu0 0.0
        %410 = vmatprep.mubr.f32.mxu0 0.0
        %411 = vmatmul.mubr.f32.gmra.mxu0 %v334
        %v412 = vpop.f32.mrf.mxu0
        %v413 = vadd.f32 0.0, %v412
        %v414 = vpop.f32.mrf.mxu0
        %415 = vmatprep.mubr.f32.mxu0 0.0
        %416 = vmatmul.mubr.f32.gmra.mxu0 %v337
        %v417 = vpop.f32.mrf.mxu0
        %v418 = vadd.f32 0.0, %v417
        %v419 = vpop.f32.mrf.mxu0
        %420 = vmatprep.mubr.f32.mxu0 0.0
        %421 = vmatmul.mubr.f32.gmra.mxu0 %v340
        %v422 = vpop.f32.mrf.mxu0
        %v423 = vadd.f32 0.0, %v422
        %v424 = vpop.f32.mrf.mxu0
        %425 = vdwg.mxu0
        %426 = vrot.lane.b32.xlu0 %v185, 120
        %v427 = vpop.permute.xlu0 %426
        %428 = vrot.lane.b32.xlu0 %v186, 120
        %v429 = vpop.permute.xlu0 %428
        %430 = vrot.lane.b32.xlu0 %v187, 120
        %v431 = vpop.permute.xlu0 %430
        %432 = vrot.lane.b32.xlu0 %v189, 120
        %v433 = vpop.permute.xlu0 %432
        %434 = vrot.lane.b32.xlu0 %v190, 120
        %v435 = vpop.permute.xlu0 %434
        %436 = vrot.lane.b32.xlu0 %v191, 120
        %v437 = vpop.permute.xlu0 %436
        %v438 = vsel %vm196, %v427, 0
        %v440 = vsel %vm196, %v429, 0
        %v442 = vsel %vm196, %v431, 0
        %v444 = vsel %vm196, %v433, 0
        %v446 = vsel %vm196, %v435, 0
        %v448 = vsel %vm196, %v437, 0
        %450 = vmatprep.subr.mxu0 0.0
        %451 = vmatpush1.xpose.msra.mxu0 0.0
        %452 = vmatprep.subr.mxu0 0.0
        %453 = vmatpush1.xpose.msra.mxu0 0.0
        %454 = vmatprep.subr.mxu0 0.0
        %455 = vmatpush1.xpose.msra.mxu0 0.0
        %456 = vmatprep.subr.mxu0 0.0
        %457 = vmatpush1.xpose.msra.mxu0 0.0
        %458 = vmatprep.subr.mxu0 0.0
        %459 = vmatpush1.xpose.msra.mxu0 0.0
        %460 = vmatprep.subr.mxu0 0.0
        %461 = vmatpush1.xpose.msra.mxu0 0.0
        %462 = vmatprep.subr.mxu0 0.0
        %463 = vmatpush1.xpose.msra.mxu0 0.0
        %464 = vmatprep.subr.mxu0 0.0
        %465 = vmatpush1.xpose.msra.mxu0 0.0
        %466 = vmatprep.subr.mxu0 0.0
        %467 = vmatpush1.xpose.msra.mxu0 0.0
        %468 = vmatprep.subr.mxu0 0.0
        %469 = vmatpush1.xpose.msra.mxu0 0.0
        %470 = vmatprep.subr.mxu0 0.0
        %471 = vmatpush1.xpose.msra.mxu0 0.0
        %472 = vmatprep.subr.mxu0 0.0
        %473 = vmatpush1.xpose.msra.mxu0 0.0
        %474 = vmatprep.subr.mxu0 0.0
        %475 = vmatpush1.xpose.msra.mxu0 0.0
        %476 = vmatprep.subr.mxu0 0.0
        %477 = vmatpush1.xpose.msra.mxu0 %v448
        %478 = vmatprep.subr.mxu0 0.0
        %479 = vmatpush1.xpose.msra.mxu0 %v446
        %480 = vmatprep.subr.mxu0 0.0
        %481 = vmatpush1.xpose.msra.mxu0 %v444
        %482 = vmatprep.subr.mxu0 0.0
        %483 = vmatpush2.xpose.msra.mxu0 0.0
        %484 = vmatprep.subr.mxu0 0.0
        %485 = vmatpush2.xpose.msra.mxu0 0.0
        %486 = vmatprep.subr.mxu0 0.0
        %487 = vmatpush2.xpose.msra.mxu0 0.0
        %488 = vmatprep.subr.mxu0 0.0
        %489 = vmatpush2.xpose.msra.mxu0 0.0
        %490 = vmatprep.subr.mxu0 0.0
        %491 = vmatpush2.xpose.msra.mxu0 0.0
        %492 = vmatprep.subr.mxu0 0.0
        %493 = vmatpush2.xpose.msra.mxu0 0.0
        %494 = vmatprep.subr.mxu0 0.0
        %495 = vmatpush2.xpose.msra.mxu0 0.0
        %496 = vmatprep.subr.mxu0 0.0
        %497 = vmatpush2.xpose.msra.mxu0 0.0
        %498 = vmatprep.subr.mxu0 0.0
        %499 = vmatpush2.xpose.msra.mxu0 0.0
        %500 = vmatprep.subr.mxu0 0.0
        %501 = vmatpush2.xpose.msra.mxu0 0.0
        %502 = vmatprep.subr.mxu0 0.0
        %503 = vmatpush2.xpose.msra.mxu0 0.0
        %504 = vmatprep.subr.mxu0 0.0
        %505 = vmatpush2.xpose.msra.mxu0 0.0
        %506 = vmatprep.subr.mxu0 0.0
        %507 = vmatpush2.xpose.msra.mxu0 0.0
        %508 = vmatprep.subr.mxu0 0.0
        %509 = vmatpush2.xpose.msra.mxu0 0.0
        %510 = vmatprep.subr.mxu0 0.0
        %511 = vmatpush2.xpose.msra.mxu0 0.0
        %512 = vmatprep.subr.mxu0 0.0
        %513 = vmatpush2.xpose.msra.mxu0 0.0
        %514 = vmatprep.mubr.f32.mxu0 0.0
        %515 = vmatmul.mubr.f32.gmra.mxu0 %v438
        %v516 = vpop.f32.mrf.mxu0
        %v517 = vadd.f32 0.0, %v516
        %v518 = vpop.f32.mrf.mxu0
        %519 = vmatprep.mubr.f32.mxu0 0.0
        %520 = vmatmul.mubr.f32.gmra.mxu0 %v440
        %v521 = vpop.f32.mrf.mxu0
        %v522 = vadd.f32 0.0, %v521
        %v523 = vpop.f32.mrf.mxu0
        %524 = vmatprep.mubr.f32.mxu0 0.0
        %525 = vmatmul.mubr.f32.gmra.mxu0 %v442
        %v526 = vpop.f32.mrf.mxu0
        %v527 = vadd.f32 0.0, %v526
        %v528 = vpop.f32.mrf.mxu0
        %529 = vdwg.mxu0
        %v530 = vmul.f32 %v517, 0.17677669
        %v531 = vmul.f32 %v522, 0.17677669
        %v532 = vmul.f32 %v527, 0.17677669
        %v533 = vsel %vm298, %v530, -inf
        %534 = vmax.xlane.f32.xlu0 %v533
        %v535 = vpop.xlane.xlu0 %534
        %v536 = vsel %vm298, %v531, -inf
        %537 = vmax.xlane.f32.xlu0 %v536
        %v538 = vpop.xlane.xlu0 %537
        %v539 = vsel %vm305, %v532, -inf
        %540 = vmax.xlane.f32.xlu0 %v539
        %v541 = vpop.xlane.xlu0 %540
        %v542 = vsub.f32 %v530, %v535
        %v543 = vsub.f32 %v531, %v538
        %v544 = vsub.f32 %v532, %v541
        %v545 = vmul.f32 %v542, 1.442695
        %v546 = vpow.pop %v545
        %v547 = vmul.f32 %v543, 1.442695
        %v548 = vpow.pop %v547
        %v549 = vmul.f32 %v544, 1.442695
        %v550 = vpow.pop %v549
        %v551 = vsel %vm298, %v546, 0.0
        %552 = vadd.xlane.f32.xlu0 %v551
        %v553 = vpop.xlane.xlu0 %552
        %v554 = vsel %vm298, %v548, 0.0
        %555 = vadd.xlane.f32.xlu0 %v554
        %v556 = vpop.xlane.xlu0 %555
        %v557 = vsel %vm305, %v550, 0.0
        %558 = vadd.xlane.f32.xlu0 %v557
        %v559 = vpop.xlane.xlu0 %558
        %v560 = vrcp.pop %v553
        %v561 = vmul.f32 %v546, %v560
        %v562 = vrcp.pop %v556
        %v563 = vmul.f32 %v548, %v562
        %v564 = vrcp.pop %v559
        %v565 = vmul.f32 %v550, %v564
        %568 = vrot.lane.b32.xlu0 %v193, 120
        %v569 = vpop.permute.xlu0 %568
        %570 = vrot.lane.b32.xlu0 %v194, 120
        %v571 = vpop.permute.xlu0 %570
        %572 = vrot.lane.b32.xlu0 %v195, 120
        %v573 = vpop.permute.xlu0 %572
        %v577 = vsel %vm298, %v561, 0
        %v580 = vsel %vm298, %v563, 0
        %v583 = vsel %vm298, %v565, 0
        %v585 = vsel %vm342, %v573, 0
        %587 = vmatprep.subr.mxu0 0.0
        %588 = vmatpush1.msra.mxu0 0.0
        %589 = vmatprep.subr.mxu0 0.0
        %590 = vmatpush1.msra.mxu0 0.0
        %591 = vmatprep.subr.mxu0 0.0
        %592 = vmatpush1.msra.mxu0 0.0
        %593 = vmatprep.subr.mxu0 0.0
        %594 = vmatpush1.msra.mxu0 0.0
        %595 = vmatprep.subr.mxu0 0.0
        %596 = vmatpush1.msra.mxu0 0.0
        %597 = vmatprep.subr.mxu0 0.0
        %598 = vmatpush1.msra.mxu0 0.0
        %599 = vmatprep.subr.mxu0 0.0
        %600 = vmatpush1.msra.mxu0 0.0
        %601 = vmatprep.subr.mxu0 0.0
        %602 = vmatpush1.msra.mxu0 0.0
        %603 = vmatprep.subr.mxu0 0.0
        %604 = vmatpush1.msra.mxu0 0.0
        %605 = vmatprep.subr.mxu0 0.0
        %606 = vmatpush1.msra.mxu0 0.0
        %607 = vmatprep.subr.mxu0 0.0
        %608 = vmatpush1.msra.mxu0 0.0
        %609 = vmatprep.subr.mxu0 0.0
        %610 = vmatpush1.msra.mxu0 0.0
        %611 = vmatprep.subr.mxu0 0.0
        %612 = vmatpush1.msra.mxu0 0.0
        %613 = vmatprep.subr.mxu0 0.0
        %614 = vmatpush1.msra.mxu0 %v585
        %615 = vmatprep.subr.mxu0 0.0
        %616 = vmatpush1.msra.mxu0 %v571
        %617 = vmatprep.subr.mxu0 0.0
        %618 = vmatpush1.msra.mxu0 %v569
        %619 = vmatprep.subr.mxu0 0.0
        %620 = vmatpush2.msra.mxu0 0.0
        %621 = vmatprep.subr.mxu0 0.0
        %622 = vmatpush2.msra.mxu0 0.0
        %623 = vmatprep.subr.mxu0 0.0
        %624 = vmatpush2.msra.mxu0 0.0
        %625 = vmatprep.subr.mxu0 0.0
        %626 = vmatpush2.msra.mxu0 0.0
        %627 = vmatprep.subr.mxu0 0.0
        %628 = vmatpush2.msra.mxu0 0.0
        %629 = vmatprep.subr.mxu0 0.0
        %630 = vmatpush2.msra.mxu0 0.0
        %631 = vmatprep.subr.mxu0 0.0
        %632 = vmatpush2.msra.mxu0 0.0
        %633 = vmatprep.subr.mxu0 0.0
        %634 = vmatpush2.msra.mxu0 0.0
        %635 = vmatprep.subr.mxu0 0.0
        %636 = vmatpush2.msra.mxu0 0.0
        %637 = vmatprep.subr.mxu0 0.0
        %638 = vmatpush2.msra.mxu0 0.0
        %639 = vmatprep.subr.mxu0 0.0
        %640 = vmatpush2.msra.mxu0 0.0
        %641 = vmatprep.subr.mxu0 0.0
        %642 = vmatpush2.msra.mxu0 0.0
        %643 = vmatprep.subr.mxu0 0.0
        %644 = vmatpush2.msra.mxu0 0.0
        %645 = vmatprep.subr.mxu0 0.0
        %646 = vmatpush2.msra.mxu0 0.0
        %647 = vmatprep.subr.mxu0 0.0
        %648 = vmatpush2.msra.mxu0 0.0
        %649 = vmatprep.subr.mxu0 0.0
        %650 = vmatpush2.msra.mxu0 0.0
        %651 = vmatprep.mubr.f32.mxu0 0.0
        %652 = vmatmul.mubr.f32.gmra.mxu0 %v577
        %v653 = vpop.f32.mrf.mxu0
        %v654 = vadd.f32 0.0, %v653
        %v655 = vpop.f32.mrf.mxu0
        %656 = vmatprep.mubr.f32.mxu0 0.0
        %657 = vmatmul.mubr.f32.gmra.mxu0 %v580
        %v658 = vpop.f32.mrf.mxu0
        %v659 = vadd.f32 0.0, %v658
        %v660 = vpop.f32.mrf.mxu0
        %661 = vmatprep.mubr.f32.mxu0 0.0
        %662 = vmatmul.mubr.f32.gmra.mxu0 %v583
        %v663 = vpop.f32.mrf.mxu0
        %v664 = vadd.f32 0.0, %v663
        %v665 = vpop.f32.mrf.mxu0
        %666 = vdwg.mxu0
        %667 = vrot.lane.b32.xlu0 %v185, 112
        %v668 = vpop.permute.xlu0 %667
        %669 = vrot.lane.b32.xlu0 %v186, 112
        %v670 = vpop.permute.xlu0 %669
        %671 = vrot.lane.b32.xlu0 %v187, 112
        %v672 = vpop.permute.xlu0 %671
        %673 = vrot.lane.b32.xlu0 %v189, 112
        %v674 = vpop.permute.xlu0 %673
        %675 = vrot.lane.b32.xlu0 %v190, 112
        %v676 = vpop.permute.xlu0 %675
        %677 = vrot.lane.b32.xlu0 %v191, 112
        %v678 = vpop.permute.xlu0 %677
        %v679 = vsel %vm196, %v668, 0
        %v681 = vsel %vm196, %v670, 0
        %v683 = vsel %vm196, %v672, 0
        %v685 = vsel %vm196, %v674, 0
        %v687 = vsel %vm196, %v676, 0
        %v689 = vsel %vm196, %v678, 0
        %691 = vmatprep.subr.mxu0 0.0
        %692 = vmatpush1.xpose.msra.mxu0 0.0
        %693 = vmatprep.subr.mxu0 0.0
        %694 = vmatpush1.xpose.msra.mxu0 0.0
        %695 = vmatprep.subr.mxu0 0.0
        %696 = vmatpush1.xpose.msra.mxu0 0.0
        %697 = vmatprep.subr.mxu0 0.0
        %698 = vmatpush1.xpose.msra.mxu0 0.0
        %699 = vmatprep.subr.mxu0 0.0
        %700 = vmatpush1.xpose.msra.mxu0 0.0
        %701 = vmatprep.subr.mxu0 0.0
        %702 = vmatpush1.xpose.msra.mxu0 0.0
        %703 = vmatprep.subr.mxu0 0.0
        %704 = vmatpush1.xpose.msra.mxu0 0.0
        %705 = vmatprep.subr.mxu0 0.0
        %706 = vmatpush1.xpose.msra.mxu0 0.0
        %707 = vmatprep.subr.mxu0 0.0
        %708 = vmatpush1.xpose.msra.mxu0 0.0
        %709 = vmatprep.subr.mxu0 0.0
        %710 = vmatpush1.xpose.msra.mxu0 0.0
        %711 = vmatprep.subr.mxu0 0.0
        %712 = vmatpush1.xpose.msra.mxu0 0.0
        %713 = vmatprep.subr.mxu0 0.0
        %714 = vmatpush1.xpose.msra.mxu0 0.0
        %715 = vmatprep.subr.mxu0 0.0
        %716 = vmatpush1.xpose.msra.mxu0 0.0
        %717 = vmatprep.subr.mxu0 0.0
        %718 = vmatpush1.xpose.msra.mxu0 %v689
        %719 = vmatprep.subr.mxu0 0.0
        %720 = vmatpush1.xpose.msra.mxu0 %v687
        %721 = vmatprep.subr.mxu0 0.0
        %722 = vmatpush1.xpose.msra.mxu0 %v685
        %723 = vmatprep.subr.mxu0 0.0
        %724 = vmatpush2.xpose.msra.mxu0 0.0
        %725 = vmatprep.subr.mxu0 0.0
        %726 = vmatpush2.xpose.msra.mxu0 0.0
        %727 = vmatprep.subr.mxu0 0.0
        %728 = vmatpush2.xpose.msra.mxu0 0.0
        %729 = vmatprep.subr.mxu0 0.0
        %730 = vmatpush2.xpose.msra.mxu0 0.0
        %731 = vmatprep.subr.mxu0 0.0
        %732 = vmatpush2.xpose.msra.mxu0 0.0
        %733 = vmatprep.subr.mxu0 0.0
        %734 = vmatpush2.xpose.msra.mxu0 0.0
        %735 = vmatprep.subr.mxu0 0.0
        %736 = vmatpush2.xpose.msra.mxu0 0.0
        %737 = vmatprep.subr.mxu0 0.0
        %738 = vmatpush2.xpose.msra.mxu0 0.0
        %739 = vmatprep.subr.mxu0 0.0
        %740 = vmatpush2.xpose.msra.mxu0 0.0
        %741 = vmatprep.subr.mxu0 0.0
        %742 = vmatpush2.xpose.msra.mxu0 0.0
        %743 = vmatprep.subr.mxu0 0.0
        %744 = vmatpush2.xpose.msra.mxu0 0.0
        %745 = vmatprep.subr.mxu0 0.0
        %746 = vmatpush2.xpose.msra.mxu0 0.0
        %747 = vmatprep.subr.mxu0 0.0
        %748 = vmatpush2.xpose.msra.mxu0 0.0
        %749 = vmatprep.subr.mxu0 0.0
        %750 = vmatpush2.xpose.msra.mxu0 0.0
        %751 = vmatprep.subr.mxu0 0.0
        %752 = vmatpush2.xpose.msra.mxu0 0.0
        %753 = vmatprep.subr.mxu0 0.0
        %754 = vmatpush2.xpose.msra.mxu0 0.0
        %755 = vmatprep.mubr.f32.mxu0 0.0
        %756 = vmatmul.mubr.f32.gmra.mxu0 %v679
        %v757 = vpop.f32.mrf.mxu0
        %v758 = vadd.f32 0.0, %v757
        %v759 = vpop.f32.mrf.mxu0
        %760 = vmatprep.mubr.f32.mxu0 0.0
        %761 = vmatmul.mubr.f32.gmra.mxu0 %v681
        %v762 = vpop.f32.mrf.mxu0
        %v763 = vadd.f32 0.0, %v762
        %v764 = vpop.f32.mrf.mxu0
        %765 = vmatprep.mubr.f32.mxu0 0.0
        %766 = vmatmul.mubr.f32.gmra.mxu0 %v683
        %v767 = vpop.f32.mrf.mxu0
        %v768 = vadd.f32 0.0, %v767
        %v769 = vpop.f32.mrf.mxu0
        %770 = vdwg.mxu0
        %v771 = vmul.f32 %v758, 0.17677669
        %v772 = vmul.f32 %v763, 0.17677669
        %v773 = vmul.f32 %v768, 0.17677669
        %v774 = vsel %vm298, %v771, -inf
        %775 = vmax.xlane.f32.xlu0 %v774
        %v776 = vpop.xlane.xlu0 %775
        %v777 = vsel %vm298, %v772, -inf
        %778 = vmax.xlane.f32.xlu0 %v777
        %v779 = vpop.xlane.xlu0 %778
        %v780 = vsel %vm305, %v773, -inf
        %781 = vmax.xlane.f32.xlu0 %v780
        %v782 = vpop.xlane.xlu0 %781
        %v783 = vsub.f32 %v771, %v776
        %v784 = vsub.f32 %v772, %v779
        %v785 = vsub.f32 %v773, %v782
        %v786 = vmul.f32 %v783, 1.442695
        %v787 = vpow.pop %v786
        %v788 = vmul.f32 %v784, 1.442695
        %v789 = vpow.pop %v788
        %v790 = vmul.f32 %v785, 1.442695
        %v791 = vpow.pop %v790
        %v792 = vsel %vm298, %v787, 0.0
        %793 = vadd.xlane.f32.xlu0 %v792
        %v794 = vpop.xlane.xlu0 %793
        %v795 = vsel %vm298, %v789, 0.0
        %796 = vadd.xlane.f32.xlu0 %v795
        %v797 = vpop.xlane.xlu0 %796
        %v798 = vsel %vm305, %v791, 0.0
        %799 = vadd.xlane.f32.xlu0 %v798
        %v800 = vpop.xlane.xlu0 %799
        %v801 = vrcp.pop %v794
        %v802 = vmul.f32 %v787, %v801
        %v803 = vrcp.pop %v797
        %v804 = vmul.f32 %v789, %v803
        %v805 = vrcp.pop %v800
        %v806 = vmul.f32 %v791, %v805
        %807 = vrot.lane.b32.xlu0 %v193, 112
        %v808 = vpop.permute.xlu0 %807
        %809 = vrot.lane.b32.xlu0 %v194, 112
        %v810 = vpop.permute.xlu0 %809
        %811 = vrot.lane.b32.xlu0 %v195, 112
        %v812 = vpop.permute.xlu0 %811
        %v816 = vsel %vm298, %v802, 0
        %v819 = vsel %vm298, %v804, 0
        %v822 = vsel %vm298, %v806, 0
        %v824 = vsel %vm342, %v812, 0
        %826 = vmatprep.subr.mxu0 0.0
        %827 = vmatpush1.msra.mxu0 0.0
        %828 = vmatprep.subr.mxu0 0.0
        %829 = vmatpush1.msra.mxu0 0.0
        %830 = vmatprep.subr.mxu0 0.0
        %831 = vmatpush1.msra.mxu0 0.0
        %832 = vmatprep.subr.mxu0 0.0
        %833 = vmatpush1.msra.mxu0 0.0
        %834 = vmatprep.subr.mxu0 0.0
        %835 = vmatpush1.msra.mxu0 0.0
        %836 = vmatprep.subr.mxu0 0.0
        %837 = vmatpush1.msra.mxu0 0.0
        %838 = vmatprep.subr.mxu0 0.0
        %839 = vmatpush1.msra.mxu0 0.0
        %840 = vmatprep.subr.mxu0 0.0
        %841 = vmatpush1.msra.mxu0 0.0
        %842 = vmatprep.subr.mxu0 0.0
        %843 = vmatpush1.msra.mxu0 0.0
        %844 = vmatprep.subr.mxu0 0.0
        %845 = vmatpush1.msra.mxu0 0.0
        %846 = vmatprep.subr.mxu0 0.0
        %847 = vmatpush1.msra.mxu0 0.0
        %848 = vmatprep.subr.mxu0 0.0
        %849 = vmatpush1.msra.mxu0 0.0
        %850 = vmatprep.subr.mxu0 0.0
        %851 = vmatpush1.msra.mxu0 0.0
        %852 = vmatprep.subr.mxu0 0.0
        %853 = vmatpush1.msra.mxu0 %v824
        %854 = vmatprep.subr.mxu0 0.0
        %855 = vmatpush1.msra.mxu0 %v810
        %856 = vmatprep.subr.mxu0 0.0
        %857 = vmatpush1.msra.mxu0 %v808
        %858 = vmatprep.subr.mxu0 0.0
        %859 = vmatpush2.msra.mxu0 0.0
        %860 = vmatprep.subr.mxu0 0.0
        %861 = vmatpush2.msra.mxu0 0.0
        %862 = vmatprep.subr.mxu0 0.0
        %863 = vmatpush2.msra.mxu0 0.0
        %864 = vmatprep.subr.mxu0 0.0
        %865 = vmatpush2.msra.mxu0 0.0
        %866 = vmatprep.subr.mxu0 0.0
        %867 = vmatpush2.msra.mxu0 0.0
        %868 = vmatprep.subr.mxu0 0.0
        %869 = vmatpush2.msra.mxu0 0.0
        %870 = vmatprep.subr.mxu0 0.0
        %871 = vmatpush2.msra.mxu0 0.0
        %872 = vmatprep.subr.mxu0 0.0
        %873 = vmatpush2.msra.mxu0 0.0
        %874 = vmatprep.subr.mxu0 0.0
        %875 = vmatpush2.msra.mxu0 0.0
        %876 = vmatprep.subr.mxu0 0.0
        %877 = vmatpush2.msra.mxu0 0.0
        %878 = vmatprep.subr.mxu0 0.0
        %879 = vmatpush2.msra.mxu0 0.0
        %880 = vmatprep.subr.mxu0 0.0
        %881 = vmatpush2.msra.mxu0 0.0
        %882 = vmatprep.subr.mxu0 0.0
        %883 = vmatpush2.msra.mxu0 0.0
        %884 = vmatprep.subr.mxu0 0.0
        %885 = vmatpush2.msra.mxu0 0.0
        %886 = vmatprep.subr.mxu0 0.0
        %887 = vmatpush2.msra.mxu0 0.0
        %888 = vmatprep.subr.mxu0 0.0
        %889 = vmatpush2.msra.mxu0 0.0
        %890 = vmatprep.mubr.f32.mxu0 0.0
        %891 = vmatmul.mubr.f32.gmra.mxu0 %v816
        %v892 = vpop.f32.mrf.mxu0
        %v893 = vadd.f32 0.0, %v892
        %v894 = vpop.f32.mrf.mxu0
        %895 = vmatprep.mubr.f32.mxu0 0.0
        %896 = vmatmul.mubr.f32.gmra.mxu0 %v819
        %v897 = vpop.f32.mrf.mxu0
        %v898 = vadd.f32 0.0, %v897
        %v899 = vpop.f32.mrf.mxu0
        %900 = vmatprep.mubr.f32.mxu0 0.0
        %901 = vmatmul.mubr.f32.gmra.mxu0 %v822
        %v902 = vpop.f32.mrf.mxu0
        %v903 = vadd.f32 0.0, %v902
        %v904 = vpop.f32.mrf.mxu0
        %905 = vdwg.mxu0
        %906 = vrot.lane.b32.xlu0 %v185, 104
        %v907 = vpop.permute.xlu0 %906
        %908 = vrot.lane.b32.xlu0 %v186, 104
        %v909 = vpop.permute.xlu0 %908
        %910 = vrot.lane.b32.xlu0 %v187, 104
        %v911 = vpop.permute.xlu0 %910
        %912 = vrot.lane.b32.xlu0 %v189, 104
        %v913 = vpop.permute.xlu0 %912
        %914 = vrot.lane.b32.xlu0 %v190, 104
        %v915 = vpop.permute.xlu0 %914
        %916 = vrot.lane.b32.xlu0 %v191, 104
        %v917 = vpop.permute.xlu0 %916
        %v918 = vsel %vm196, %v907, 0
        %v920 = vsel %vm196, %v909, 0
        %v922 = vsel %vm196, %v911, 0
        %v924 = vsel %vm196, %v913, 0
        %v926 = vsel %vm196, %v915, 0
        %v928 = vsel %vm196, %v917, 0
        %930 = vmatprep.subr.mxu0 0.0
        %931 = vmatpush1.xpose.msra.mxu0 0.0
        %932 = vmatprep.subr.mxu0 0.0
        %933 = vmatpush1.xpose.msra.mxu0 0.0
        %934 = vmatprep.subr.mxu0 0.0
        %935 = vmatpush1.xpose.msra.mxu0 0.0
        %936 = vmatprep.subr.mxu0 0.0
        %937 = vmatpush1.xpose.msra.mxu0 0.0
        %938 = vmatprep.subr.mxu0 0.0
        %939 = vmatpush1.xpose.msra.mxu0 0.0
        %940 = vmatprep.subr.mxu0 0.0
        %941 = vmatpush1.xpose.msra.mxu0 0.0
        %942 = vmatprep.subr.mxu0 0.0
        %943 = vmatpush1.xpose.msra.mxu0 0.0
        %944 = vmatprep.subr.mxu0 0.0
        %945 = vmatpush1.xpose.msra.mxu0 0.0
        %946 = vmatprep.subr.mxu0 0.0
        %947 = vmatpush1.xpose.msra.mxu0 0.0
        %948 = vmatprep.subr.mxu0 0.0
        %949 = vmatpush1.xpose.msra.mxu0 0.0
        %950 = vmatprep.subr.mxu0 0.0
        %951 = vmatpush1.xpose.msra.mxu0 0.0
        %952 = vmatprep.subr.mxu0 0.0
        %953 = vmatpush1.xpose.msra.mxu0 0.0
        %954 = vmatprep.subr.mxu0 0.0
        %955 = vmatpush1.xpose.msra.mxu0 0.0
        %956 = vmatprep.subr.mxu0 0.0
        %957 = vmatpush1.xpose.msra.mxu0 %v928
        %958 = vmatprep.subr.mxu0 0.0
        %959 = vmatpush1.xpose.msra.mxu0 %v926
        %960 = vmatprep.subr.mxu0 0.0
        %961 = vmatpush1.xpose.msra.mxu0 %v924
        %962 = vmatprep.subr.mxu0 0.0
        %963 = vmatpush2.xpose.msra.mxu0 0.0
        %964 = vmatprep.subr.mxu0 0.0
        %965 = vmatpush2.xpose.msra.mxu0 0.0
        %966 = vmatprep.subr.mxu0 0.0
        %967 = vmatpush2.xpose.msra.mxu0 0.0
        %968 = vmatprep.subr.mxu0 0.0
        %969 = vmatpush2.xpose.msra.mxu0 0.0
        %970 = vmatprep.subr.mxu0 0.0
        %971 = vmatpush2.xpose.msra.mxu0 0.0
        %972 = vmatprep.subr.mxu0 0.0
        %973 = vmatpush2.xpose.msra.mxu0 0.0
        %974 = vmatprep.subr.mxu0 0.0
        %975 = vmatpush2.xpose.msra.mxu0 0.0
        %976 = vmatprep.subr.mxu0 0.0
        %977 = vmatpush2.xpose.msra.mxu0 0.0
        %978 = vmatprep.subr.mxu0 0.0
        %979 = vmatpush2.xpose.msra.mxu0 0.0
        %980 = vmatprep.subr.mxu0 0.0
        %981 = vmatpush2.xpose.msra.mxu0 0.0
        %982 = vmatprep.subr.mxu0 0.0
        %983 = vmatpush2.xpose.msra.mxu0 0.0
        %984 = vmatprep.subr.mxu0 0.0
        %985 = vmatpush2.xpose.msra.mxu0 0.0
        %986 = vmatprep.subr.mxu0 0.0
        %987 = vmatpush2.xpose.msra.mxu0 0.0
        %988 = vmatprep.subr.mxu0 0.0
        %989 = vmatpush2.xpose.msra.mxu0 0.0
        %990 = vmatprep.subr.mxu0 0.0
        %991 = vmatpush2.xpose.msra.mxu0 0.0
        %992 = vmatprep.subr.mxu0 0.0
        %993 = vmatpush2.xpose.msra.mxu0 0.0
        %994 = vmatprep.mubr.f32.mxu0 0.0
        %995 = vmatmul.mubr.f32.gmra.mxu0 %v918
        %v996 = vpop.f32.mrf.mxu0
        %v997 = vadd.f32 0.0, %v996
        %v998 = vpop.f32.mrf.mxu0
        %999 = vmatprep.mubr.f32.mxu0 0.0
        %1000 = vmatmul.mubr.f32.gmra.mxu0 %v920
        %v1001 = vpop.f32.mrf.mxu0
        %v1002 = vadd.f32 0.0, %v1001
        %v1003 = vpop.f32.mrf.mxu0
        %1004 = vmatprep.mubr.f32.mxu0 0.0
        %1005 = vmatmul.mubr.f32.gmra.mxu0 %v922
        %v1006 = vpop.f32.mrf.mxu0
        %v1007 = vadd.f32 0.0, %v1006
        %v1008 = vpop.f32.mrf.mxu0
        %1009 = vdwg.mxu0
        %v1010 = vmul.f32 %v997, 0.17677669
        %v1011 = vmul.f32 %v1002, 0.17677669
        %v1012 = vmul.f32 %v1007, 0.17677669
        %v1013 = vsel %vm298, %v1010, -inf
        %1014 = vmax.xlane.f32.xlu0 %v1013
        %v1015 = vpop.xlane.xlu0 %1014
        %v1016 = vsel %vm298, %v1011, -inf
        %1017 = vmax.xlane.f32.xlu0 %v1016
        %v1018 = vpop.xlane.xlu0 %1017
        %v1019 = vsel %vm305, %v1012, -inf
        %1020 = vmax.xlane.f32.xlu0 %v1019
        %v1021 = vpop.xlane.xlu0 %1020
        %v1022 = vsub.f32 %v1010, %v1015
        %v1023 = vsub.f32 %v1011, %v1018
        %v1024 = vsub.f32 %v1012, %v1021
        %v1025 = vmul.f32 %v1022, 1.442695
        %v1026 = vpow.pop %v1025
        %v1027 = vmul.f32 %v1023, 1.442695
        %v1028 = vpow.pop %v1027
        %v1029 = vmul.f32 %v1024, 1.442695
        %v1030 = vpow.pop %v1029
        %v1031 = vsel %vm298, %v1026, 0.0
        %1032 = vadd.xlane.f32.xlu0 %v1031
        %v1033 = vpop.xlane.xlu0 %1032
        %v1034 = vsel %vm298, %v1028, 0.0
        %1035 = vadd.xlane.f32.xlu0 %v1034
        %v1036 = vpop.xlane.xlu0 %1035
        %v1037 = vsel %vm305, %v1030, 0.0
        %1038 = vadd.xlane.f32.xlu0 %v1037
        %v1039 = vpop.xlane.xlu0 %1038
        %v1040 = vrcp.pop %v1033
        %v1041 = vmul.f32 %v1026, %v1040
        %v1042 = vrcp.pop %v1036
        %v1043 = vmul.f32 %v1028, %v1042
        %v1044 = vrcp.pop %v1039
        %v1045 = vmul.f32 %v1030, %v1044
        %1046 = vrot.lane.b32.xlu0 %v193, 104
        %v1047 = vpop.permute.xlu0 %1046
        %1048 = vrot.lane.b32.xlu0 %v194, 104
        %v1049 = vpop.permute.xlu0 %1048
        %1050 = vrot.lane.b32.xlu0 %v195, 104
        %v1051 = vpop.permute.xlu0 %1050
        %v1055 = vsel %vm298, %v1041, 0
        %v1058 = vsel %vm298, %v1043, 0
        %v1061 = vsel %vm298, %v1045, 0
        %v1063 = vsel %vm342, %v1051, 0
        %1065 = vmatprep.subr.mxu0 0.0
        %1066 = vmatpush1.msra.mxu0 0.0
        %1067 = vmatprep.subr.mxu0 0.0
        %1068 = vmatpush1.msra.mxu0 0.0
        %1069 = vmatprep.subr.mxu0 0.0
        %1070 = vmatpush1.msra.mxu0 0.0
        %1071 = vmatprep.subr.mxu0 0.0
        %1072 = vmatpush1.msra.mxu0 0.0
        %1073 = vmatprep.subr.mxu0 0.0
        %1074 = vmatpush1.msra.mxu0 0.0
        %1075 = vmatprep.subr.mxu0 0.0
        %1076 = vmatpush1.msra.mxu0 0.0
        %1077 = vmatprep.subr.mxu0 0.0
        %1078 = vmatpush1.msra.mxu0 0.0
        %1079 = vmatprep.subr.mxu0 0.0
        %1080 = vmatpush1.msra.mxu0 0.0
        %1081 = vmatprep.subr.mxu0 0.0
        %1082 = vmatpush1.msra.mxu0 0.0
        %1083 = vmatprep.subr.mxu0 0.0
        %1084 = vmatpush1.msra.mxu0 0.0
        %1085 = vmatprep.subr.mxu0 0.0
        %1086 = vmatpush1.msra.mxu0 0.0
        %1087 = vmatprep.subr.mxu0 0.0
        %1088 = vmatpush1.msra.mxu0 0.0
        %1089 = vmatprep.subr.mxu0 0.0
        %1090 = vmatpush1.msra.mxu0 0.0
        %1091 = vmatprep.subr.mxu0 0.0
        %1092 = vmatpush1.msra.mxu0 %v1063
        %1093 = vmatprep.subr.mxu0 0.0
        %1094 = vmatpush1.msra.mxu0 %v1049
        %1095 = vmatprep.subr.mxu0 0.0
        %1096 = vmatpush1.msra.mxu0 %v1047
        %1097 = vmatprep.subr.mxu0 0.0
        %1098 = vmatpush2.msra.mxu0 0.0
        %1099 = vmatprep.subr.mxu0 0.0
        %1100 = vmatpush2.msra.mxu0 0.0
        %1101 = vmatprep.subr.mxu0 0.0
        %1102 = vmatpush2.msra.mxu0 0.0
        %1103 = vmatprep.subr.mxu0 0.0
        %1104 = vmatpush2.msra.mxu0 0.0
        %1105 = vmatprep.subr.mxu0 0.0
        %1106 = vmatpush2.msra.mxu0 0.0
        %1107 = vmatprep.subr.mxu0 0.0
        %1108 = vmatpush2.msra.mxu0 0.0
        %1109 = vmatprep.subr.mxu0 0.0
        %1110 = vmatpush2.msra.mxu0 0.0
        %1111 = vmatprep.subr.mxu0 0.0
        %1112 = vmatpush2.msra.mxu0 0.0
        %1113 = vmatprep.subr.mxu0 0.0
        %1114 = vmatpush2.msra.mxu0 0.0
        %1115 = vmatprep.subr.mxu0 0.0
        %1116 = vmatpush2.msra.mxu0 0.0
        %1117 = vmatprep.subr.mxu0 0.0
        %1118 = vmatpush2.msra.mxu0 0.0
        %1119 = vmatprep.subr.mxu0 0.0
        %1120 = vmatpush2.msra.mxu0 0.0
        %1121 = vmatprep.subr.mxu0 0.0
        %1122 = vmatpush2.msra.mxu0 0.0
        %1123 = vmatprep.subr.mxu0 0.0
        %1124 = vmatpush2.msra.mxu0 0.0
        %1125 = vmatprep.subr.mxu0 0.0
        %1126 = vmatpush2.msra.mxu0 0.0
        %1127 = vmatprep.subr.mxu0 0.0
        %1128 = vmatpush2.msra.mxu0 0.0
        %1129 = vmatprep.mubr.f32.mxu0 0.0
        %1130 = vmatmul.mubr.f32.gmra.mxu0 %v1055
        %v1131 = vpop.f32.mrf.mxu0
        %v1132 = vadd.f32 0.0, %v1131
        %v1133 = vpop.f32.mrf.mxu0
        %1134 = vmatprep.mubr.f32.mxu0 0.0
        %1135 = vmatmul.mubr.f32.gmra.mxu0 %v1058
        %v1136 = vpop.f32.mrf.mxu0
        %v1137 = vadd.f32 0.0, %v1136
        %v1138 = vpop.f32.mrf.mxu0
        %1139 = vmatprep.mubr.f32.mxu0 0.0
        %1140 = vmatmul.mubr.f32.gmra.mxu0 %v1061
        %v1141 = vpop.f32.mrf.mxu0
        %v1142 = vadd.f32 0.0, %v1141
        %v1143 = vpop.f32.mrf.mxu0
        %1144 = vdwg.mxu0
        %1148 = vrot.lane.b32.xlu0 %v654, 8
        %v1149 = vpop.permute.xlu0 %1148
        %1150 = vrot.lane.b32.xlu0 %v659, 8
        %v1151 = vpop.permute.xlu0 %1150
        %1152 = vrot.lane.b32.xlu0 %v664, 8
        %v1153 = vpop.permute.xlu0 %1152
        %1160 = vrot.lane.b32.xlu0 %v893, 16
        %v1161 = vpop.permute.xlu0 %1160
        %1162 = vrot.lane.b32.xlu0 %v898, 16
        %v1163 = vpop.permute.xlu0 %1162
        %1164 = vrot.lane.b32.xlu0 %v903, 16
        %v1165 = vpop.permute.xlu0 %1164
        %1172 = vrot.lane.b32.xlu0 %v1132, 24
        %v1173 = vpop.permute.xlu0 %1172
        %1174 = vrot.lane.b32.xlu0 %v1137, 24
        %v1175 = vpop.permute.xlu0 %1174
        %1176 = vrot.lane.b32.xlu0 %v1142, 24
        %v1177 = vpop.permute.xlu0 %1176
        %v1181 = vsel %vm196, %v413, %v1149
        %v1182 = vsel %vm196, %v418, %v1151
        %v1183 = vsel %vm196, %v423, %v1153
        %vm1184 = vcmask 130048
        %v1185 = vsel %vm1184, %v1181, %v1161
        %v1186 = vsel %vm1184, %v1182, %v1163
        %v1187 = vsel %vm1184, %v1183, %v1165
        %vm1188 = vcmask 195584
        %v1189 = vsel %vm1188, %v1185, %v1173
        %v1190 = vsel %vm1188, %v1186, %v1175
        %v1191 = vsel %vm1188, %v1187, %v1177
        %vm1192 = vcmask 261120
        %1193 = vst.msk [vmem:[%s184] sm:$0xff] %vm1192, %v1189
        %1194 = vst.msk [vmem:[%s184 + $0x8] sm:$0xff] %vm1192, %v1190
        %vm1195 = vcmask 253952
        %1196 = vst.msk [vmem:[%s184 + $0x10] sm:$0x1] %vm1195, %v1191
        %p1197 = scmp.lt.s32.totalorder %s12, 1
        %s1198 = scalar_select %p1197, %s12, 1
        %s1199 = smul.addr %s1198, 3
        %s1200 = smul.addr %s1199, 8
        %s1201 = scalar_lea.vmem %s1, %s1200
        // Predicated region
        $region63: #{vit_forward.16} parent=57 // pred_check
          %p1202 = pneg %p56
        $region64: #{vit_forward.16} parent=57 // pred_check_branch
          %1204 = sbr.rel (%p1202) target = $region66
        $region65: #{vit_forward.16} parent=57 // pred_region
          _
        $region66: #{vit_forward.16} parent=57 // pred_fallthru
          _
      $region58: #{vit_forward.16} parent=5 // pred_fallthru
        _
      %p1205 = scmp.le.s32.totalorder 2, %s7
      // Predicated region
      $region67: #{vit_forward.16} parent=5 // pred_check
        %p1206 = pneg %p1205
      $region68: #{vit_forward.16} parent=5 // pred_check_branch
        %1208 = sbr.rel (%p1206) target = $region70
      $region69: #{vit_forward.16} parent=5 // pred_region
        %s1209 = ssub.s32 %s7, 2
        // Predicated region
        $region71: #{vit_forward.16} parent=69 // pred_check
          %p1210 = pneg %p62
        $region72: #{vit_forward.16} parent=69 // pred_check_branch
          %1212 = sbr.rel (%p1210) target = $region74
        $region73: #{vit_forward.16} parent=69 // pred_region
          %p1213 = scmp.lt.s32.totalorder %s13, 1
          %s1214 = scalar_select %p1213, %s13, 1
          %s1215 = smul.addr %s1214, 3
          %s1216 = smul.addr %s1215, 8
          %s1217 = scalar_lea.vmem %s1, %s1216
        $region74: #{vit_forward.16} parent=69 // pred_fallthru
          _
      $region70: #{vit_forward.16} parent=5 // pred_fallthru
        _
    $region6: #{vit_forward.16} parent=1 // loop_footer
      %s11 = sadd.s32 1, %s7
    $region7: #{vit_forward.16} parent=1 // loop_footer_branch
      %6 = sbr.rel target = $region3
    $region8: #{vit_forward.16} parent=1 // loop_exit
      _

// kernel: vit_forward.17
$region0: #{vit_forward.17}
  #allocation0 [shape = 'u32[]', space=smem, size = 0x4, offset = 0x4, fixed_abs, tag = 'smem constant byte address 0x4 - core index']
  #allocation1 [shape = 'u32[144,128]{1,0:T(1,128)}', space=vmem, size = 0x12000, scoped, tag = 'internal scratch']
  %s0 = inlined_call_operand.vmem [shape: f32[1,34,32], index: 0, kind: input, shape index: {}]
  %s1 = inlined_call_operand.vmem [shape: bf16[1,32,32], index: 1, kind: input, shape index: {}]
  %s2 = inlined_call_operand.vmem [shape: f32[1,1,32], index: 2, kind: input, shape index: {}]
  %s3 = inlined_call_operand.vmem [shape: f32[1,34,32], index: 3, kind: input, shape index: {}]
  %s4 = inlined_call_operand.vmem [shape: f32[1,34,32], index: 4, kind: output, shape index: {}]
  %s5 = sld [smem:[#allocation0]]
  $region26: #{vit_forward.17} parent=0
    _
  %s7 = ssub.s32 1, %s5
  %s8 = scalar_select 0, %s7, %s5
  // Predicated region
  $region2: #{vit_forward.17} parent=0 // pred_check
    _
  $region3: #{vit_forward.17} parent=0 // pred_check_branch
    %10 = sbr.rel (0) target = $region5
  $region4: #{vit_forward.17} parent=0 // pred_region
    _
  $region5: #{vit_forward.17} parent=0 // pred_fallthru
    _
  // Predicated region
  $region6: #{vit_forward.17} parent=0 // pred_check
    _
  $region7: #{vit_forward.17} parent=0 // pred_check_branch
    %12 = sbr.rel (0) target = $region9
  $region8: #{vit_forward.17} parent=0 // pred_region
    _
  $region9: #{vit_forward.17} parent=0 // pred_fallthru
    _
  // Predicated region
  $region10: #{vit_forward.17} parent=0 // pred_check
    _
  $region11: #{vit_forward.17} parent=0 // pred_check_branch
    %14 = sbr.rel (0) target = $region13
  $region12: #{vit_forward.17} parent=0 // pred_region
    _
  $region13: #{vit_forward.17} parent=0 // pred_fallthru
    _
  // Predicated region
  $region14: #{vit_forward.17} parent=0 // pred_check
    _
  $region15: #{vit_forward.17} parent=0 // pred_check_branch
    %16 = sbr.rel (0) target = $region17
  $region16: #{vit_forward.17} parent=0 // pred_region
    _
  $region17: #{vit_forward.17} parent=0 // pred_fallthru
    _
  %v18 = vld [vmem:[%s0] sm:$0xff]
  %v19 = vld [vmem:[%s0 + $0x8] sm:$0xff]
  %v20 = vld [vmem:[%s0 + $0x10] sm:$0xff]
  %v21 = vld [vmem:[%s0 + $0x18] sm:$0xff]
  %v22 = vld [vmem:[%s0 + $0x20] sm:$0x3]
  %v23 = vpack.c.bf16 %v19, %v18
  %v24 = vpack.c.bf16 %v21, %v20
  %v25 = vpack.c.bf16 %v22, %v22
  %v26 = vld [vmem:[%s1] sm:$0xf]
  %v27 = vld [vmem:[%s1 + $0x4] sm:$0xf]
  %v28 = vld [vmem:[%s1 + $0x8] sm:$0xf]
  %v29 = vld [vmem:[%s1 + $0xc] sm:$0xf]
  %v30 = vld [vmem:[%s2] sm:$0x1]
  %v32 = vlaneseq
  %v33 = vshrl.u32 %v32, 7
  %v34 = vsub.s32 0, %v33
  %v35 = vrot.slane %v30, %v34
  %v41 = vunpack.c.l.b16 %v26
  %v42 = vunpack.c.l.b16 %v27
  %v43 = vunpack.c.l.b16 %v28
  %v44 = vunpack.c.l.b16 %v29
  %v45 = vpack.c.b16 %v42, %v41
  %v46 = vpack.c.b16 %v44, %v43
  %vm49 = vcmask 261120
  %v51 = vsel %vm49, %v23, 0
  %v54 = vsel %vm49, %v24, 0
  %v57 = vsel %vm49, %v25, 0
  %59 = vmatprep.subr.bf16.mxu0 0
  %60 = vmatpush1.bf16.msra.mxu0 0
  %61 = vmatprep.subr.bf16.mxu0 0
  %62 = vmatpush1.bf16.msra.mxu0 0
  %63 = vmatprep.subr.bf16.mxu0 0
  %64 = vmatpush1.bf16.msra.mxu0 0
  %65 = vmatprep.subr.bf16.mxu0 0
  %66 = vmatpush1.bf16.msra.mxu0 0
  %67 = vmatprep.subr.bf16.mxu0 0
  %68 = vmatpush1.bf16.msra.mxu0 0
  %69 = vmatprep.subr.bf16.mxu0 0
  %70 = vmatpush1.bf16.msra.mxu0 0
  %71 = vmatprep.subr.bf16.mxu0 0
  %72 = vmatpush1.bf16.msra.mxu0 %v46
  %73 = vmatprep.subr.bf16.mxu0 0
  %74 = vmatpush1.bf16.msra.mxu0 %v45
  %75 = vmatprep.subr.bf16.mxu0 0
  %76 = vmatpush2.bf16.msra.mxu0 0
  %77 = vmatprep.subr.bf16.mxu0 0
  %78 = vmatpush2.bf16.msra.mxu0 0
  %79 = vmatprep.subr.bf16.mxu0 0
  %80 = vmatpush2.bf16.msra.mxu0 0
  %81 = vmatprep.subr.bf16.mxu0 0
  %82 = vmatpush2.bf16.msra.mxu0 0
  %83 = vmatprep.subr.bf16.mxu0 0
  %84 = vmatpush2.bf16.msra.mxu0 0
  %85 = vmatprep.subr.bf16.mxu0 0
  %86 = vmatpush2.bf16.msra.mxu0 0
  %87 = vmatprep.subr.bf16.mxu0 0
  %88 = vmatpush2.bf16.msra.mxu0 0
  %89 = vmatprep.subr.bf16.mxu0 0
  %90 = vmatpush2.bf16.msra.mxu0 0
  %91 = vmatprep.mubr.bf16.mxu0 0
  %92 = vmatmul.mubr.bf16.gmra.mxu0 %v51
  %v93 = vpop.f32.mrf.mxu0
  %v94 = vadd.f32 %v35, %v93
  %v95 = vpop.f32.mrf.mxu0
  %v96 = vpop.f32.mrf.mxu0
  %v97 = vadd.f32 %v35, %v96
  %v98 = vpop.f32.mrf.mxu0
  %99 = vmatprep.mubr.bf16.mxu0 0
  %100 = vmatmul.mubr.bf16.gmra.mxu0 %v54
  %v101 = vpop.f32.mrf.mxu0
  %v102 = vadd.f32 %v35, %v101
  %v103 = vpop.f32.mrf.mxu0
  %v104 = vpop.f32.mrf.mxu0
  %v105 = vadd.f32 %v35, %v104
  %v106 = vpop.f32.mrf.mxu0
  %107 = vmatprep.mubr.bf16.mxu0 0
  %108 = vmatmul.mubr.bf16.gmra.mxu0 %v57
  %v109 = vpop.f32.mrf.mxu0
  %v110 = vadd.f32 %v35, %v109
  %v111 = vpop.f32.mrf.mxu0
  %v112 = vpop.f32.mrf.mxu0
  %v113 = vpop.f32.mrf.mxu0
  %114 = vdwg.mxu0
  %v115 = vld [vmem:[%s3] sm:$0xff]
  %v116 = vld [vmem:[%s3 + $0x8] sm:$0xff]
  %v117 = vld [vmem:[%s3 + $0x10] sm:$0xff]
  %v118 = vld [vmem:[%s3 + $0x18] sm:$0xff]
  %v119 = vld [vmem:[%s3 + $0x20] sm:$0x3]
  %v120 = vadd.f32 %v94, %v115
  %v121 = vadd.f32 %v97, %v116
  %v122 = vadd.f32 %v102, %v117
  %v123 = vadd.f32 %v105, %v118
  %v124 = vadd.f32 %v110, %v119
  %125 = vst.msk [vmem:[%s4] sm:$0xff] %vm49, %v120
  %126 = vst.msk [vmem:[%s4 + $0x8] sm:$0xff] %vm49, %v121
  %127 = vst.msk [vmem:[%s4 + $0x10] sm:$0xff] %vm49, %v122
  %128 = vst.msk [vmem:[%s4 + $0x18] sm:$0xff] %vm49, %v123
  %vm129 = vcmask 254976
  %130 = vst.msk [vmem:[%s4 + $0x20] sm:$0x3] %vm129, %v124
  // Predicated region
  $region18: #{vit_forward.17} parent=0 // pred_check
    _
  $region19: #{vit_forward.17} parent=0 // pred_check_branch
    %132 = sbr.rel (0) target = $region21
  $region20: #{vit_forward.17} parent=0 // pred_region
    _
  $region21: #{vit_forward.17} parent=0 // pred_fallthru
    _
  // Predicated region
  $region22: #{vit_forward.17} parent=0 // pred_check
    _
  $region23: #{vit_forward.17} parent=0 // pred_check_branch
    %134 = sbr.rel (0) target = $region25
  $region24: #{vit_forward.17} parent=0 // pred_region
    _
  $region25: #{vit_forward.17} parent=0 // pred_fallthru
    _

// kernel: squeeze.4
$region0: #{squeeze.4}
  %s0 = inlined_call_operand.vmem [shape: f32[1,34,32], index: 0, kind: input, shape index: {}]
  %s1 = inlined_call_operand.vmem [shape: f32[2,17,32], index: 1, kind: output, shape index: {}]
  %v2 = vld [vmem:[%s0] sm:$0xff]
  %vm3 = vcmask 261120
  %4 = vst.msk [vmem:[%s1] sm:$0xff] %vm3, %v2
  %s5 = scalar_lea.vmem %s0, 8
  %v6 = vld [vmem:[%s5] sm:$0xff]
  %vm7 = vcmask 261120
  %s8 = scalar_lea.vmem %s1, 8
  %9 = vst.msk [vmem:[%s8] sm:$0xff] %vm7, %v6
  %s10 = scalar_lea.vmem %s0, 16
  %v11 = vld [vmem:[%s10] sm:$0xff]
  %vm12 = vcmask 261120
  %s13 = scalar_lea.vmem %s1, 16
  %14 = vst.msk [vmem:[%s13] ss:$8 sm:$0x3] %vm12, %v11
  %s15 = scalar_lea.vmem %s1, 23
  %16 = vst.msk [vmem:[%s15] sm:$0xfc] %vm12, %v11
  %s17 = scalar_lea.vmem %s0, 24
  %v18 = vld [vmem:[%s17] sm:$0xff]
  %vm19 = vcmask 261120
  %s20 = scalar_lea.vmem %s1, 31
  %21 = vst.msk [vmem:[%s20] sm:$0xff] %vm19, %v18
  %s22 = scalar_lea.vmem %s0, 32
  %v23 = vld [vmem:[%s22] sm:$0x3]
  %vm24 = vcmask 261120
  %s25 = scalar_lea.vmem %s1, 39
  %26 = vst.msk [vmem:[%s25] sm:$0x3] %vm24, %v23

// kernel: vit_forward.18
$region0: #{vit_forward.18}
  #allocation0 [shape = 'u32[]', space=smem, size = 0x4, offset = 0x4, fixed_abs, tag = 'smem constant byte address 0x4 - core index']
  #allocation1 [shape = 'u32[144,128]{1,0:T(1,128)}', space=vmem, size = 0x12000, scoped, tag = 'internal scratch']
  %s0 = inlined_call_operand.vmem [shape: f32[1,34,32], index: 0, kind: input, shape index: {}]
  %s1 = inlined_call_operand.vmem [shape: bf16[1,32,128], index: 1, kind: input, shape index: {}]
  %s2 = inlined_call_operand.vmem [shape: f32[1,1,128], index: 2, kind: input, shape index: {}]
  %s3 = inlined_call_operand.vmem [shape: f32[1,1,32], index: 3, kind: input, shape index: {}]
  %s4 = inlined_call_operand.vmem [shape: f32[1,1,32], index: 4, kind: input, shape index: {}]
  %s5 = inlined_call_operand.vmem [shape: f32[1,34,128], index: 5, kind: output, shape index: {}]
  %s6 = sld [smem:[#allocation0]]
  $region30: #{vit_forward.18} parent=0
    _
  %s8 = ssub.s32 1, %s6
  %s9 = scalar_select 0, %s8, %s6
  // Predicated region
  $region2: #{vit_forward.18} parent=0 // pred_check
    _
  $region3: #{vit_forward.18} parent=0 // pred_check_branch
    %11 = sbr.rel (0) target = $region5
  $region4: #{vit_forward.18} parent=0 // pred_region
    _
  $region5: #{vit_forward.18} parent=0 // pred_fallthru
    _
  // Predicated region
  $region6: #{vit_forward.18} parent=0 // pred_check
    _
  $region7: #{vit_forward.18} parent=0 // pred_check_branch
    %13 = sbr.rel (0) target = $region9
  $region8: #{vit_forward.18} parent=0 // pred_region
    _
  $region9: #{vit_forward.18} parent=0 // pred_fallthru
    _
  // Predicated region
  $region10: #{vit_forward.18} parent=0 // pred_check
    _
  $region11: #{vit_forward.18} parent=0 // pred_check_branch
    %15 = sbr.rel (0) target = $region13
  $region12: #{vit_forward.18} parent=0 // pred_region
    _
  $region13: #{vit_forward.18} parent=0 // pred_fallthru
    _
  // Predicated region
  $region14: #{vit_forward.18} parent=0 // pred_check
    _
  $region15: #{vit_forward.18} parent=0 // pred_check_branch
    %17 = sbr.rel (0) target = $region17
  $region16: #{vit_forward.18} parent=0 // pred_region
    _
  $region17: #{vit_forward.18} parent=0 // pred_fallthru
    _
  // Predicated region
  $region18: #{vit_forward.18} parent=0 // pred_check
    _
  $region19: #{vit_forward.18} parent=0 // pred_check_branch
    %19 = sbr.rel (0) target = $region21
  $region20: #{vit_forward.18} parent=0 // pred_region
    _
  $region21: #{vit_forward.18} parent=0 // pred_fallthru
    _
  %v21 = vld [vmem:[%s0] sm:$0xff]
  %v22 = vld [vmem:[%s0 + $0x8] sm:$0xff]
  %v23 = vld [vmem:[%s0 + $0x10] sm:$0xff]
  %v24 = vld [vmem:[%s0 + $0x18] sm:$0xff]
  %v25 = vld [vmem:[%s0 + $0x20] sm:$0x3]
  %vm26 = vcmask 261120
  %v27 = vsel %vm26, %v21, 0.0
  %28 = vadd.xlane.f32.xlu0 %v27
  %v29 = vpop.xlane.xlu0 %28
  %v30 = vsel %vm26, %v22, 0.0
  %31 = vadd.xlane.f32.xlu0 %v30
  %v32 = vpop.xlane.xlu0 %31
  %v33 = vsel %vm26, %v23, 0.0
  %34 = vadd.xlane.f32.xlu0 %v33
  %v35 = vpop.xlane.xlu0 %34
  %v36 = vsel %vm26, %v24, 0.0
  %37 = vadd.xlane.f32.xlu0 %v36
  %v38 = vpop.xlane.xlu0 %37
  %vm39 = vcmask 254976
  %v40 = vsel %vm39, %v25, 0.0
  %41 = vadd.xlane.f32.xlu0 %v40
  %v42 = vpop.xlane.xlu0 %41
  %v43 = vrcp.pop 32.0
  %v44 = vmul.f32 %v29, %v43
  %v45 = vmul.f32 %v32, %v43
  %v46 = vmul.f32 %v35, %v43
  %v47 = vmul.f32 %v38, %v43
  %v48 = vmul.f32 %v42, %v43
  %v49 = vsub.f32 %v21, %v44
  %v50 = vsub.f32 %v22, %v45
  %v51 = vsub.f32 %v23, %v46
  %v52 = vsub.f32 %v24, %v47
  %v53 = vsub.f32 %v25, %v48
  %v54 = vmul.f32 %v49, %v49
  %v55 = vmul.f32 %v50, %v50
  %v56 = vmul.f32 %v51, %v51
  %v57 = vmul.f32 %v52, %v52
  %v58 = vmul.f32 %v53, %v53
  %v59 = vsel %vm26, %v54, 0.0
  %60 = vadd.xlane.f32.xlu0 %v59
  %v61 = vpop.xlane.xlu0 %60
  %v62 = vsel %vm26, %v55, 0.0
  %63 = vadd.xlane.f32.xlu0 %v62
  %v64 = vpop.xlane.xlu0 %63
  %v65 = vsel %vm26, %v56, 0.0
  %66 = vadd.xlane.f32.xlu0 %v65
  %v67 = vpop.xlane.xlu0 %66
  %v68 = vsel %vm26, %v57, 0.0
  %69 = vadd.xlane.f32.xlu0 %v68
  %v70 = vpop.xlane.xlu0 %69
  %v71 = vsel %vm39, %v58, 0.0
  %72 = vadd.xlane.f32.xlu0 %v71
  %v73 = vpop.xlane.xlu0 %72
  %v74 = vmul.f32 %v61, %v43
  %v75 = vmul.f32 %v64, %v43
  %v76 = vmul.f32 %v67, %v43
  %v77 = vmul.f32 %v70, %v43
  %v78 = vmul.f32 %v73, %v43
  %v79 = vadd.f32 %v74, 1e-05
  %v80 = vadd.f32 %v75, 1e-05
  %v81 = vadd.f32 %v76, 1e-05
  %v82 = vadd.f32 %v77, 1e-05
  %v83 = vadd.f32 %v78, 1e-05
  %v84 = vrsqrt.pop %v79
  %v85 = vrsqrt.pop %v80
  %v86 = vrsqrt.pop %v81
  %v87 = vrsqrt.pop %v82
  %v88 = vrsqrt.pop %v83
  %v89 = vmul.f32 %v49, %v84
  %v90 = vmul.f32 %v50, %v85
  %v91 = vmul.f32 %v51, %v86
  %v92 = vmul.f32 %v52, %v87
  %v93 = vmul.f32 %v53, %v88
  %v94 = vld [vmem:[%s3] sm:$0x1]
  %v96 = vlaneseq
  %v97 = vshrl.u32 %v96, 7
  %v98 = vsub.s32 0, %v97
  %v99 = vrot.slane %v94, %v98
  %v101 = vmul.f32 %v89, %v99
  %v102 = vmul.f32 %v90, %v99
  %v103 = vmul.f32 %v91, %v99
  %v104 = vmul.f32 %v92, %v99
  %v105 = vmul.f32 %v93, %v99
  %v106 = vld [vmem:[%s4] sm:$0x1]
  %v108 = vlaneseq
  %v109 = vshrl.u32 %v108, 7
  %v110 = vsub.s32 0, %v109
  %v111 = vrot.slane %v106, %v110
  %v113 = vadd.f32 %v101, %v111
  %v114 = vadd.f32 %v102, %v111
  %v115 = vadd.f32 %v103, %v111
  %v116 = vadd.f32 %v104, %v111
  %v117 = vadd.f32 %v105, %v111
  %v118 = vpack.c.bf16 %v114, %v113
  %v119 = vpack.c.bf16 %v116, %v115
  %v120 = vpack.c.bf16 %v117, %v117
  %v121 = vld [vmem:[%s1] sm:$0xf]
  %v122 = vld [vmem:[%s1 + $0x4] sm:$0xf]
  %v123 = vld [vmem:[%s1 + $0x8] sm:$0xf]
  %v124 = vld [vmem:[%s1 + $0xc] sm:$0xf]
  %v125 = vld [vmem:[%s2] sm:$0x1]
  %v127 = vlaneseq
  %v128 = vshrl.u32 %v127, 7
  %v129 = vsub.s32 0, %v128
  %v130 = vrot.slane %v125, %v129
  %v136 = vunpack.c.l.b16 %v121
  %v137 = vunpack.c.l.b16 %v122
  %v138 = vunpack.c.l.b16 %v123
  %v139 = vunpack.c.l.b16 %v124
  %v140 = vpack.c.b16 %v137, %v136
  %v141 = vpack.c.b16 %v139, %v138
  %v145 = vsel %vm26, %v118, 0
  %v148 = vsel %vm26, %v119, 0
  %v151 = vsel %vm26, %v120, 0
  %153 = vmatprep.subr.bf16.mxu0 0
  %154 = vmatpush1.bf16.msra.mxu0 0
  %155 = vmatprep.subr.bf16.mxu0 0
  %156 = vmatpush1.bf16.msra.mxu0 0
  %157 = vmatprep.subr.bf16.mxu0 0
  %158 = vmatpush1.bf16.msra.mxu0 0
  %159 = vmatprep.subr.bf16.mxu0 0
  %160 = vmatpush1.bf16.msra.mxu0 0
  %161 = vmatprep.subr.bf16.mxu0 0
  %162 = vmatpush1.bf16.msra.mxu0 0
  %163 = vmatprep.subr.bf16.mxu0 0
  %164 = vmatpush1.bf16.msra.mxu0 0
  %165 = vmatprep.subr.bf16.mxu0 0
  %166 = vmatpush1.bf16.msra.mxu0 %v141
  %167 = vmatprep.subr.bf16.mxu0 0
  %168 = vmatpush1.bf16.msra.mxu0 %v140
  %169 = vmatprep.subr.bf16.mxu0 0
  %170 = vmatpush2.bf16.msra.mxu0 0
  %171 = vmatprep.subr.bf16.mxu0 0
  %172 = vmatpush2.bf16.msra.mxu0 0
  %173 = vmatprep.subr.bf16.mxu0 0
  %174 = vmatpush2.bf16.msra.mxu0 0
  %175 = vmatprep.subr.bf16.mxu0 0
  %176 = vmatpush2.bf16.msra.mxu0 0
  %177 = vmatprep.subr.bf16.mxu0 0
  %178 = vmatpush2.bf16.msra.mxu0 0
  %179 = vmatprep.subr.bf16.mxu0 0
  %180 = vmatpush2.bf16.msra.mxu0 0
  %181 = vmatprep.subr.bf16.mxu0 0
  %182 = vmatpush2.bf16.msra.mxu0 0
  %183 = vmatprep.subr.bf16.mxu0 0
  %184 = vmatpush2.bf16.msra.mxu0 0
  %185 = vmatprep.mubr.bf16.mxu0 0
  %186 = vmatmul.mubr.bf16.gmra.mxu0 %v145
  %v187 = vpop.f32.mrf.mxu0
  %v188 = vadd.f32 %v130, %v187
  %v189 = vpop.f32.mrf.mxu0
  %v190 = vpop.f32.mrf.mxu0
  %v191 = vadd.f32 %v130, %v190
  %v192 = vpop.f32.mrf.mxu0
  %193 = vmatprep.mubr.bf16.mxu0 0
  %194 = vmatmul.mubr.bf16.gmra.mxu0 %v148
  %v195 = vpop.f32.mrf.mxu0
  %v196 = vadd.f32 %v130, %v195
  %v197 = vpop.f32.mrf.mxu0
  %v198 = vpop.f32.mrf.mxu0
  %v199 = vadd.f32 %v130, %v198
  %v200 = vpop.f32.mrf.mxu0
  %201 = vmatprep.mubr.bf16.mxu0 0
  %202 = vmatmul.mubr.bf16.gmra.mxu0 %v151
  %v203 = vpop.f32.mrf.mxu0
  %v204 = vadd.f32 %v130, %v203
  %v205 = vpop.f32.mrf.mxu0
  %v206 = vpop.f32.mrf.mxu0
  %v207 = vpop.f32.mrf.mxu0
  %208 = vdwg.mxu0
  %v209 = vmul.f32 %v188, 0.5
  %v210 = vmul.f32 %v191, 0.5
  %v211 = vmul.f32 %v196, 0.5
  %v212 = vmul.f32 %v199, 0.5
  %v213 = vmul.f32 %v204, 0.5
  %v214 = vmul.f32 %v188, 0.044715
  %v215 = vmul.f32 %v191, 0.044715
  %v216 = vmul.f32 %v196, 0.044715
  %v217 = vmul.f32 %v199, 0.044715
  %v218 = vmul.f32 %v204, 0.044715
  %v219 = vmul.f32 %v214, %v188
  %v220 = vmul.f32 %v215, %v191
  %v221 = vmul.f32 %v216, %v196
  %v222 = vmul.f32 %v217, %v199
  %v223 = vmul.f32 %v218, %v204
  %v224 = vmul.f32 %v219, %v188
  %v225 = vmul.f32 %v220, %v191
  %v226 = vmul.f32 %v221, %v196
  %v227 = vmul.f32 %v222, %v199
  %v228 = vmul.f32 %v223, %v204
  %v229 = vadd.f32 %v188, %v224
  %v230 = vadd.f32 %v191, %v225
  %v231 = vadd.f32 %v196, %v226
  %v232 = vadd.f32 %v199, %v227
  %v233 = vadd.f32 %v204, %v228
  %v234 = vmul.f32 %v229, 0.7978846
  %v235 = vmul.f32 %v230, 0.7978846
  %v236 = vmul.f32 %v231, 0.7978846
  %v237 = vmul.f32 %v232, 0.7978846
  %v238 = vmul.f32 %v233, 0.7978846
  %v239 = vtanh.pop %v234
  %v240 = vtanh.pop %v235
  %v241 = vtanh.pop %v236
  %v242 = vtanh.pop %v237
  %v243 = vtanh.pop %v238
  %v244 = vadd.f32 %v239, 1.0
  %v245 = vadd.f32 %v240, 1.0
  %v246 = vadd.f32 %v241, 1.0
  %v247 = vadd.f32 %v242, 1.0
  %v248 = vadd.f32 %v243, 1.0
  %v249 = vmul.f32 %v209, %v244
  %v250 = vmul.f32 %v210, %v245
  %v251 = vmul.f32 %v211, %v246
  %v252 = vmul.f32 %v212, %v247
  %v253 = vmul.f32 %v213, %v248
  %254 = vst [vmem:[%s5] sm:$0xff] %v249
  %255 = vst [vmem:[%s5 + $0x8] sm:$0xff] %v250
  %256 = vst [vmem:[%s5 + $0x10] sm:$0xff] %v251
  %257 = vst [vmem:[%s5 + $0x18] sm:$0xff] %v252
  %258 = vst [vmem:[%s5 + $0x20] sm:$0x3] %v253
  // Predicated region
  $region22: #{vit_forward.18} parent=0 // pred_check
    _
  $region23: #{vit_forward.18} parent=0 // pred_check_branch
    %260 = sbr.rel (0) target = $region25
  $region24: #{vit_forward.18} parent=0 // pred_region
    _
  $region25: #{vit_forward.18} parent=0 // pred_fallthru
    _
  // Predicated region
  $region26: #{vit_forward.18} parent=0 // pred_check
    _
  $region27: #{vit_forward.18} parent=0 // pred_check_branch
    %262 = sbr.rel (0) target = $region29
  $region28: #{vit_forward.18} parent=0 // pred_region
    _
  $region29: #{vit_forward.18} parent=0 // pred_fallthru
    _

// kernel: vit_forward.19
$region0: #{vit_forward.19}
  #allocation0 [shape = 'u32[]', space=smem, size = 0x4, offset = 0x4, fixed_abs, tag = 'smem constant byte address 0x4 - core index']
  #allocation1 [shape = 'u32[144,128]{1,0:T(1,128)}', space=vmem, size = 0x12000, scoped, tag = 'internal scratch']
  %s0 = inlined_call_operand.vmem [shape: f32[1,34,128], index: 0, kind: input, shape index: {}]
  %s1 = inlined_call_operand.vmem [shape: bf16[1,128,32], index: 1, kind: input, shape index: {}]
  %s2 = inlined_call_operand.vmem [shape: f32[1,1,32], index: 2, kind: input, shape index: {}]
  %s3 = inlined_call_operand.vmem [shape: f32[1,34,32], index: 3, kind: input, shape index: {}]
  %s4 = inlined_call_operand.vmem [shape: f32[1,34,32], index: 4, kind: output, shape index: {}]
  %s5 = sld [smem:[#allocation0]]
  $region26: #{vit_forward.19} parent=0
    _
  %s7 = ssub.s32 1, %s5
  %s8 = scalar_select 0, %s7, %s5
  // Predicated region
  $region2: #{vit_forward.19} parent=0 // pred_check
    _
  $region3: #{vit_forward.19} parent=0 // pred_check_branch
    %10 = sbr.rel (0) target = $region5
  $region4: #{vit_forward.19} parent=0 // pred_region
    _
  $region5: #{vit_forward.19} parent=0 // pred_fallthru
    _
  // Predicated region
  $region6: #{vit_forward.19} parent=0 // pred_check
    _
  $region7: #{vit_forward.19} parent=0 // pred_check_branch
    %12 = sbr.rel (0) target = $region9
  $region8: #{vit_forward.19} parent=0 // pred_region
    _
  $region9: #{vit_forward.19} parent=0 // pred_fallthru
    _
  // Predicated region
  $region10: #{vit_forward.19} parent=0 // pred_check
    _
  $region11: #{vit_forward.19} parent=0 // pred_check_branch
    %14 = sbr.rel (0) target = $region13
  $region12: #{vit_forward.19} parent=0 // pred_region
    _
  $region13: #{vit_forward.19} parent=0 // pred_fallthru
    _
  // Predicated region
  $region14: #{vit_forward.19} parent=0 // pred_check
    _
  $region15: #{vit_forward.19} parent=0 // pred_check_branch
    %16 = sbr.rel (0) target = $region17
  $region16: #{vit_forward.19} parent=0 // pred_region
    _
  $region17: #{vit_forward.19} parent=0 // pred_fallthru
    _
  %v18 = vld [vmem:[%s0] sm:$0xff]
  %v19 = vld [vmem:[%s0 + $0x8] sm:$0xff]
  %v20 = vld [vmem:[%s0 + $0x10] sm:$0xff]
  %v21 = vld [vmem:[%s0 + $0x18] sm:$0xff]
  %v22 = vld [vmem:[%s0 + $0x20] sm:$0x3]
  %v23 = vpack.c.bf16 %v19, %v18
  %v24 = vpack.c.bf16 %v21, %v20
  %v25 = vpack.c.bf16 %v22, %v22
  %v26 = vld [vmem:[%s1] sm:$0xf]
  %v27 = vld [vmem:[%s1 + $0x4] sm:$0xf]
  %v28 = vld [vmem:[%s1 + $0x8] sm:$0xf]
  %v29 = vld [vmem:[%s1 + $0xc] sm:$0xf]
  %v30 = vld [vmem:[%s1 + $0x10] sm:$0xf]
  %v31 = vld [vmem:[%s1 + $0x14] sm:$0xf]
  %v32 = vld [vmem:[%s1 + $0x18] sm:$0xf]
  %v33 = vld [vmem:[%s1 + $0x1c] sm:$0xf]
  %v34 = vld [vmem:[%s1 + $0x20] sm:$0xf]
  %v35 = vld [vmem:[%s1 + $0x24] sm:$0xf]
  %v36 = vld [vmem:[%s1 + $0x28] sm:$0xf]
  %v37 = vld [vmem:[%s1 + $0x2c] sm:$0xf]
  %v38 = vld [vmem:[%s1 + $0x30] sm:$0xf]
  %v39 = vld [vmem:[%s1 + $0x34] sm:$0xf]
  %v40 = vld [vmem:[%s1 + $0x38] sm:$0xf]
  %v41 = vld [vmem:[%s1 + $0x3c] sm:$0xf]
  %v42 = vld [vmem:[%s2] sm:$0x1]
  %v44 = vlaneseq
  %v45 = vshrl.u32 %v44, 7
  %v46 = vsub.s32 0, %v45
  %v47 = vrot.slane %v42, %v46
  %v65 = vunpack.c.l.b16 %v26
  %v66 = vunpack.c.l.b16 %v27
  %v67 = vunpack.c.l.b16 %v28
  %v68 = vunpack.c.l.b16 %v29
  %v69 = vunpack.c.l.b16 %v30
  %v70 = vunpack.c.l.b16 %v31
  %v71 = vunpack.c.l.b16 %v32
  %v72 = vunpack.c.l.b16 %v33
  %v73 = vunpack.c.l.b16 %v34
  %v74 = vunpack.c.l.b16 %v35
  %v75 = vunpack.c.l.b16 %v36
  %v76 = vunpack.c.l.b16 %v37
  %v77 = vunpack.c.l.b16 %v38
  %v78 = vunpack.c.l.b16 %v39
  %v79 = vunpack.c.l.b16 %v40
  %v80 = vunpack.c.l.b16 %v41
  %v81 = vpack.c.b16 %v66, %v65
  %v82 = vpack.c.b16 %v68, %v67
  %v83 = vpack.c.b16 %v70, %v69
  %v84 = vpack.c.b16 %v72, %v71
  %v85 = vpack.c.b16 %v74, %v73
  %v86 = vpack.c.b16 %v76, %v75
  %v87 = vpack.c.b16 %v78, %v77
  %v88 = vpack.c.b16 %v80, %v79
  %97 = vmatprep.subr.bf16.mxu0 0
  %98 = vmatpush1.bf16.msra.mxu0 %v88
  %99 = vmatprep.subr.bf16.mxu0 0
  %100 = vmatpush1.bf16.msra.mxu0 %v87
  %101 = vmatprep.subr.bf16.mxu0 0
  %102 = vmatpush1.bf16.msra.mxu0 %v86
  %103 = vmatprep.subr.bf16.mxu0 0
  %104 = vmatpush1.bf16.msra.mxu0 %v85
  %105 = vmatprep.subr.bf16.mxu0 0
  %106 = vmatpush1.bf16.msra.mxu0 %v84
  %107 = vmatprep.subr.bf16.mxu0 0
  %108 = vmatpush1.bf16.msra.mxu0 %v83
  %109 = vmatprep.subr.bf16.mxu0 0
  %110 = vmatpush1.bf16.msra.mxu0 %v82
  %111 = vmatprep.subr.bf16.mxu0 0
  %112 = vmatpush1.bf16.msra.mxu0 %v81
  %113 = vmatprep.subr.bf16.mxu0 0
  %114 = vmatpush2.bf16.msra.mxu0 0
  %115 = vmatprep.subr.bf16.mxu0 0
  %116 = vmatpush2.bf16.msra.mxu0 0
  %117 = vmatprep.subr.bf16.mxu0 0
  %118 = vmatpush2.bf16.msra.mxu0 0
  %119 = vmatprep.subr.bf16.mxu0 0
  %120 = vmatpush2.bf16.msra.mxu0 0
  %121 = vmatprep.subr.bf16.mxu0 0
  %122 = vmatpush2.bf16.msra.mxu0 0
  %123 = vmatprep.subr.bf16.mxu0 0
  %124 = vmatpush2.bf16.msra.mxu0 0
  %125 = vmatprep.subr.bf16.mxu0 0
  %126 = vmatpush2.bf16.msra.mxu0 0
  %127 = vmatprep.subr.bf16.mxu0 0
  %128 = vmatpush2.bf16.msra.mxu0 0
  %129 = vmatprep.mubr.bf16.mxu0 0
  %130 = vmatmul.mubr.bf16.gmra.mxu0 %v23
  %v131 = vpop.f32.mrf.mxu0
  %v132 = vadd.f32 %v47, %v131
  %v133 = vpop.f32.mrf.mxu0
  %v134 = vpop.f32.mrf.mxu0
  %v135 = vadd.f32 %v47, %v134
  %v136 = vpop.f32.mrf.mxu0
  %137 = vmatprep.mubr.bf16.mxu0 0
  %138 = vmatmul.mubr.bf16.gmra.mxu0 %v24
  %v139 = vpop.f32.mrf.mxu0
  %v140 = vadd.f32 %v47, %v139
  %v141 = vpop.f32.mrf.mxu0
  %v142 = vpop.f32.mrf.mxu0
  %v143 = vadd.f32 %v47, %v142
  %v144 = vpop.f32.mrf.mxu0
  %145 = vmatprep.mubr.bf16.mxu0 0
  %146 = vmatmul.mubr.bf16.gmra.mxu0 %v25
  %v147 = vpop.f32.mrf.mxu0
  %v148 = vadd.f32 %v47, %v147
  %v149 = vpop.f32.mrf.mxu0
  %v150 = vpop.f32.mrf.mxu0
  %v151 = vpop.f32.mrf.mxu0
  %152 = vdwg.mxu0
  %v153 = vld [vmem:[%s3] sm:$0xff]
  %v154 = vld [vmem:[%s3 + $0x8] sm:$0xff]
  %v155 = vld [vmem:[%s3 + $0x10] sm:$0xff]
  %v156 = vld [vmem:[%s3 + $0x18] sm:$0xff]
  %v157 = vld [vmem:[%s3 + $0x20] sm:$0x3]
  %v158 = vadd.f32 %v132, %v153
  %v159 = vadd.f32 %v135, %v154
  %v160 = vadd.f32 %v140, %v155
  %v161 = vadd.f32 %v143, %v156
  %v162 = vadd.f32 %v148, %v157
  %vm163 = vcmask 261120
  %164 = vst.msk [vmem:[%s4] sm:$0xff] %vm163, %v158
  %165 = vst.msk [vmem:[%s4 + $0x8] sm:$0xff] %vm163, %v159
  %166 = vst.msk [vmem:[%s4 + $0x10] sm:$0xff] %vm163, %v160
  %167 = vst.msk [vmem:[%s4 + $0x18] sm:$0xff] %vm163, %v161
  %vm168 = vcmask 254976
  %169 = vst.msk [vmem:[%s4 + $0x20] sm:$0x3] %vm168, %v162
  // Predicated region
  $region18: #{vit_forward.19} parent=0 // pred_check
    _
  $region19: #{vit_forward.19} parent=0 // pred_check_branch
    %171 = sbr.rel (0) target = $region21
  $region20: #{vit_forward.19} parent=0 // pred_region
    _
  $region21: #{vit_forward.19} parent=0 // pred_fallthru
    _
  // Predicated region
  $region22: #{vit_forward.19} parent=0 // pred_check
    _
  $region23: #{vit_forward.19} parent=0 // pred_check_branch
    %173 = sbr.rel (0) target = $region25
  $region24: #{vit_forward.19} parent=0 // pred_region
    _
  $region25: #{vit_forward.19} parent=0 // pred_fallthru
    _

</llo_original>
